<compile_context>
chip_gen: v6e
topology: v6e:2x2x1
jax: 0.10.0
libtpu: 0.0.40
codegen_flags: <defaults>
</compile_context>

<pallas_src>
import functools

import jax
import jax.numpy as jnp
from jax import lax
from jax.experimental import pallas as pl
from jax.experimental.pallas import tpu as pltpu


# ----------------------------------------------------------------------------
# helpers
# ----------------------------------------------------------------------------
def _row_tile(r, cap=512):
    """Largest row-tile <= cap that divides r and is a multiple of 8."""
    if r <= cap:
        return r
    for tr in range(cap, 7, -8):
        if r % tr == 0:
            return tr
    return r


# ----------------------------------------------------------------------------
# GEMM kernel:  (TR, CI) @ (CI, K*K*CO)  with the previous layer's
# BatchNorm(scale/shift) + LeakyReLU optionally fused into the input.
# ----------------------------------------------------------------------------
def _gemm_kernel(*refs, fuse_bn_act, slope):
    if fuse_bn_act:
        x_ref, w_ref, ss_ref, o_ref = refs
        ss = ss_ref[...]                                   # (2, CI) f32
        x = x_ref[...].astype(jnp.float32) * ss[0:1, :] + ss[1:2, :]
        x = jnp.where(x >= 0.0, x, slope * x)              # LeakyReLU(0.01)
    else:
        x_ref, w_ref, o_ref = refs
        x = x_ref[...].astype(jnp.float32)
    y = jnp.dot(x.astype(jnp.bfloat16), w_ref[...],
                preferred_element_type=jnp.float32)
    o_ref[...] = y.astype(o_ref.dtype)


def _gemm(x_rows, wmat, scale_shift):
    R, CI = x_rows.shape
    N = wmat.shape[1]
    TR = _row_tile(R)
    fuse = scale_shift is not None
    kernel = functools.partial(_gemm_kernel, fuse_bn_act=fuse, slope=0.01)

    in_specs = [pl.BlockSpec((TR, CI), lambda i: (i, 0)),
                pl.BlockSpec((CI, N), lambda i: (0, 0))]
    operands = [x_rows, wmat]
    if fuse:
        in_specs.append(pl.BlockSpec((2, CI), lambda i: (0, 0)))
        operands.append(scale_shift)

    return pl.pallas_call(
        kernel,
        out_shape=jax.ShapeDtypeStruct((R, N), jnp.bfloat16),
        grid=(R // TR,),
        in_specs=in_specs,
        out_specs=pl.BlockSpec((TR, N), lambda i: (i, 0)),
        compiler_params=pltpu.CompilerParams(
            dimension_semantics=("parallel",)),
    )(*operands)


# ----------------------------------------------------------------------------
# Two-pass BatchNorm, pass 1: per-channel sum / sumsq reduction over all rows,
# finalized into folded (scale, shift) = (gamma*rsqrt(var+eps), beta-mean*scale).
# ----------------------------------------------------------------------------
def _bn_stats_kernel(y_ref, g_ref, b_ref, o_ref, *, n_rows, eps):
    t = pl.program_id(0)

    @pl.when(t == 0)
    def _():
        o_ref[...] = jnp.zeros_like(o_ref)

    y = y_ref[...].astype(jnp.float32)
    s = jnp.sum(y, axis=0, keepdims=True)
    sq = jnp.sum(y * y, axis=0, keepdims=True)
    o_ref[...] += jnp.concatenate([s, sq], axis=0)

    @pl.when(t == pl.num_programs(0) - 1)
    def _():
        acc = o_ref[...]
        mean = acc[0:1, :] / n_rows
        var = jnp.maximum(acc[1:2, :] / n_rows - mean * mean, 0.0)
        scale = g_ref[...] * lax.rsqrt(var + eps)
        shift = b_ref[...] - mean * scale
        o_ref[...] = jnp.concatenate([scale, shift], axis=0)


def _bn_scale_shift(y_rows, gamma, beta, eps=1e-5):
    R, C = y_rows.shape
    TR = _row_tile(R)
    kernel = functools.partial(_bn_stats_kernel, n_rows=float(R), eps=eps)
    return pl.pallas_call(
        kernel,
        out_shape=jax.ShapeDtypeStruct((2, C), jnp.float32),
        grid=(R // TR,),
        in_specs=[pl.BlockSpec((TR, C), lambda i: (i, 0)),
                  pl.BlockSpec((1, C), lambda i: (0, 0)),
                  pl.BlockSpec((1, C), lambda i: (0, 0))],
        out_specs=pl.BlockSpec((2, C), lambda i: (0, 0)),
        compiler_params=pltpu.CompilerParams(
            dimension_semantics=("arbitrary",)),
    )(y_rows, gamma, beta)


# ----------------------------------------------------------------------------
# Final Sigmoid (elementwise, lane-dense view)
# ----------------------------------------------------------------------------
def _sigmoid_kernel(x_ref, o_ref):
    x = x_ref[...].astype(jnp.float32)
    y = pl.reciprocal(1.0 + jnp.exp(-x), approx=True)
    o_ref[...] = jnp.clip(y, 0.0, 1.0).astype(o_ref.dtype)


def _sigmoid(y2d):
    R, C = y2d.shape
    TR = _row_tile(R)
    return pl.pallas_call(
        _sigmoid_kernel,
        out_shape=jax.ShapeDtypeStruct((R, C), jnp.float32),
        grid=(R // TR,),
        in_specs=[pl.BlockSpec((TR, C), lambda i: (i, 0))],
        out_specs=pl.BlockSpec((TR, C), lambda i: (i, 0)),
        compiler_params=pltpu.CompilerParams(
            dimension_semantics=("parallel",)),
    )(y2d)


# ----------------------------------------------------------------------------
# col2im overlap-add for stride=2, K=4 transposed conv (plain-JAX glue).
#   out[oh] = sum over (ih, kh) with  ih*2 + kh == oh + pad
# ----------------------------------------------------------------------------
def _overlap_add_axis(a0, a1, a2, a3, pad, axis):
    def zpad(x, before):
        cfg = [(0, 0)] * x.ndim
        cfg[axis] = (1, 0) if before else (0, 1)
        return jnp.pad(x, cfg)

    L = a0.shape[axis]
    if pad == 1:
        even = a1 + lax.slice_in_dim(zpad(a3, True), 0, L, axis=axis)
        odd = a2 + lax.slice_in_dim(zpad(a0, False), 1, L + 1, axis=axis)
    else:  # pad == 0
        even = zpad(a0, False) + zpad(a2, True)
        odd = zpad(a1, False) + zpad(a3, True)
    inter = jnp.stack([even, odd], axis=axis + 1)
    shp = list(even.shape)
    shp[axis] = 2 * shp[axis]
    return inter.reshape(shp)


def _col2im_s2k4(g6, pad):
    # g6: (B, H, W, K, K, CO) with K=4  ->  (B, OH, OW, CO)
    a = [g6[:, :, :, kh] for kh in range(4)]                   # (B, H, W, K, CO)
    rows = _overlap_add_axis(a[0], a[1], a[2], a[3], pad, axis=1)
    b = [rows[:, :, :, kw] for kw in range(4)]                 # (B, OH, W, CO)
    return _overlap_add_axis(b[0], b[1], b[2], b[3], pad, axis=2)


# ----------------------------------------------------------------------------
# One ConvTranspose2d layer (NHWC in / NHWC out)
# ----------------------------------------------------------------------------
def conv_transpose_layer(h, w, pad, scale_shift):
    """h: (B, H, W, CI) NHWC; w: (CI, CO, K, K) PyTorch ConvTranspose2d weight."""
    B, H, W, CI = h.shape
    CO, K = w.shape[1], w.shape[2]
    lanes = K * K * CO
    lanes_pad = ((lanes + 127) // 128) * 128
    # (CI, K*K*CO) weight matrix, lane order (kh, kw, co), bf16 for the MXU.
    wmat = jnp.transpose(w, (0, 2, 3, 1)).reshape(CI, lanes).astype(jnp.bfloat16)
    if lanes_pad != lanes:
        wmat = jnp.pad(wmat, ((0, 0), (0, lanes_pad - lanes)))
    g = _gemm(h.reshape(B * H * W, CI), wmat, scale_shift)
    if lanes_pad != lanes:
        g = g[:, :lanes]
    g6 = g.reshape(B, H, W, K, K, CO)
    return _col2im_s2k4(g6, pad)                               # (B, OH, OW, CO) bf16


# ----------------------------------------------------------------------------
# Generator forward
# ----------------------------------------------------------------------------
def init_generator_params(key, noise_dim, out_channels, hidden_dims, K):
    """Deterministic synthetic weights; BN gamma=1, beta=0 (PyTorch init)."""
    dims = [noise_dim] + list(hidden_dims) + [out_channels]
    params = []
    for d1, d2 in zip(dims[:-1], dims[1:]):
        key, sub = jax.random.split(key)
        w = jax.random.normal(sub, (d1, d2, K, K), jnp.float32) * 0.05
        gamma = jnp.ones((1, d2), jnp.float32)
        beta = jnp.zeros((1, d2), jnp.float32)
        params.append((w, gamma, beta))
    return params


def generator_forward(params, x):
    """x: (B, noise_dim, 1, 1) NCHW f32 -> (B, out_channels, 64, 64) NCHW f32."""
    n = len(params)
    paddings = [0] + [1] * (n - 1)          # exactly as in the PyTorch module
    h = jnp.transpose(x, (0, 2, 3, 1))      # NCHW -> NHWC once, at the boundary
    scale_shift = None                      # pending (fused) BN+LeakyReLU of prev layer
    out = None
    for i, ((w, gamma, beta), pad) in enumerate(zip(params, paddings)):
        y = conv_transpose_layer(h, w, pad, scale_shift)
        if i < n - 1:
            CO = y.shape[-1]
            # training-mode BatchNorm2d batch stats over (B, OH, OW) per channel
            scale_shift = _bn_scale_shift(y.reshape(-1, CO), gamma, beta)
            h = y                            # BN+LeakyReLU applied inside next GEMM
        else:
            B, OH, OW, CO = y.shape
            s = _sigmoid(y.reshape(B * OH, OW * CO)).reshape(B, OH, OW, CO)
            out = jnp.transpose(s, (0, 3, 1, 2))   # NHWC -> NCHW at the boundary
    return out


# ----------------------------------------------------------------------------
# Pure-JAX f32 reference (for a semantic sanity check)
# ----------------------------------------------------------------------------
def _reference_forward(params, x):
    n = len(params)
    paddings = [0] + [1] * (n - 1)
    h = x.astype(jnp.float32)
    for i, ((w, gamma, beta), pad) in enumerate(zip(params, paddings)):
        K = w.shape[2]
        wr = jnp.flip(w, (2, 3)).transpose(1, 0, 2, 3)     # (CO, CI, K, K)
        p = K - 1 - pad
        y = lax.conv_general_dilated(
            h, wr, window_strides=(1, 1), padding=[(p, p), (p, p)],
            lhs_dilation=(2, 2), dimension_numbers=("NCHW", "OIHW", "NCHW"))
        if i < n - 1:
            mean = jnp.mean(y, axis=(0, 2, 3), keepdims=True)
            var = jnp.mean(jnp.square(y - mean), axis=(0, 2, 3), keepdims=True)
            yn = (y - mean) * lax.rsqrt(var + 1e-5)
            yn = yn * gamma.reshape(1, -1, 1, 1) + beta.reshape(1, -1, 1, 1)
            h = jnp.where(yn >= 0.0, yn, 0.01 * yn)
        else:
            h = jax.nn.sigmoid(y)
    return h


if __name__ == "__main__":
    key = jax.random.PRNGKey(0)
    # small but architecture-consistent shapes: noise vector -> 64x64 image
    noise_dim, out_channels = 16, 3
    hidden_dims = [32, 16, 16, 8]
    batch = 2
    kp, kx = jax.random.split(key)
    params = init_generator_params(kp, noise_dim, out_channels, hidden_dims, K=4)
    x = jax.random.normal(kx, (batch, noise_dim, 1, 1), jnp.float32)

    fwd = jax.jit(generator_forward)
    y = jax.block_until_ready(fwd(params, x))

    assert y.shape == (batch, out_channels, 64, 64), y.shape
    assert y.dtype == jnp.float32
    assert bool(jnp.all((y >= 0.0) & (y <= 1.0)))          # sigmoid output range

    # semantic check vs. an f32 pure-JAX reference (kernel path uses bf16
    # weights/activations on the MXU, so allow a loose tolerance)
    y_ref = jax.block_until_ready(jax.jit(_reference_forward)(params, x))
    assert float(jnp.max(jnp.abs(y - y_ref))) < 0.1

    print("KERNEL_OK")
</pallas_src>

<mosaic_0001>
module attributes {stable_mosaic.version = 11 : i64} {
  func.func @_gemm_kernel(%arg0: i32, %arg1: memref<2x16xf32, #tpu.memory_space<vmem>>, %arg2: memref<16x512xbf16, #tpu.memory_space<vmem>>, %arg3: memref<2x512xbf16, #tpu.memory_space<vmem>>) attributes {dimension_semantics = [#tpu.dimension_semantics<parallel>], iteration_bounds = array<i64: 1>, scalar_prefetch = 0 : i64, scratch_operands = 0 : i64, tpu.core_type = #tpu.core_type<tc>, window_params = [{transform_indices = @transform_0, window_bounds = array<i64: 2, 16>}, {pipeline_mode = #tpu.pipeline_mode<synchronous>, transform_indices = @transform_1, window_bounds = array<i64: 16, 512>}, {transform_indices = @transform_2, window_bounds = array<i64: 2, 512>}]} {
    %c0 = arith.constant 0 : index
    %c0_0 = arith.constant 0 : index
    %0 = vector.load %arg1[%c0, %c0_0] : memref<2x16xf32, #tpu.memory_space<vmem>>, vector<2x16xf32>
    %1 = arith.truncf %0 : vector<2x16xf32> to vector<2x16xbf16>
    %c0_1 = arith.constant 0 : index
    %c0_2 = arith.constant 0 : index
    %2 = vector.load %arg2[%c0_1, %c0_2] : memref<16x512xbf16, #tpu.memory_space<vmem>>, vector<16x512xbf16>
    %cst = arith.constant dense<0.000000e+00> : vector<2x512xf32>
    %3 = tpu.matmul %1, %2, %cst {dimension_numbers = #tpu.dot_dimension_numbers<[1], [0], [0], [1], [0, 0, 1, 1], [], []>} : vector<2x16xbf16>, vector<16x512xbf16>, vector<2x512xf32> -> vector<2x512xf32>
    %4 = arith.truncf %3 : vector<2x512xf32> to vector<2x512xbf16>
    %c0_3 = arith.constant 0 : index
    %c0_4 = arith.constant 0 : index
    %5 = vector.load %arg3[%c0_3, %c0_4] : memref<2x512xbf16, #tpu.memory_space<vmem>>, vector<2x512xbf16>
    tpu.vector_store %arg3[%c0_3, %c0_4], %4 {strides = array<i32>} : memref<2x512xbf16, #tpu.memory_space<vmem>>, vector<2x512xbf16>,
    return
  }
  func.func @transform_0(%arg0: i32) -> (i32, i32) {
    %c0_i32 = arith.constant 0 : i32
    %c0_i32_0 = arith.constant 0 : i32
    return %arg0, %c0_i32 : i32, i32
  }
  func.func @transform_1(%arg0: i32) -> (i32, i32) {
    %c0_i32 = arith.constant 0 : i32
    %c0_i32_0 = arith.constant 0 : i32
    %c0_i32_1 = arith.constant 0 : i32
    return %c0_i32, %c0_i32_0 : i32, i32
  }
  func.func @transform_2(%arg0: i32) -> (i32, i32) {
    %c0_i32 = arith.constant 0 : i32
    %c0_i32_0 = arith.constant 0 : i32
    return %arg0, %c0_i32 : i32, i32
  }
}

module attributes {stable_mosaic.version = 11 : i64} {
  func.func @_bn_stats_kernel(%arg0: i32, %arg1: memref<32x32xbf16, #tpu.memory_space<vmem>>, %arg2: memref<1x32xf32, #tpu.memory_space<vmem>>, %arg3: memref<1x32xf32, #tpu.memory_space<vmem>>, %arg4: memref<2x32xf32, #tpu.memory_space<vmem>>) attributes {dimension_semantics = [#tpu.dimension_semantics<arbitrary>], iteration_bounds = array<i64: 1>, scalar_prefetch = 0 : i64, scratch_operands = 0 : i64, tpu.core_type = #tpu.core_type<tc>, window_params = [{transform_indices = @transform_0, window_bounds = array<i64: 32, 32>}, {pipeline_mode = #tpu.pipeline_mode<synchronous>, transform_indices = @transform_1, window_bounds = array<i64: 1, 32>}, {pipeline_mode = #tpu.pipeline_mode<synchronous>, transform_indices = @transform_2, window_bounds = array<i64: 1, 32>}, {pipeline_mode = #tpu.pipeline_mode<synchronous>, transform_indices = @transform_3, window_bounds = array<i64: 2, 32>}]} {
    %c0_i32 = arith.constant 0 : i32
    %0 = arith.cmpi eq, %arg0, %c0_i32 : i32
    %1 = arith.extui %0 : i1 to i32
    %c0_i32_0 = arith.constant 0 : i32
    %2 = arith.cmpi ne, %1, %c0_i32_0 : i32
    scf.if %2 {
      %cst_9 = arith.constant 0.000000e+00 : f32
      %17 = vector.broadcast %cst_9 : f32 to vector<2x32xf32>
      %c0_10 = arith.constant 0 : index
      %c0_11 = arith.constant 0 : index
      %18 = vector.load %arg4[%c0_10, %c0_11] : memref<2x32xf32, #tpu.memory_space<vmem>>, vector<2x32xf32>
      tpu.vector_store %arg4[%c0_10, %c0_11], %17 {strides = array<i32>} : memref<2x32xf32, #tpu.memory_space<vmem>>, vector<2x32xf32>,
    } else {
    }
    %c0 = arith.constant 0 : index
    %c0_1 = arith.constant 0 : index
    %3 = vector.load %arg1[%c0, %c0_1] : memref<32x32xbf16, #tpu.memory_space<vmem>>, vector<32x32xbf16>
    %4 = arith.extf %3 : vector<32x32xbf16> to vector<32x32xf32>
    %cst = arith.constant dense<0.000000e+00> : vector<32xf32>
    %5 = vector.multi_reduction <add>, %4, %cst [0] : vector<32x32xf32> to vector<32xf32>
    %6 = vector.shape_cast %5 : vector<32xf32> to vector<1x32xf32>
    %7 = arith.mulf %4, %4 : vector<32x32xf32>
    %cst_2 = arith.constant dense<0.000000e+00> : vector<32xf32>
    %8 = vector.multi_reduction <add>, %7, %cst_2 [0] : vector<32x32xf32> to vector<32xf32>
    %9 = vector.shape_cast %8 : vector<32xf32> to vector<1x32xf32>
    %c0_3 = arith.constant 0 : index
    %c0_4 = arith.constant 0 : index
    %10 = vector.load %arg4[%c0_3, %c0_4] : memref<2x32xf32, #tpu.memory_space<vmem>>, vector<2x32xf32>
    %11 = tpu.concatenate %6, %9 in 0 : vector<1x32xf32>, vector<1x32xf32> -> vector<2x32xf32>
    %12 = arith.addf %10, %11 : vector<2x32xf32>
    %c0_5 = arith.constant 0 : index
    %c0_6 = arith.constant 0 : index
    %13 = vector.load %arg4[%c0_5, %c0_6] : memref<2x32xf32, #tpu.memory_space<vmem>>, vector<2x32xf32>
    tpu.vector_store %arg4[%c0_5, %c0_6], %12 {strides = array<i32>} : memref<2x32xf32, #tpu.memory_space<vmem>>, vector<2x32xf32>,
    %c0_i32_7 = arith.constant 0 : i32
    %14 = arith.cmpi eq, %arg0, %c0_i32_7 : i32
    %15 = arith.extui %14 : i1 to i32
    %c0_i32_8 = arith.constant 0 : i32
    %16 = arith.cmpi ne, %15, %c0_i32_8 : i32
    scf.if %16 {
      %c0_9 = arith.constant 0 : index
      %c0_10 = arith.constant 0 : index
      %17 = vector.load %arg4[%c0_9, %c0_10] : memref<2x32xf32, #tpu.memory_space<vmem>>, vector<2x32xf32>
      %18 = vector.extract_strided_slice %17 {offsets = [0, 0], sizes = [1, 32], strides = [1, 1]} : vector<2x32xf32> to vector<1x32xf32>
      %cst_11 = arith.constant 3.200000e+01 : f32
      %19 = vector.broadcast %cst_11 : f32 to vector<1x32xf32>
      %20 = arith.divf %18, %19 : vector<1x32xf32>
      %21 = vector.extract_strided_slice %17 {offsets = [1, 0], sizes = [1, 32], strides = [1, 1]} : vector<2x32xf32> to vector<1x32xf32>
      %cst_12 = arith.constant 3.200000e+01 : f32
      %22 = vector.broadcast %cst_12 : f32 to vector<1x32xf32>
      %23 = arith.divf %21, %22 : vector<1x32xf32>
      %24 = arith.mulf %20, %20 : vector<1x32xf32>
      %25 = arith.subf %23, %24 : vector<1x32xf32>
      %cst_13 = arith.constant 0.000000e+00 : f32
      %26 = vector.broadcast %cst_13 : f32 to vector<1x32xf32>
      %27 = arith.maximumf %25, %26 : vector<1x32xf32>
      %c0_14 = arith.constant 0 : index
      %c0_15 = arith.constant 0 : index
      %28 = vector.load %arg2[%c0_14, %c0_15] : memref<1x32xf32, #tpu.memory_space<vmem>>, vector<1x32xf32>
      %cst_16 = arith.constant 9.99999974E-6 : f32
      %29 = vector.broadcast %cst_16 : f32 to vector<1x32xf32>
      %30 = arith.addf %27, %29 : vector<1x32xf32>
      %31 = math.rsqrt %30 : vector<1x32xf32>
      %32 = arith.mulf %28, %31 : vector<1x32xf32>
      %c0_17 = arith.constant 0 : index
      %c0_18 = arith.constant 0 : index
      %33 = vector.load %arg3[%c0_17, %c0_18] : memref<1x32xf32, #tpu.memory_space<vmem>>, vector<1x32xf32>
      %34 = arith.mulf %20, %32 : vector<1x32xf32>
      %35 = arith.subf %33, %34 : vector<1x32xf32>
      %36 = tpu.concatenate %32, %35 in 0 : vector<1x32xf32>, vector<1x32xf32> -> vector<2x32xf32>
      %c0_19 = arith.constant 0 : index
      %c0_20 = arith.constant 0 : index
      %37 = vector.load %arg4[%c0_19, %c0_20] : memref<2x32xf32, #tpu.memory_space<vmem>>, vector<2x32xf32>
      tpu.vector_store %arg4[%c0_19, %c0_20], %36 {strides = array<i32>} : memref<2x32xf32, #tpu.memory_space<vmem>>, vector<2x32xf32>,
    } else {
    }
    return
  }
  func.func @transform_0(%arg0: i32) -> (i32, i32) {
    %c0_i32 = arith.constant 0 : i32
    %c0_i32_0 = arith.constant 0 : i32
    return %arg0, %c0_i32 : i32, i32
  }
  func.func @transform_1(%arg0: i32) -> (i32, i32) {
    %c0_i32 = arith.constant 0 : i32
    %c0_i32_0 = arith.constant 0 : i32
    %c0_i32_1 = arith.constant 0 : i32
    return %c0_i32, %c0_i32_0 : i32, i32
  }
  func.func @transform_2(%arg0: i32) -> (i32, i32) {
    %c0_i32 = arith.constant 0 : i32
    %c0_i32_0 = arith.constant 0 : i32
    %c0_i32_1 = arith.constant 0 : i32
    return %c0_i32, %c0_i32_0 : i32, i32
  }
  func.func @transform_3(%arg0: i32) -> (i32, i32) {
    %c0_i32 = arith.constant 0 : i32
    %c0_i32_0 = arith.constant 0 : i32
    %c0_i32_1 = arith.constant 0 : i32
    return %c0_i32, %c0_i32_0 : i32, i32
  }
}

module attributes {stable_mosaic.version = 11 : i64} {
  func.func @_gemm_kernel(%arg0: i32, %arg1: memref<32x32xbf16, #tpu.memory_space<vmem>>, %arg2: memref<32x256xbf16, #tpu.memory_space<vmem>>, %arg3: memref<2x32xf32, #tpu.memory_space<vmem>>, %arg4: memref<32x256xbf16, #tpu.memory_space<vmem>>) attributes {dimension_semantics = [#tpu.dimension_semantics<parallel>], iteration_bounds = array<i64: 1>, scalar_prefetch = 0 : i64, scratch_operands = 0 : i64, tpu.core_type = #tpu.core_type<tc>, window_params = [{transform_indices = @transform_0, window_bounds = array<i64: 32, 32>}, {pipeline_mode = #tpu.pipeline_mode<synchronous>, transform_indices = @transform_1, window_bounds = array<i64: 32, 256>}, {pipeline_mode = #tpu.pipeline_mode<synchronous>, transform_indices = @transform_2, window_bounds = array<i64: 2, 32>}, {transform_indices = @transform_3, window_bounds = array<i64: 32, 256>}]} {
    %c0 = arith.constant 0 : index
    %c0_0 = arith.constant 0 : index
    %0 = vector.load %arg3[%c0, %c0_0] : memref<2x32xf32, #tpu.memory_space<vmem>>, vector<2x32xf32>
    %c0_1 = arith.constant 0 : index
    %c0_2 = arith.constant 0 : index
    %1 = vector.load %arg1[%c0_1, %c0_2] : memref<32x32xbf16, #tpu.memory_space<vmem>>, vector<32x32xbf16>
    %2 = arith.extf %1 : vector<32x32xbf16> to vector<32x32xf32>
    %3 = vector.extract_strided_slice %0 {offsets = [0, 0], sizes = [1, 32], strides = [1, 1]} : vector<2x32xf32> to vector<1x32xf32>
    %4 = vector.broadcast %3 : vector<1x32xf32> to vector<32x32xf32>
    %5 = arith.mulf %2, %4 : vector<32x32xf32>
    %6 = vector.extract_strided_slice %0 {offsets = [1, 0], sizes = [1, 32], strides = [1, 1]} : vector<2x32xf32> to vector<1x32xf32>
    %7 = vector.broadcast %6 : vector<1x32xf32> to vector<32x32xf32>
    %8 = arith.addf %5, %7 : vector<32x32xf32>
    %cst = arith.constant 0.000000e+00 : f32
    %9 = vector.broadcast %cst : f32 to vector<32x32xf32>
    %10 = arith.cmpf oge, %8, %9 : vector<32x32xf32>
    %cst_3 = arith.constant 0.00999999977 : f32
    %11 = vector.broadcast %cst_3 : f32 to vector<32x32xf32>
    %12 = arith.mulf %11, %8 : vector<32x32xf32>
    %13 = arith.select %10, %8, %12 : vector<32x32xi1>, vector<32x32xf32>
    %14 = arith.truncf %13 : vector<32x32xf32> to vector<32x32xbf16>
    %c0_4 = arith.constant 0 : index
    %c0_5 = arith.constant 0 : index
    %15 = vector.load %arg2[%c0_4, %c0_5] : memref<32x256xbf16, #tpu.memory_space<vmem>>, vector<32x256xbf16>
    %cst_6 = arith.constant dense<0.000000e+00> : vector<32x256xf32>
    %16 = tpu.matmul %14, %15, %cst_6 {dimension_numbers = #tpu.dot_dimension_numbers<[1], [0], [0], [1], [0, 0, 1, 1], [], []>} : vector<32x32xbf16>, vector<32x256xbf16>, vector<32x256xf32> -> vector<32x256xf32>
    %17 = arith.truncf %16 : vector<32x256xf32> to vector<32x256xbf16>
    %c0_7 = arith.constant 0 : index
    %c0_8 = arith.constant 0 : index
    %18 = vector.load %arg4[%c0_7, %c0_8] : memref<32x256xbf16, #tpu.memory_space<vmem>>, vector<32x256xbf16>
    tpu.vector_store %arg4[%c0_7, %c0_8], %17 {strides = array<i32>} : memref<32x256xbf16, #tpu.memory_space<vmem>>, vector<32x256xbf16>,
    return
  }
  func.func @transform_0(%arg0: i32) -> (i32, i32) {
    %c0_i32 = arith.constant 0 : i32
    %c0_i32_0 = arith.constant 0 : i32
    return %arg0, %c0_i32 : i32, i32
  }
  func.func @transform_1(%arg0: i32) -> (i32, i32) {
    %c0_i32 = arith.constant 0 : i32
    %c0_i32_0 = arith.constant 0 : i32
    %c0_i32_1 = arith.constant 0 : i32
    return %c0_i32, %c0_i32_0 : i32, i32
  }
  func.func @transform_2(%arg0: i32) -> (i32, i32) {
    %c0_i32 = arith.constant 0 : i32
    %c0_i32_0 = arith.constant 0 : i32
    %c0_i32_1 = arith.constant 0 : i32
    return %c0_i32, %c0_i32_0 : i32, i32
  }
  func.func @transform_3(%arg0: i32) -> (i32, i32) {
    %c0_i32 = arith.constant 0 : i32
    %c0_i32_0 = arith.constant 0 : i32
    return %arg0, %c0_i32 : i32, i32
  }
}

module attributes {stable_mosaic.version = 11 : i64} {
  func.func @_bn_stats_kernel(%arg0: i32, %arg1: memref<128x16xbf16, #tpu.memory_space<vmem>>, %arg2: memref<1x16xf32, #tpu.memory_space<vmem>>, %arg3: memref<1x16xf32, #tpu.memory_space<vmem>>, %arg4: memref<2x16xf32, #tpu.memory_space<vmem>>) attributes {dimension_semantics = [#tpu.dimension_semantics<arbitrary>], iteration_bounds = array<i64: 1>, scalar_prefetch = 0 : i64, scratch_operands = 0 : i64, tpu.core_type = #tpu.core_type<tc>, window_params = [{transform_indices = @transform_0, window_bounds = array<i64: 128, 16>}, {pipeline_mode = #tpu.pipeline_mode<synchronous>, transform_indices = @transform_1, window_bounds = array<i64: 1, 16>}, {pipeline_mode = #tpu.pipeline_mode<synchronous>, transform_indices = @transform_2, window_bounds = array<i64: 1, 16>}, {pipeline_mode = #tpu.pipeline_mode<synchronous>, transform_indices = @transform_3, window_bounds = array<i64: 2, 16>}]} {
    %c0_i32 = arith.constant 0 : i32
    %0 = arith.cmpi eq, %arg0, %c0_i32 : i32
    %1 = arith.extui %0 : i1 to i32
    %c0_i32_0 = arith.constant 0 : i32
    %2 = arith.cmpi ne, %1, %c0_i32_0 : i32
    scf.if %2 {
      %cst_9 = arith.constant 0.000000e+00 : f32
      %17 = vector.broadcast %cst_9 : f32 to vector<2x16xf32>
      %c0_10 = arith.constant 0 : index
      %c0_11 = arith.constant 0 : index
      %18 = vector.load %arg4[%c0_10, %c0_11] : memref<2x16xf32, #tpu.memory_space<vmem>>, vector<2x16xf32>
      tpu.vector_store %arg4[%c0_10, %c0_11], %17 {strides = array<i32>} : memref<2x16xf32, #tpu.memory_space<vmem>>, vector<2x16xf32>,
    } else {
    }
    %c0 = arith.constant 0 : index
    %c0_1 = arith.constant 0 : index
    %3 = vector.load %arg1[%c0, %c0_1] : memref<128x16xbf16, #tpu.memory_space<vmem>>, vector<128x16xbf16>
    %4 = arith.extf %3 : vector<128x16xbf16> to vector<128x16xf32>
    %cst = arith.constant dense<0.000000e+00> : vector<16xf32>
    %5 = vector.multi_reduction <add>, %4, %cst [0] : vector<128x16xf32> to vector<16xf32>
    %6 = vector.shape_cast %5 : vector<16xf32> to vector<1x16xf32>
    %7 = arith.mulf %4, %4 : vector<128x16xf32>
    %cst_2 = arith.constant dense<0.000000e+00> : vector<16xf32>
    %8 = vector.multi_reduction <add>, %7, %cst_2 [0] : vector<128x16xf32> to vector<16xf32>
    %9 = vector.shape_cast %8 : vector<16xf32> to vector<1x16xf32>
    %c0_3 = arith.constant 0 : index
    %c0_4 = arith.constant 0 : index
    %10 = vector.load %arg4[%c0_3, %c0_4] : memref<2x16xf32, #tpu.memory_space<vmem>>, vector<2x16xf32>
    %11 = tpu.concatenate %6, %9 in 0 : vector<1x16xf32>, vector<1x16xf32> -> vector<2x16xf32>
    %12 = arith.addf %10, %11 : vector<2x16xf32>
    %c0_5 = arith.constant 0 : index
    %c0_6 = arith.constant 0 : index
    %13 = vector.load %arg4[%c0_5, %c0_6] : memref<2x16xf32, #tpu.memory_space<vmem>>, vector<2x16xf32>
    tpu.vector_store %arg4[%c0_5, %c0_6], %12 {strides = array<i32>} : memref<2x16xf32, #tpu.memory_space<vmem>>, vector<2x16xf32>,
    %c0_i32_7 = arith.constant 0 : i32
    %14 = arith.cmpi eq, %arg0, %c0_i32_7 : i32
    %15 = arith.extui %14 : i1 to i32
    %c0_i32_8 = arith.constant 0 : i32
    %16 = arith.cmpi ne, %15, %c0_i32_8 : i32
    scf.if %16 {
      %c0_9 = arith.constant 0 : index
      %c0_10 = arith.constant 0 : index
      %17 = vector.load %arg4[%c0_9, %c0_10] : memref<2x16xf32, #tpu.memory_space<vmem>>, vector<2x16xf32>
      %18 = vector.extract_strided_slice %17 {offsets = [0, 0], sizes = [1, 16], strides = [1, 1]} : vector<2x16xf32> to vector<1x16xf32>
      %cst_11 = arith.constant 1.280000e+02 : f32
      %19 = vector.broadcast %cst_11 : f32 to vector<1x16xf32>
      %20 = arith.divf %18, %19 : vector<1x16xf32>
      %21 = vector.extract_strided_slice %17 {offsets = [1, 0], sizes = [1, 16], strides = [1, 1]} : vector<2x16xf32> to vector<1x16xf32>
      %cst_12 = arith.constant 1.280000e+02 : f32
      %22 = vector.broadcast %cst_12 : f32 to vector<1x16xf32>
      %23 = arith.divf %21, %22 : vector<1x16xf32>
      %24 = arith.mulf %20, %20 : vector<1x16xf32>
      %25 = arith.subf %23, %24 : vector<1x16xf32>
      %cst_13 = arith.constant 0.000000e+00 : f32
      %26 = vector.broadcast %cst_13 : f32 to vector<1x16xf32>
      %27 = arith.maximumf %25, %26 : vector<1x16xf32>
      %c0_14 = arith.constant 0 : index
      %c0_15 = arith.constant 0 : index
      %28 = vector.load %arg2[%c0_14, %c0_15] : memref<1x16xf32, #tpu.memory_space<vmem>>, vector<1x16xf32>
      %cst_16 = arith.constant 9.99999974E-6 : f32
      %29 = vector.broadcast %cst_16 : f32 to vector<1x16xf32>
      %30 = arith.addf %27, %29 : vector<1x16xf32>
      %31 = math.rsqrt %30 : vector<1x16xf32>
      %32 = arith.mulf %28, %31 : vector<1x16xf32>
      %c0_17 = arith.constant 0 : index
      %c0_18 = arith.constant 0 : index
      %33 = vector.load %arg3[%c0_17, %c0_18] : memref<1x16xf32, #tpu.memory_space<vmem>>, vector<1x16xf32>
      %34 = arith.mulf %20, %32 : vector<1x16xf32>
      %35 = arith.subf %33, %34 : vector<1x16xf32>
      %36 = tpu.concatenate %32, %35 in 0 : vector<1x16xf32>, vector<1x16xf32> -> vector<2x16xf32>
      %c0_19 = arith.constant 0 : index
      %c0_20 = arith.constant 0 : index
      %37 = vector.load %arg4[%c0_19, %c0_20] : memref<2x16xf32, #tpu.memory_space<vmem>>, vector<2x16xf32>
      tpu.vector_store %arg4[%c0_19, %c0_20], %36 {strides = array<i32>} : memref<2x16xf32, #tpu.memory_space<vmem>>, vector<2x16xf32>,
    } else {
    }
    return
  }
  func.func @transform_0(%arg0: i32) -> (i32, i32) {
    %c0_i32 = arith.constant 0 : i32
    %c0_i32_0 = arith.constant 0 : i32
    return %arg0, %c0_i32 : i32, i32
  }
  func.func @transform_1(%arg0: i32) -> (i32, i32) {
    %c0_i32 = arith.constant 0 : i32
    %c0_i32_0 = arith.constant 0 : i32
    %c0_i32_1 = arith.constant 0 : i32
    return %c0_i32, %c0_i32_0 : i32, i32
  }
  func.func @transform_2(%arg0: i32) -> (i32, i32) {
    %c0_i32 = arith.constant 0 : i32
    %c0_i32_0 = arith.constant 0 : i32
    %c0_i32_1 = arith.constant 0 : i32
    return %c0_i32, %c0_i32_0 : i32, i32
  }
  func.func @transform_3(%arg0: i32) -> (i32, i32) {
    %c0_i32 = arith.constant 0 : i32
    %c0_i32_0 = arith.constant 0 : i32
    %c0_i32_1 = arith.constant 0 : i32
    return %c0_i32, %c0_i32_0 : i32, i32
  }
}

module attributes {stable_mosaic.version = 11 : i64} {
  func.func @_gemm_kernel(%arg0: i32, %arg1: memref<128x16xbf16, #tpu.memory_space<vmem>>, %arg2: memref<16x256xbf16, #tpu.memory_space<vmem>>, %arg3: memref<2x16xf32, #tpu.memory_space<vmem>>, %arg4: memref<128x256xbf16, #tpu.memory_space<vmem>>) attributes {dimension_semantics = [#tpu.dimension_semantics<parallel>], iteration_bounds = array<i64: 1>, scalar_prefetch = 0 : i64, scratch_operands = 0 : i64, tpu.core_type = #tpu.core_type<tc>, window_params = [{transform_indices = @transform_0, window_bounds = array<i64: 128, 16>}, {pipeline_mode = #tpu.pipeline_mode<synchronous>, transform_indices = @transform_1, window_bounds = array<i64: 16, 256>}, {pipeline_mode = #tpu.pipeline_mode<synchronous>, transform_indices = @transform_2, window_bounds = array<i64: 2, 16>}, {transform_indices = @transform_3, window_bounds = array<i64: 128, 256>}]} {
    %c0 = arith.constant 0 : index
    %c0_0 = arith.constant 0 : index
    %0 = vector.load %arg3[%c0, %c0_0] : memref<2x16xf32, #tpu.memory_space<vmem>>, vector<2x16xf32>
    %c0_1 = arith.constant 0 : index
    %c0_2 = arith.constant 0 : index
    %1 = vector.load %arg1[%c0_1, %c0_2] : memref<128x16xbf16, #tpu.memory_space<vmem>>, vector<128x16xbf16>
    %2 = arith.extf %1 : vector<128x16xbf16> to vector<128x16xf32>
    %3 = vector.extract_strided_slice %0 {offsets = [0, 0], sizes = [1, 16], strides = [1, 1]} : vector<2x16xf32> to vector<1x16xf32>
    %4 = vector.broadcast %3 : vector<1x16xf32> to vector<128x16xf32>
    %5 = arith.mulf %2, %4 : vector<128x16xf32>
    %6 = vector.extract_strided_slice %0 {offsets = [1, 0], sizes = [1, 16], strides = [1, 1]} : vector<2x16xf32> to vector<1x16xf32>
    %7 = vector.broadcast %6 : vector<1x16xf32> to vector<128x16xf32>
    %8 = arith.addf %5, %7 : vector<128x16xf32>
    %cst = arith.constant 0.000000e+00 : f32
    %9 = vector.broadcast %cst : f32 to vector<128x16xf32>
    %10 = arith.cmpf oge, %8, %9 : vector<128x16xf32>
    %cst_3 = arith.constant 0.00999999977 : f32
    %11 = vector.broadcast %cst_3 : f32 to vector<128x16xf32>
    %12 = arith.mulf %11, %8 : vector<128x16xf32>
    %13 = arith.select %10, %8, %12 : vector<128x16xi1>, vector<128x16xf32>
    %14 = arith.truncf %13 : vector<128x16xf32> to vector<128x16xbf16>
    %c0_4 = arith.constant 0 : index
    %c0_5 = arith.constant 0 : index
    %15 = vector.load %arg2[%c0_4, %c0_5] : memref<16x256xbf16, #tpu.memory_space<vmem>>, vector<16x256xbf16>
    %cst_6 = arith.constant dense<0.000000e+00> : vector<128x256xf32>
    %16 = tpu.matmul %14, %15, %cst_6 {dimension_numbers = #tpu.dot_dimension_numbers<[1], [0], [0], [1], [0, 0, 1, 1], [], []>} : vector<128x16xbf16>, vector<16x256xbf16>, vector<128x256xf32> -> vector<128x256xf32>
    %17 = arith.truncf %16 : vector<128x256xf32> to vector<128x256xbf16>
    %c0_7 = arith.constant 0 : index
    %c0_8 = arith.constant 0 : index
    %18 = vector.load %arg4[%c0_7, %c0_8] : memref<128x256xbf16, #tpu.memory_space<vmem>>, vector<128x256xbf16>
    tpu.vector_store %arg4[%c0_7, %c0_8], %17 {strides = array<i32>} : memref<128x256xbf16, #tpu.memory_space<vmem>>, vector<128x256xbf16>,
    return
  }
  func.func @transform_0(%arg0: i32) -> (i32, i32) {
    %c0_i32 = arith.constant 0 : i32
    %c0_i32_0 = arith.constant 0 : i32
    return %arg0, %c0_i32 : i32, i32
  }
  func.func @transform_1(%arg0: i32) -> (i32, i32) {
    %c0_i32 = arith.constant 0 : i32
    %c0_i32_0 = arith.constant 0 : i32
    %c0_i32_1 = arith.constant 0 : i32
    return %c0_i32, %c0_i32_0 : i32, i32
  }
  func.func @transform_2(%arg0: i32) -> (i32, i32) {
    %c0_i32 = arith.constant 0 : i32
    %c0_i32_0 = arith.constant 0 : i32
    %c0_i32_1 = arith.constant 0 : i32
    return %c0_i32, %c0_i32_0 : i32, i32
  }
  func.func @transform_3(%arg0: i32) -> (i32, i32) {
    %c0_i32 = arith.constant 0 : i32
    %c0_i32_0 = arith.constant 0 : i32
    return %arg0, %c0_i32 : i32, i32
  }
}

module attributes {stable_mosaic.version = 11 : i64} {
  func.func @_bn_stats_kernel(%arg0: i32, %arg1: memref<512x16xbf16, #tpu.memory_space<vmem>>, %arg2: memref<1x16xf32, #tpu.memory_space<vmem>>, %arg3: memref<1x16xf32, #tpu.memory_space<vmem>>, %arg4: memref<2x16xf32, #tpu.memory_space<vmem>>) attributes {dimension_semantics = [#tpu.dimension_semantics<arbitrary>], iteration_bounds = array<i64: 1>, scalar_prefetch = 0 : i64, scratch_operands = 0 : i64, tpu.core_type = #tpu.core_type<tc>, window_params = [{transform_indices = @transform_0, window_bounds = array<i64: 512, 16>}, {pipeline_mode = #tpu.pipeline_mode<synchronous>, transform_indices = @transform_1, window_bounds = array<i64: 1, 16>}, {pipeline_mode = #tpu.pipeline_mode<synchronous>, transform_indices = @transform_2, window_bounds = array<i64: 1, 16>}, {pipeline_mode = #tpu.pipeline_mode<synchronous>, transform_indices = @transform_3, window_bounds = array<i64: 2, 16>}]} {
    %c0_i32 = arith.constant 0 : i32
    %0 = arith.cmpi eq, %arg0, %c0_i32 : i32
    %1 = arith.extui %0 : i1 to i32
    %c0_i32_0 = arith.constant 0 : i32
    %2 = arith.cmpi ne, %1, %c0_i32_0 : i32
    scf.if %2 {
      %cst_9 = arith.constant 0.000000e+00 : f32
      %17 = vector.broadcast %cst_9 : f32 to vector<2x16xf32>
      %c0_10 = arith.constant 0 : index
      %c0_11 = arith.constant 0 : index
      %18 = vector.load %arg4[%c0_10, %c0_11] : memref<2x16xf32, #tpu.memory_space<vmem>>, vector<2x16xf32>
      tpu.vector_store %arg4[%c0_10, %c0_11], %17 {strides = array<i32>} : memref<2x16xf32, #tpu.memory_space<vmem>>, vector<2x16xf32>,
    } else {
    }
    %c0 = arith.constant 0 : index
    %c0_1 = arith.constant 0 : index
    %3 = vector.load %arg1[%c0, %c0_1] : memref<512x16xbf16, #tpu.memory_space<vmem>>, vector<512x16xbf16>
    %4 = arith.extf %3 : vector<512x16xbf16> to vector<512x16xf32>
    %cst = arith.constant dense<0.000000e+00> : vector<16xf32>
    %5 = vector.multi_reduction <add>, %4, %cst [0] : vector<512x16xf32> to vector<16xf32>
    %6 = vector.shape_cast %5 : vector<16xf32> to vector<1x16xf32>
    %7 = arith.mulf %4, %4 : vector<512x16xf32>
    %cst_2 = arith.constant dense<0.000000e+00> : vector<16xf32>
    %8 = vector.multi_reduction <add>, %7, %cst_2 [0] : vector<512x16xf32> to vector<16xf32>
    %9 = vector.shape_cast %8 : vector<16xf32> to vector<1x16xf32>
    %c0_3 = arith.constant 0 : index
    %c0_4 = arith.constant 0 : index
    %10 = vector.load %arg4[%c0_3, %c0_4] : memref<2x16xf32, #tpu.memory_space<vmem>>, vector<2x16xf32>
    %11 = tpu.concatenate %6, %9 in 0 : vector<1x16xf32>, vector<1x16xf32> -> vector<2x16xf32>
    %12 = arith.addf %10, %11 : vector<2x16xf32>
    %c0_5 = arith.constant 0 : index
    %c0_6 = arith.constant 0 : index
    %13 = vector.load %arg4[%c0_5, %c0_6] : memref<2x16xf32, #tpu.memory_space<vmem>>, vector<2x16xf32>
    tpu.vector_store %arg4[%c0_5, %c0_6], %12 {strides = array<i32>} : memref<2x16xf32, #tpu.memory_space<vmem>>, vector<2x16xf32>,
    %c0_i32_7 = arith.constant 0 : i32
    %14 = arith.cmpi eq, %arg0, %c0_i32_7 : i32
    %15 = arith.extui %14 : i1 to i32
    %c0_i32_8 = arith.constant 0 : i32
    %16 = arith.cmpi ne, %15, %c0_i32_8 : i32
    scf.if %16 {
      %c0_9 = arith.constant 0 : index
      %c0_10 = arith.constant 0 : index
      %17 = vector.load %arg4[%c0_9, %c0_10] : memref<2x16xf32, #tpu.memory_space<vmem>>, vector<2x16xf32>
      %18 = vector.extract_strided_slice %17 {offsets = [0, 0], sizes = [1, 16], strides = [1, 1]} : vector<2x16xf32> to vector<1x16xf32>
      %cst_11 = arith.constant 5.120000e+02 : f32
      %19 = vector.broadcast %cst_11 : f32 to vector<1x16xf32>
      %20 = arith.divf %18, %19 : vector<1x16xf32>
      %21 = vector.extract_strided_slice %17 {offsets = [1, 0], sizes = [1, 16], strides = [1, 1]} : vector<2x16xf32> to vector<1x16xf32>
      %cst_12 = arith.constant 5.120000e+02 : f32
      %22 = vector.broadcast %cst_12 : f32 to vector<1x16xf32>
      %23 = arith.divf %21, %22 : vector<1x16xf32>
      %24 = arith.mulf %20, %20 : vector<1x16xf32>
      %25 = arith.subf %23, %24 : vector<1x16xf32>
      %cst_13 = arith.constant 0.000000e+00 : f32
      %26 = vector.broadcast %cst_13 : f32 to vector<1x16xf32>
      %27 = arith.maximumf %25, %26 : vector<1x16xf32>
      %c0_14 = arith.constant 0 : index
      %c0_15 = arith.constant 0 : index
      %28 = vector.load %arg2[%c0_14, %c0_15] : memref<1x16xf32, #tpu.memory_space<vmem>>, vector<1x16xf32>
      %cst_16 = arith.constant 9.99999974E-6 : f32
      %29 = vector.broadcast %cst_16 : f32 to vector<1x16xf32>
      %30 = arith.addf %27, %29 : vector<1x16xf32>
      %31 = math.rsqrt %30 : vector<1x16xf32>
      %32 = arith.mulf %28, %31 : vector<1x16xf32>
      %c0_17 = arith.constant 0 : index
      %c0_18 = arith.constant 0 : index
      %33 = vector.load %arg3[%c0_17, %c0_18] : memref<1x16xf32, #tpu.memory_space<vmem>>, vector<1x16xf32>
      %34 = arith.mulf %20, %32 : vector<1x16xf32>
      %35 = arith.subf %33, %34 : vector<1x16xf32>
      %36 = tpu.concatenate %32, %35 in 0 : vector<1x16xf32>, vector<1x16xf32> -> vector<2x16xf32>
      %c0_19 = arith.constant 0 : index
      %c0_20 = arith.constant 0 : index
      %37 = vector.load %arg4[%c0_19, %c0_20] : memref<2x16xf32, #tpu.memory_space<vmem>>, vector<2x16xf32>
      tpu.vector_store %arg4[%c0_19, %c0_20], %36 {strides = array<i32>} : memref<2x16xf32, #tpu.memory_space<vmem>>, vector<2x16xf32>,
    } else {
    }
    return
  }
  func.func @transform_0(%arg0: i32) -> (i32, i32) {
    %c0_i32 = arith.constant 0 : i32
    %c0_i32_0 = arith.constant 0 : i32
    return %arg0, %c0_i32 : i32, i32
  }
  func.func @transform_1(%arg0: i32) -> (i32, i32) {
    %c0_i32 = arith.constant 0 : i32
    %c0_i32_0 = arith.constant 0 : i32
    %c0_i32_1 = arith.constant 0 : i32
    return %c0_i32, %c0_i32_0 : i32, i32
  }
  func.func @transform_2(%arg0: i32) -> (i32, i32) {
    %c0_i32 = arith.constant 0 : i32
    %c0_i32_0 = arith.constant 0 : i32
    %c0_i32_1 = arith.constant 0 : i32
    return %c0_i32, %c0_i32_0 : i32, i32
  }
  func.func @transform_3(%arg0: i32) -> (i32, i32) {
    %c0_i32 = arith.constant 0 : i32
    %c0_i32_0 = arith.constant 0 : i32
    %c0_i32_1 = arith.constant 0 : i32
    return %c0_i32, %c0_i32_0 : i32, i32
  }
}

module attributes {stable_mosaic.version = 11 : i64} {
  func.func @_gemm_kernel(%arg0: i32, %arg1: memref<512x16xbf16, #tpu.memory_space<vmem>>, %arg2: memref<16x128xbf16, #tpu.memory_space<vmem>>, %arg3: memref<2x16xf32, #tpu.memory_space<vmem>>, %arg4: memref<512x128xbf16, #tpu.memory_space<vmem>>) attributes {dimension_semantics = [#tpu.dimension_semantics<parallel>], iteration_bounds = array<i64: 1>, scalar_prefetch = 0 : i64, scratch_operands = 0 : i64, tpu.core_type = #tpu.core_type<tc>, window_params = [{transform_indices = @transform_0, window_bounds = array<i64: 512, 16>}, {pipeline_mode = #tpu.pipeline_mode<synchronous>, transform_indices = @transform_1, window_bounds = array<i64: 16, 128>}, {pipeline_mode = #tpu.pipeline_mode<synchronous>, transform_indices = @transform_2, window_bounds = array<i64: 2, 16>}, {transform_indices = @transform_3, window_bounds = array<i64: 512, 128>}]} {
    %c0 = arith.constant 0 : index
    %c0_0 = arith.constant 0 : index
    %0 = vector.load %arg3[%c0, %c0_0] : memref<2x16xf32, #tpu.memory_space<vmem>>, vector<2x16xf32>
    %c0_1 = arith.constant 0 : index
    %c0_2 = arith.constant 0 : index
    %1 = vector.load %arg1[%c0_1, %c0_2] : memref<512x16xbf16, #tpu.memory_space<vmem>>, vector<512x16xbf16>
    %2 = arith.extf %1 : vector<512x16xbf16> to vector<512x16xf32>
    %3 = vector.extract_strided_slice %0 {offsets = [0, 0], sizes = [1, 16], strides = [1, 1]} : vector<2x16xf32> to vector<1x16xf32>
    %4 = vector.broadcast %3 : vector<1x16xf32> to vector<512x16xf32>
    %5 = arith.mulf %2, %4 : vector<512x16xf32>
    %6 = vector.extract_strided_slice %0 {offsets = [1, 0], sizes = [1, 16], strides = [1, 1]} : vector<2x16xf32> to vector<1x16xf32>
    %7 = vector.broadcast %6 : vector<1x16xf32> to vector<512x16xf32>
    %8 = arith.addf %5, %7 : vector<512x16xf32>
    %cst = arith.constant 0.000000e+00 : f32
    %9 = vector.broadcast %cst : f32 to vector<512x16xf32>
    %10 = arith.cmpf oge, %8, %9 : vector<512x16xf32>
    %cst_3 = arith.constant 0.00999999977 : f32
    %11 = vector.broadcast %cst_3 : f32 to vector<512x16xf32>
    %12 = arith.mulf %11, %8 : vector<512x16xf32>
    %13 = arith.select %10, %8, %12 : vector<512x16xi1>, vector<512x16xf32>
    %14 = arith.truncf %13 : vector<512x16xf32> to vector<512x16xbf16>
    %c0_4 = arith.constant 0 : index
    %c0_5 = arith.constant 0 : index
    %15 = vector.load %arg2[%c0_4, %c0_5] : memref<16x128xbf16, #tpu.memory_space<vmem>>, vector<16x128xbf16>
    %cst_6 = arith.constant dense<0.000000e+00> : vector<512x128xf32>
    %16 = tpu.matmul %14, %15, %cst_6 {dimension_numbers = #tpu.dot_dimension_numbers<[1], [0], [0], [1], [0, 0, 1, 1], [], []>} : vector<512x16xbf16>, vector<16x128xbf16>, vector<512x128xf32> -> vector<512x128xf32>
    %17 = arith.truncf %16 : vector<512x128xf32> to vector<512x128xbf16>
    %c0_7 = arith.constant 0 : index
    %c0_8 = arith.constant 0 : index
    %18 = vector.load %arg4[%c0_7, %c0_8] : memref<512x128xbf16, #tpu.memory_space<vmem>>, vector<512x128xbf16>
    tpu.vector_store %arg4[%c0_7, %c0_8], %17 {strides = array<i32>} : memref<512x128xbf16, #tpu.memory_space<vmem>>, vector<512x128xbf16>,
    return
  }
  func.func @transform_0(%arg0: i32) -> (i32, i32) {
    %c0_i32 = arith.constant 0 : i32
    %c0_i32_0 = arith.constant 0 : i32
    return %arg0, %c0_i32 : i32, i32
  }
  func.func @transform_1(%arg0: i32) -> (i32, i32) {
    %c0_i32 = arith.constant 0 : i32
    %c0_i32_0 = arith.constant 0 : i32
    %c0_i32_1 = arith.constant 0 : i32
    return %c0_i32, %c0_i32_0 : i32, i32
  }
  func.func @transform_2(%arg0: i32) -> (i32, i32) {
    %c0_i32 = arith.constant 0 : i32
    %c0_i32_0 = arith.constant 0 : i32
    %c0_i32_1 = arith.constant 0 : i32
    return %c0_i32, %c0_i32_0 : i32, i32
  }
  func.func @transform_3(%arg0: i32) -> (i32, i32) {
    %c0_i32 = arith.constant 0 : i32
    %c0_i32_0 = arith.constant 0 : i32
    return %arg0, %c0_i32 : i32, i32
  }
}

module attributes {stable_mosaic.version = 11 : i64} {
  func.func @_bn_stats_kernel(%arg0: i32, %arg1: memref<512x8xbf16, #tpu.memory_space<vmem>>, %arg2: memref<1x8xf32, #tpu.memory_space<vmem>>, %arg3: memref<1x8xf32, #tpu.memory_space<vmem>>, %arg4: memref<2x8xf32, #tpu.memory_space<vmem>>) attributes {dimension_semantics = [#tpu.dimension_semantics<arbitrary>], iteration_bounds = array<i64: 4>, scalar_prefetch = 0 : i64, scratch_operands = 0 : i64, tpu.core_type = #tpu.core_type<tc>, window_params = [{transform_indices = @transform_0, window_bounds = array<i64: 512, 8>}, {pipeline_mode = #tpu.pipeline_mode<synchronous>, transform_indices = @transform_1, window_bounds = array<i64: 1, 8>}, {pipeline_mode = #tpu.pipeline_mode<synchronous>, transform_indices = @transform_2, window_bounds = array<i64: 1, 8>}, {pipeline_mode = #tpu.pipeline_mode<synchronous>, transform_indices = @transform_3, window_bounds = array<i64: 2, 8>}]} {
    %c0_i32 = arith.constant 0 : i32
    %0 = arith.cmpi eq, %arg0, %c0_i32 : i32
    %1 = arith.extui %0 : i1 to i32
    %c0_i32_0 = arith.constant 0 : i32
    %2 = arith.cmpi ne, %1, %c0_i32_0 : i32
    scf.if %2 {
      %cst_8 = arith.constant 0.000000e+00 : f32
      %17 = vector.broadcast %cst_8 : f32 to vector<2x8xf32>
      %c0_9 = arith.constant 0 : index
      %c0_10 = arith.constant 0 : index
      %18 = vector.load %arg4[%c0_9, %c0_10] : memref<2x8xf32, #tpu.memory_space<vmem>>, vector<2x8xf32>
      tpu.vector_store %arg4[%c0_9, %c0_10], %17 {strides = array<i32>} : memref<2x8xf32, #tpu.memory_space<vmem>>, vector<2x8xf32>,
    } else {
    }
    %c0 = arith.constant 0 : index
    %c0_1 = arith.constant 0 : index
    %3 = vector.load %arg1[%c0, %c0_1] : memref<512x8xbf16, #tpu.memory_space<vmem>>, vector<512x8xbf16>
    %4 = arith.extf %3 : vector<512x8xbf16> to vector<512x8xf32>
    %cst = arith.constant dense<0.000000e+00> : vector<8xf32>
    %5 = vector.multi_reduction <add>, %4, %cst [0] : vector<512x8xf32> to vector<8xf32>
    %6 = vector.shape_cast %5 : vector<8xf32> to vector<1x8xf32>
    %7 = arith.mulf %4, %4 : vector<512x8xf32>
    %cst_2 = arith.constant dense<0.000000e+00> : vector<8xf32>
    %8 = vector.multi_reduction <add>, %7, %cst_2 [0] : vector<512x8xf32> to vector<8xf32>
    %9 = vector.shape_cast %8 : vector<8xf32> to vector<1x8xf32>
    %c0_3 = arith.constant 0 : index
    %c0_4 = arith.constant 0 : index
    %10 = vector.load %arg4[%c0_3, %c0_4] : memref<2x8xf32, #tpu.memory_space<vmem>>, vector<2x8xf32>
    %11 = tpu.concatenate %6, %9 in 0 : vector<1x8xf32>, vector<1x8xf32> -> vector<2x8xf32>
    %12 = arith.addf %10, %11 : vector<2x8xf32>
    %c0_5 = arith.constant 0 : index
    %c0_6 = arith.constant 0 : index
    %13 = vector.load %arg4[%c0_5, %c0_6] : memref<2x8xf32, #tpu.memory_space<vmem>>, vector<2x8xf32>
    tpu.vector_store %arg4[%c0_5, %c0_6], %12 {strides = array<i32>} : memref<2x8xf32, #tpu.memory_space<vmem>>, vector<2x8xf32>,
    %c3_i32 = arith.constant 3 : i32
    %14 = arith.cmpi eq, %arg0, %c3_i32 : i32
    %15 = arith.extui %14 : i1 to i32
    %c0_i32_7 = arith.constant 0 : i32
    %16 = arith.cmpi ne, %15, %c0_i32_7 : i32
    scf.if %16 {
      %c0_8 = arith.constant 0 : index
      %c0_9 = arith.constant 0 : index
      %17 = vector.load %arg4[%c0_8, %c0_9] : memref<2x8xf32, #tpu.memory_space<vmem>>, vector<2x8xf32>
      %18 = vector.extract_strided_slice %17 {offsets = [0, 0], sizes = [1, 8], strides = [1, 1]} : vector<2x8xf32> to vector<1x8xf32>
      %cst_10 = arith.constant 2.048000e+03 : f32
      %19 = vector.broadcast %cst_10 : f32 to vector<1x8xf32>
      %20 = arith.divf %18, %19 : vector<1x8xf32>
      %21 = vector.extract_strided_slice %17 {offsets = [1, 0], sizes = [1, 8], strides = [1, 1]} : vector<2x8xf32> to vector<1x8xf32>
      %cst_11 = arith.constant 2.048000e+03 : f32
      %22 = vector.broadcast %cst_11 : f32 to vector<1x8xf32>
      %23 = arith.divf %21, %22 : vector<1x8xf32>
      %24 = arith.mulf %20, %20 : vector<1x8xf32>
      %25 = arith.subf %23, %24 : vector<1x8xf32>
      %cst_12 = arith.constant 0.000000e+00 : f32
      %26 = vector.broadcast %cst_12 : f32 to vector<1x8xf32>
      %27 = arith.maximumf %25, %26 : vector<1x8xf32>
      %c0_13 = arith.constant 0 : index
      %c0_14 = arith.constant 0 : index
      %28 = vector.load %arg2[%c0_13, %c0_14] : memref<1x8xf32, #tpu.memory_space<vmem>>, vector<1x8xf32>
      %cst_15 = arith.constant 9.99999974E-6 : f32
      %29 = vector.broadcast %cst_15 : f32 to vector<1x8xf32>
      %30 = arith.addf %27, %29 : vector<1x8xf32>
      %31 = math.rsqrt %30 : vector<1x8xf32>
      %32 = arith.mulf %28, %31 : vector<1x8xf32>
      %c0_16 = arith.constant 0 : index
      %c0_17 = arith.constant 0 : index
      %33 = vector.load %arg3[%c0_16, %c0_17] : memref<1x8xf32, #tpu.memory_space<vmem>>, vector<1x8xf32>
      %34 = arith.mulf %20, %32 : vector<1x8xf32>
      %35 = arith.subf %33, %34 : vector<1x8xf32>
      %36 = tpu.concatenate %32, %35 in 0 : vector<1x8xf32>, vector<1x8xf32> -> vector<2x8xf32>
      %c0_18 = arith.constant 0 : index
      %c0_19 = arith.constant 0 : index
      %37 = vector.load %arg4[%c0_18, %c0_19] : memref<2x8xf32, #tpu.memory_space<vmem>>, vector<2x8xf32>
      tpu.vector_store %arg4[%c0_18, %c0_19], %36 {strides = array<i32>} : memref<2x8xf32, #tpu.memory_space<vmem>>, vector<2x8xf32>,
    } else {
    }
    return
  }
  func.func @transform_0(%arg0: i32) -> (i32, i32) {
    %c0_i32 = arith.constant 0 : i32
    %c0_i32_0 = arith.constant 0 : i32
    return %arg0, %c0_i32 : i32, i32
  }
  func.func @transform_1(%arg0: i32) -> (i32, i32) {
    %c0_i32 = arith.constant 0 : i32
    %c0_i32_0 = arith.constant 0 : i32
    %c0_i32_1 = arith.constant 0 : i32
    return %c0_i32, %c0_i32_0 : i32, i32
  }
  func.func @transform_2(%arg0: i32) -> (i32, i32) {
    %c0_i32 = arith.constant 0 : i32
    %c0_i32_0 = arith.constant 0 : i32
    %c0_i32_1 = arith.constant 0 : i32
    return %c0_i32, %c0_i32_0 : i32, i32
  }
  func.func @transform_3(%arg0: i32) -> (i32, i32) {
    %c0_i32 = arith.constant 0 : i32
    %c0_i32_0 = arith.constant 0 : i32
    %c0_i32_1 = arith.constant 0 : i32
    return %c0_i32, %c0_i32_0 : i32, i32
  }
}

module attributes {stable_mosaic.version = 11 : i64} {
  func.func @_gemm_kernel(%arg0: i32, %arg1: memref<512x8xbf16, #tpu.memory_space<vmem>>, %arg2: memref<8x128xbf16, #tpu.memory_space<vmem>>, %arg3: memref<2x8xf32, #tpu.memory_space<vmem>>, %arg4: memref<512x128xbf16, #tpu.memory_space<vmem>>) attributes {dimension_semantics = [#tpu.dimension_semantics<parallel>], iteration_bounds = array<i64: 4>, scalar_prefetch = 0 : i64, scratch_operands = 0 : i64, tpu.core_type = #tpu.core_type<tc>, window_params = [{transform_indices = @transform_0, window_bounds = array<i64: 512, 8>}, {pipeline_mode = #tpu.pipeline_mode<synchronous>, transform_indices = @transform_1, window_bounds = array<i64: 8, 128>}, {pipeline_mode = #tpu.pipeline_mode<synchronous>, transform_indices = @transform_2, window_bounds = array<i64: 2, 8>}, {transform_indices = @transform_3, window_bounds = array<i64: 512, 128>}]} {
    %c0 = arith.constant 0 : index
    %c0_0 = arith.constant 0 : index
    %0 = vector.load %arg3[%c0, %c0_0] : memref<2x8xf32, #tpu.memory_space<vmem>>, vector<2x8xf32>
    %c0_1 = arith.constant 0 : index
    %c0_2 = arith.constant 0 : index
    %1 = vector.load %arg1[%c0_1, %c0_2] : memref<512x8xbf16, #tpu.memory_space<vmem>>, vector<512x8xbf16>
    %2 = arith.extf %1 : vector<512x8xbf16> to vector<512x8xf32>
    %3 = vector.extract_strided_slice %0 {offsets = [0, 0], sizes = [1, 8], strides = [1, 1]} : vector<2x8xf32> to vector<1x8xf32>
    %4 = vector.broadcast %3 : vector<1x8xf32> to vector<512x8xf32>
    %5 = arith.mulf %2, %4 : vector<512x8xf32>
    %6 = vector.extract_strided_slice %0 {offsets = [1, 0], sizes = [1, 8], strides = [1, 1]} : vector<2x8xf32> to vector<1x8xf32>
    %7 = vector.broadcast %6 : vector<1x8xf32> to vector<512x8xf32>
    %8 = arith.addf %5, %7 : vector<512x8xf32>
    %cst = arith.constant 0.000000e+00 : f32
    %9 = vector.broadcast %cst : f32 to vector<512x8xf32>
    %10 = arith.cmpf oge, %8, %9 : vector<512x8xf32>
    %cst_3 = arith.constant 0.00999999977 : f32
    %11 = vector.broadcast %cst_3 : f32 to vector<512x8xf32>
    %12 = arith.mulf %11, %8 : vector<512x8xf32>
    %13 = arith.select %10, %8, %12 : vector<512x8xi1>, vector<512x8xf32>
    %14 = arith.truncf %13 : vector<512x8xf32> to vector<512x8xbf16>
    %c0_4 = arith.constant 0 : index
    %c0_5 = arith.constant 0 : index
    %15 = vector.load %arg2[%c0_4, %c0_5] : memref<8x128xbf16, #tpu.memory_space<vmem>>, vector<8x128xbf16>
    %cst_6 = arith.constant dense<0.000000e+00> : vector<512x128xf32>
    %16 = tpu.matmul %14, %15, %cst_6 {dimension_numbers = #tpu.dot_dimension_numbers<[1], [0], [0], [1], [0, 0, 1, 1], [], []>} : vector<512x8xbf16>, vector<8x128xbf16>, vector<512x128xf32> -> vector<512x128xf32>
    %17 = arith.truncf %16 : vector<512x128xf32> to vector<512x128xbf16>
    %c0_7 = arith.constant 0 : index
    %c0_8 = arith.constant 0 : index
    %18 = vector.load %arg4[%c0_7, %c0_8] : memref<512x128xbf16, #tpu.memory_space<vmem>>, vector<512x128xbf16>
    tpu.vector_store %arg4[%c0_7, %c0_8], %17 {strides = array<i32>} : memref<512x128xbf16, #tpu.memory_space<vmem>>, vector<512x128xbf16>,
    return
  }
  func.func @transform_0(%arg0: i32) -> (i32, i32) {
    %c0_i32 = arith.constant 0 : i32
    %c0_i32_0 = arith.constant 0 : i32
    return %arg0, %c0_i32 : i32, i32
  }
  func.func @transform_1(%arg0: i32) -> (i32, i32) {
    %c0_i32 = arith.constant 0 : i32
    %c0_i32_0 = arith.constant 0 : i32
    %c0_i32_1 = arith.constant 0 : i32
    return %c0_i32, %c0_i32_0 : i32, i32
  }
  func.func @transform_2(%arg0: i32) -> (i32, i32) {
    %c0_i32 = arith.constant 0 : i32
    %c0_i32_0 = arith.constant 0 : i32
    %c0_i32_1 = arith.constant 0 : i32
    return %c0_i32, %c0_i32_0 : i32, i32
  }
  func.func @transform_3(%arg0: i32) -> (i32, i32) {
    %c0_i32 = arith.constant 0 : i32
    %c0_i32_0 = arith.constant 0 : i32
    return %arg0, %c0_i32 : i32, i32
  }
}

module attributes {stable_mosaic.version = 11 : i64} {
  func.func @_sigmoid_kernel(%arg0: i32, %arg1: memref<128x192xbf16, #tpu.memory_space<vmem>>, %arg2: memref<128x192xf32, #tpu.memory_space<vmem>>) attributes {dimension_semantics = [#tpu.dimension_semantics<parallel>], iteration_bounds = array<i64: 1>, scalar_prefetch = 0 : i64, scratch_operands = 0 : i64, tpu.core_type = #tpu.core_type<tc>, window_params = [{transform_indices = @transform_0, window_bounds = array<i64: 128, 192>}, {transform_indices = @transform_1, window_bounds = array<i64: 128, 192>}]} {
    %c0 = arith.constant 0 : index
    %c0_0 = arith.constant 0 : index
    %0 = vector.load %arg1[%c0, %c0_0] : memref<128x192xbf16, #tpu.memory_space<vmem>>, vector<128x192xbf16>
    %1 = arith.extf %0 : vector<128x192xbf16> to vector<128x192xf32>
    %cst = arith.constant 0.000000e+00 : f32
    %2 = vector.broadcast %cst : f32 to vector<128x192xf32>
    %3 = arith.subf %2, %1 : vector<128x192xf32>
    %4 = math.exp %3 : vector<128x192xf32>
    %cst_1 = arith.constant 1.000000e+00 : f32
    %5 = vector.broadcast %cst_1 : f32 to vector<128x192xf32>
    %6 = arith.addf %5, %4 : vector<128x192xf32>
    %7 = tpu.reciprocal %6 {approx = true} : vector<128x192xf32> -> vector<128x192xf32>
    %cst_2 = arith.constant 0.000000e+00 : f32
    %cst_3 = arith.constant 1.000000e+00 : f32
    %8 = vector.broadcast %cst_2 : f32 to vector<128x192xf32>
    %9 = arith.maximumf %8, %7 : vector<128x192xf32>
    %10 = vector.broadcast %cst_3 : f32 to vector<128x192xf32>
    %11 = arith.minimumf %10, %9 : vector<128x192xf32>
    %c0_4 = arith.constant 0 : index
    %c0_5 = arith.constant 0 : index
    %12 = vector.load %arg2[%c0_4, %c0_5] : memref<128x192xf32, #tpu.memory_space<vmem>>, vector<128x192xf32>
    tpu.vector_store %arg2[%c0_4, %c0_5], %11 {strides = array<i32>} : memref<128x192xf32, #tpu.memory_space<vmem>>, vector<128x192xf32>,
    return
  }
  func.func @transform_0(%arg0: i32) -> (i32, i32) {
    %c0_i32 = arith.constant 0 : i32
    %c0_i32_0 = arith.constant 0 : i32
    return %arg0, %c0_i32 : i32, i32
  }
  func.func @transform_1(%arg0: i32) -> (i32, i32) {
    %c0_i32 = arith.constant 0 : i32
    %c0_i32_0 = arith.constant 0 : i32
    return %arg0, %c0_i32 : i32, i32
  }
}

</mosaic_0001>

<llo_original>
// kernel: generator_forward.10
$region0: #{generator_forward.10}
  #allocation0 [shape = 'u32[]', space=smem, size = 0x4, offset = 0x4, fixed_abs, tag = 'smem constant byte address 0x4 - core index']
  #allocation1 [shape = 'u32[144,128]{1,0:T(1,128)}', space=vmem, size = 0x12000, scoped, tag = 'internal scratch']
  %s0 = inlined_call_operand.vmem [shape: f32[2,16], index: 0, kind: input, shape index: {}]
  %s1 = inlined_call_operand.vmem [shape: bf16[16,512], index: 1, kind: input, shape index: {}]
  %s2 = inlined_call_operand.vmem [shape: bf16[2,512], index: 2, kind: output, shape index: {}]
  %s3 = sld [smem:[#allocation0]]
  $region18: #{generator_forward.10} parent=0
    _
  %s5 = ssub.s32 1, %s3
  %s6 = scalar_select 0, %s5, %s3
  // Predicated region
  $region2: #{generator_forward.10} parent=0 // pred_check
    _
  $region3: #{generator_forward.10} parent=0 // pred_check_branch
    %8 = sbr.rel (0) target = $region5
  $region4: #{generator_forward.10} parent=0 // pred_region
    _
  $region5: #{generator_forward.10} parent=0 // pred_fallthru
    _
  // Predicated region
  $region6: #{generator_forward.10} parent=0 // pred_check
    _
  $region7: #{generator_forward.10} parent=0 // pred_check_branch
    %10 = sbr.rel (0) target = $region9
  $region8: #{generator_forward.10} parent=0 // pred_region
    _
  $region9: #{generator_forward.10} parent=0 // pred_fallthru
    _
  %v12 = vld [vmem:[%s0] sm:$0x3]
  %v13 = vpack.c.bf16 %v12, %v12
  %v14 = vld [vmem:[%s1] sm:$0xff]
  %v15 = vld [vmem:[%s1 + $0x8] sm:$0xff]
  %v16 = vld [vmem:[%s1 + $0x10] sm:$0xff]
  %v17 = vld [vmem:[%s1 + $0x18] sm:$0xff]
  %v22 = vunpack.c.l.b16 %v14
  %v23 = vunpack.c.h.b16 %v14
  %v24 = vunpack.c.l.b16 %v15
  %v25 = vunpack.c.h.b16 %v15
  %v26 = vunpack.c.l.b16 %v16
  %v27 = vunpack.c.h.b16 %v16
  %v28 = vunpack.c.l.b16 %v17
  %v29 = vunpack.c.h.b16 %v17
  %v30 = vpack.c.b16 %v26, %v22
  %v31 = vpack.c.b16 %v27, %v23
  %v32 = vpack.c.b16 %v28, %v24
  %v33 = vpack.c.b16 %v29, %v25
  %vm38 = vcmask 130048
  %v40 = vsel %vm38, %v13, 0
  %42 = vmatprep.subr.bf16.mxu0 0
  %43 = vmatpush1.bf16.msra.mxu0 0
  %44 = vmatprep.subr.bf16.mxu0 0
  %45 = vmatpush1.bf16.msra.mxu0 0
  %46 = vmatprep.subr.bf16.mxu0 0
  %47 = vmatpush1.bf16.msra.mxu0 0
  %48 = vmatprep.subr.bf16.mxu0 0
  %49 = vmatpush1.bf16.msra.mxu0 0
  %50 = vmatprep.subr.bf16.mxu0 0
  %51 = vmatpush1.bf16.msra.mxu0 0
  %52 = vmatprep.subr.bf16.mxu0 0
  %53 = vmatpush1.bf16.msra.mxu0 0
  %54 = vmatprep.subr.bf16.mxu0 0
  %55 = vmatpush1.bf16.msra.mxu0 0
  %56 = vmatprep.subr.bf16.mxu0 %v31
  %57 = vmatpush1.bf16.msra.mxu0 %v30
  %58 = vmatprep.subr.bf16.mxu0 0
  %59 = vmatpush2.bf16.msra.mxu0 0
  %60 = vmatprep.subr.bf16.mxu0 0
  %61 = vmatpush2.bf16.msra.mxu0 0
  %62 = vmatprep.subr.bf16.mxu0 0
  %63 = vmatpush2.bf16.msra.mxu0 0
  %64 = vmatprep.subr.bf16.mxu0 0
  %65 = vmatpush2.bf16.msra.mxu0 0
  %66 = vmatprep.subr.bf16.mxu0 0
  %67 = vmatpush2.bf16.msra.mxu0 0
  %68 = vmatprep.subr.bf16.mxu0 0
  %69 = vmatpush2.bf16.msra.mxu0 0
  %70 = vmatprep.subr.bf16.mxu0 0
  %71 = vmatpush2.bf16.msra.mxu0 0
  %72 = vmatprep.subr.bf16.mxu0 0
  %73 = vmatpush2.bf16.msra.mxu0 0
  %74 = vmatprep.mubr.bf16.mxu0 0
  %75 = vmatmul.mubr.bf16.gmra.mxu0 %v40
  %v76 = vpop.f32.mrf.mxu0
  %v77 = vadd.f32 0.0, %v76
  %v78 = vpop.f32.mrf.mxu0
  %v79 = vadd.f32 0.0, %v78
  %v80 = vpop.f32.mrf.mxu0
  %v81 = vpop.f32.mrf.mxu0
  %82 = vdwg.mxu0
  %83 = vmatprep.subr.bf16.mxu0 0
  %84 = vmatpush1.bf16.msra.mxu0 0
  %85 = vmatprep.subr.bf16.mxu0 0
  %86 = vmatpush1.bf16.msra.mxu0 0
  %87 = vmatprep.subr.bf16.mxu0 0
  %88 = vmatpush1.bf16.msra.mxu0 0
  %89 = vmatprep.subr.bf16.mxu0 0
  %90 = vmatpush1.bf16.msra.mxu0 0
  %91 = vmatprep.subr.bf16.mxu0 0
  %92 = vmatpush1.bf16.msra.mxu0 0
  %93 = vmatprep.subr.bf16.mxu0 0
  %94 = vmatpush1.bf16.msra.mxu0 0
  %95 = vmatprep.subr.bf16.mxu0 0
  %96 = vmatpush1.bf16.msra.mxu0 0
  %97 = vmatprep.subr.bf16.mxu0 %v33
  %98 = vmatpush1.bf16.msra.mxu0 %v32
  %99 = vmatprep.subr.bf16.mxu0 0
  %100 = vmatpush2.bf16.msra.mxu0 0
  %101 = vmatprep.subr.bf16.mxu0 0
  %102 = vmatpush2.bf16.msra.mxu0 0
  %103 = vmatprep.subr.bf16.mxu0 0
  %104 = vmatpush2.bf16.msra.mxu0 0
  %105 = vmatprep.subr.bf16.mxu0 0
  %106 = vmatpush2.bf16.msra.mxu0 0
  %107 = vmatprep.subr.bf16.mxu0 0
  %108 = vmatpush2.bf16.msra.mxu0 0
  %109 = vmatprep.subr.bf16.mxu0 0
  %110 = vmatpush2.bf16.msra.mxu0 0
  %111 = vmatprep.subr.bf16.mxu0 0
  %112 = vmatpush2.bf16.msra.mxu0 0
  %113 = vmatprep.subr.bf16.mxu0 0
  %114 = vmatpush2.bf16.msra.mxu0 0
  %115 = vmatprep.mubr.bf16.mxu0 0
  %116 = vmatmul.mubr.bf16.gmra.mxu0 %v40
  %v117 = vpop.f32.mrf.mxu0
  %v118 = vadd.f32 0.0, %v117
  %v119 = vpop.f32.mrf.mxu0
  %v120 = vadd.f32 0.0, %v119
  %v121 = vpop.f32.mrf.mxu0
  %v122 = vpop.f32.mrf.mxu0
  %123 = vdwg.mxu0
  %v124 = vpack.c.bf16 %v77, %v77
  %v125 = vpack.c.bf16 %v79, %v79
  %v126 = vpack.c.bf16 %v118, %v118
  %v127 = vpack.c.bf16 %v120, %v120
  %v132 = vcombine.low %v124, %v125
  %v133 = vcombine.low %v126, %v127
  %v135 = vunpack.c.l.s4 1966171168
  %v136 = vunpack.c.0.s8 %v135
  %v137 = vlaneseq
  %v138 = vshrl.u32 %v137, 7
  %v139 = vsub.s32 %v136, %v138
  %v140 = vrot.slane %v132, %v139
  %v142 = vunpack.c.l.s4 1966171168
  %v143 = vunpack.c.0.s8 %v142
  %v144 = vlaneseq
  %v145 = vshrl.u32 %v144, 7
  %v146 = vsub.s32 %v143, %v145
  %v147 = vrot.slane %v133, %v146
  %v148 = vcombine.low %v140, %v147
  %v150 = vunpack.c.l.s4 1966171168
  %v151 = vunpack.c.0.s8 %v150
  %v152 = vlaneseq
  %v153 = vshrl.u32 %v152, 7
  %v154 = vsub.s32 %v151, %v153
  %v155 = vrot.slane %v148, %v154
  %157 = vst [vmem:[%s2] sm:$0xf] %v155
  // Predicated region
  $region10: #{generator_forward.10} parent=0 // pred_check
    _
  $region11: #{generator_forward.10} parent=0 // pred_check_branch
    %159 = sbr.rel (0) target = $region13
  $region12: #{generator_forward.10} parent=0 // pred_region
    _
  $region13: #{generator_forward.10} parent=0 // pred_fallthru
    _
  // Predicated region
  $region14: #{generator_forward.10} parent=0 // pred_check
    _
  $region15: #{generator_forward.10} parent=0 // pred_check_branch
    %161 = sbr.rel (0) target = $region17
  $region16: #{generator_forward.10} parent=0 // pred_region
    _
  $region17: #{generator_forward.10} parent=0 // pred_fallthru
    _

// kernel: generator_forward.11
$region0: #{generator_forward.11}
  #allocation0 [shape = 'u32[]', space=smem, size = 0x4, offset = 0x4, fixed_abs, tag = 'smem constant byte address 0x4 - core index']
  #allocation1 [shape = 'u32[144,128]{1,0:T(1,128)}', space=vmem, size = 0x12000, scoped, tag = 'internal scratch']
  %s0 = inlined_call_operand.vmem [shape: bf16[32,32], index: 0, kind: input, shape index: {}]
  %s1 = inlined_call_operand.vmem [shape: f32[1,32], index: 1, kind: input, shape index: {}]
  %s2 = inlined_call_operand.vmem [shape: f32[1,32], index: 2, kind: input, shape index: {}]
  %s3 = inlined_call_operand.vmem [shape: f32[2,32], index: 3, kind: output, shape index: {}]
  %s4 = sld [smem:[#allocation0]]
  $region30: #{generator_forward.11} parent=0
    _
  %s6 = ssub.s32 1, %s4
  %s7 = scalar_select 0, %s6, %s4
  // Predicated region
  $region2: #{generator_forward.11} parent=0 // pred_check
    _
  $region3: #{generator_forward.11} parent=0 // pred_check_branch
    %9 = sbr.rel (0) target = $region5
  $region4: #{generator_forward.11} parent=0 // pred_region
    _
  $region5: #{generator_forward.11} parent=0 // pred_fallthru
    _
  // Predicated region
  $region6: #{generator_forward.11} parent=0 // pred_check
    _
  $region7: #{generator_forward.11} parent=0 // pred_check_branch
    %11 = sbr.rel (0) target = $region9
  $region8: #{generator_forward.11} parent=0 // pred_region
    _
  $region9: #{generator_forward.11} parent=0 // pred_fallthru
    _
  // Predicated region
  $region10: #{generator_forward.11} parent=0 // pred_check
    _
  $region11: #{generator_forward.11} parent=0 // pred_check_branch
    %13 = sbr.rel (0) target = $region13
  $region12: #{generator_forward.11} parent=0 // pred_region
    _
  $region13: #{generator_forward.11} parent=0 // pred_fallthru
    _
  %p14 = scmp.eq.s32.totalorder 0, 0
  // Predicated region
  $region14: #{generator_forward.11} parent=0 // pred_check
    %p15 = pneg %p14
  $region15: #{generator_forward.11} parent=0 // pred_check_branch
    %17 = sbr.rel (%p15) target = $region17
  $region16: #{generator_forward.11} parent=0 // pred_region
    %vm18 = vcmask 254976
    %19 = vst.msk [vmem:[%s3] sm:$0x3] %vm18, 0.0
  $region17: #{generator_forward.11} parent=0 // pred_fallthru
    _
  %v20 = vld [vmem:[%s0] sm:$0xf]
  %v21 = vld [vmem:[%s0 + $0x4] sm:$0xf]
  %v22 = vld [vmem:[%s0 + $0x8] sm:$0xf]
  %v23 = vld [vmem:[%s0 + $0xc] sm:$0xf]
  %v24 = vunpack.c.l.bf16 %v20
  %v25 = vunpack.c.l.bf16 %v21
  %v26 = vunpack.c.l.bf16 %v22
  %v27 = vunpack.c.l.bf16 %v23
  %vm28 = vcmask 261120
  %v29 = vsel %vm28, %v24, 0.0
  %v30 = vsel %vm28, %v25, 0.0
  %v31 = vadd.f32 %v29, %v30
  %v32 = vsel %vm28, %v26, 0.0
  %v33 = vadd.f32 %v31, %v32
  %v34 = vsel %vm28, %v27, 0.0
  %v35 = vadd.f32 %v33, %v34
  %v36 = vrot.slane %v35, 4
  %v37 = vadd.f32 %v35, %v36
  %v38 = vrot.slane %v37, 2
  %v39 = vadd.f32 %v37, %v38
  %v40 = vrot.slane %v39, 1
  %v41 = vadd.f32 %v39, %v40
  %v42 = vmul.f32 %v24, %v24
  %v43 = vmul.f32 %v25, %v25
  %v44 = vmul.f32 %v26, %v26
  %v45 = vmul.f32 %v27, %v27
  %v46 = vsel %vm28, %v42, 0.0
  %v47 = vsel %vm28, %v43, 0.0
  %v48 = vadd.f32 %v46, %v47
  %v49 = vsel %vm28, %v44, 0.0
  %v50 = vadd.f32 %v48, %v49
  %v51 = vsel %vm28, %v45, 0.0
  %v52 = vadd.f32 %v50, %v51
  %v53 = vrot.slane %v52, 4
  %v54 = vadd.f32 %v52, %v53
  %v55 = vrot.slane %v54, 2
  %v56 = vadd.f32 %v54, %v55
  %v57 = vrot.slane %v56, 1
  %v58 = vadd.f32 %v56, %v57
  %v59 = vld [vmem:[%s3] sm:$0x3]
  %vm60 = vcmask 1040384
  %v61 = vsel %vm60, %v41, %v58
  %v62 = vadd.f32 %v59, %v61
  %vm63 = vcmask 254976
  %64 = vst.msk [vmem:[%s3] sm:$0x3] %vm63, %v62
  // Predicated region
  $region18: #{generator_forward.11} parent=0 // pred_check
    %p65 = pneg %p14
  $region19: #{generator_forward.11} parent=0 // pred_check_branch
    %67 = sbr.rel (%p65) target = $region21
  $region20: #{generator_forward.11} parent=0 // pred_region
    %v68 = vld [vmem:[%s3] sm:$0x3]
    %v69 = vrcp.pop 32.0
    %v70 = vmul.f32 %v68, %v69
    %v71 = vmul.f32 %v70, %v70
    %v73 = vrot.slane %v71, 7
    %v75 = vsub.f32 %v70, %v73
    %v76 = vmax.f32 %v75, 0.0
    %v77 = vld [vmem:[%s1] sm:$0x1]
    %v78 = vadd.f32 %v76, 1e-05
    %v79 = vrsqrt.pop %v78
    %v82 = vunpack.c.l.s4 1966171168
    %v83 = vunpack.c.0.s8 %v82
    %v84 = vlaneseq
    %v85 = vshrl.u32 %v84, 7
    %v86 = vsub.s32 %v83, %v85
    %v87 = vrot.slane %v79, %v86
    %v88 = vcombine.high %v87, %v87
    %v90 = vunpack.c.l.s4 1966171168
    %v91 = vunpack.c.0.s8 %v90
    %v92 = vlaneseq
    %v93 = vshrl.u32 %v92, 7
    %v94 = vsub.s32 %v91, %v93
    %v95 = vrot.slane %v88, %v94
    %v97 = vmul.f32 %v77, %v95
    %v98 = vld [vmem:[%s2] sm:$0x1]
    %v99 = vmul.f32 %v70, %v97
    %v100 = vsub.f32 %v98, %v99
    %v102 = vlaneseq
    %v103 = vshrl.u32 %v102, 7
    %v104 = vsub.s32 0, %v103
    %v105 = vrot.slane %v100, %v104
    %v107 = vsel %vm60, %v97, %v105
    %108 = vst.msk [vmem:[%s3] sm:$0x3] %vm63, %v107
  $region21: #{generator_forward.11} parent=0 // pred_fallthru
    _
  // Predicated region
  $region22: #{generator_forward.11} parent=0 // pred_check
    _
  $region23: #{generator_forward.11} parent=0 // pred_check_branch
    %110 = sbr.rel (0) target = $region25
  $region24: #{generator_forward.11} parent=0 // pred_region
    _
  $region25: #{generator_forward.11} parent=0 // pred_fallthru
    _
  // Predicated region
  $region26: #{generator_forward.11} parent=0 // pred_check
    _
  $region27: #{generator_forward.11} parent=0 // pred_check_branch
    %112 = sbr.rel (0) target = $region29
  $region28: #{generator_forward.11} parent=0 // pred_region
    _
  $region29: #{generator_forward.11} parent=0 // pred_fallthru
    _

// kernel: generator_forward.12
$region0: #{generator_forward.12}
  #allocation0 [shape = 'u32[]', space=smem, size = 0x4, offset = 0x4, fixed_abs, tag = 'smem constant byte address 0x4 - core index']
  #allocation1 [shape = 'u32[144,128]{1,0:T(1,128)}', space=vmem, size = 0x12000, scoped, tag = 'internal scratch']
  %s0 = inlined_call_operand.vmem [shape: bf16[32,32], index: 0, kind: input, shape index: {}]
  %s1 = inlined_call_operand.vmem [shape: bf16[32,256], index: 1, kind: input, shape index: {}]
  %s2 = inlined_call_operand.vmem [shape: f32[2,32], index: 2, kind: input, shape index: {}]
  %s3 = inlined_call_operand.vmem [shape: bf16[32,256], index: 3, kind: output, shape index: {}]
  %s4 = sld [smem:[#allocation0]]
  $region22: #{generator_forward.12} parent=0
    _
  %s6 = ssub.s32 1, %s4
  %s7 = scalar_select 0, %s6, %s4
  // Predicated region
  $region2: #{generator_forward.12} parent=0 // pred_check
    _
  $region3: #{generator_forward.12} parent=0 // pred_check_branch
    %9 = sbr.rel (0) target = $region5
  $region4: #{generator_forward.12} parent=0 // pred_region
    _
  $region5: #{generator_forward.12} parent=0 // pred_fallthru
    _
  // Predicated region
  $region6: #{generator_forward.12} parent=0 // pred_check
    _
  $region7: #{generator_forward.12} parent=0 // pred_check_branch
    %11 = sbr.rel (0) target = $region9
  $region8: #{generator_forward.12} parent=0 // pred_region
    _
  $region9: #{generator_forward.12} parent=0 // pred_fallthru
    _
  // Predicated region
  $region10: #{generator_forward.12} parent=0 // pred_check
    _
  $region11: #{generator_forward.12} parent=0 // pred_check_branch
    %13 = sbr.rel (0) target = $region13
  $region12: #{generator_forward.12} parent=0 // pred_region
    _
  $region13: #{generator_forward.12} parent=0 // pred_fallthru
    _
  %v15 = vld [vmem:[%s2] sm:$0x3]
  %v16 = vld [vmem:[%s0] sm:$0xf]
  %v17 = vld [vmem:[%s0 + $0x4] sm:$0xf]
  %v18 = vld [vmem:[%s0 + $0x8] sm:$0xf]
  %v19 = vld [vmem:[%s0 + $0xc] sm:$0xf]
  %v20 = vunpack.c.l.bf16 %v16
  %v21 = vunpack.c.l.bf16 %v17
  %v22 = vunpack.c.l.bf16 %v18
  %v23 = vunpack.c.l.bf16 %v19
  %v24 = vlaneseq
  %v25 = vshrl.u32 %v24, 7
  %v26 = vsub.s32 0, %v25
  %v27 = vrot.slane %v15, %v26
  %v28 = vmul.f32 %v20, %v27
  %v29 = vmul.f32 %v21, %v27
  %v30 = vmul.f32 %v22, %v27
  %v31 = vmul.f32 %v23, %v27
  %v32 = vlaneseq
  %v33 = vshrl.u32 %v32, 7
  %v34 = vsub.s32 1, %v33
  %v35 = vrot.slane %v15, %v34
  %v36 = vadd.f32 %v28, %v35
  %v37 = vadd.f32 %v29, %v35
  %v38 = vadd.f32 %v30, %v35
  %v39 = vadd.f32 %v31, %v35
  %vm40 = vcmp.ge.f32.partialorder %v36, 0.0
  %vm41 = vcmp.ge.f32.partialorder %v37, 0.0
  %vm42 = vcmp.ge.f32.partialorder %v38, 0.0
  %vm43 = vcmp.ge.f32.partialorder %v39, 0.0
  %v44 = vmul.f32 %v36, 0.01
  %v45 = vmul.f32 %v37, 0.01
  %v46 = vmul.f32 %v38, 0.01
  %v47 = vmul.f32 %v39, 0.01
  %v48 = vsel %vm40, %v36, %v44
  %v49 = vsel %vm41, %v37, %v45
  %v50 = vsel %vm42, %v38, %v46
  %v51 = vsel %vm43, %v39, %v47
  %v52 = vpack.c.bf16 %v49, %v48
  %v53 = vpack.c.bf16 %v51, %v50
  %v54 = vld [vmem:[%s1] sm:$0xff]
  %v55 = vld [vmem:[%s1 + $0x8] sm:$0xff]
  %v56 = vld [vmem:[%s1 + $0x10] sm:$0xff]
  %v57 = vld [vmem:[%s1 + $0x18] sm:$0xff]
  %v62 = vunpack.c.l.b16 %v54
  %v63 = vunpack.c.h.b16 %v54
  %v64 = vunpack.c.l.b16 %v55
  %v65 = vunpack.c.h.b16 %v55
  %v66 = vunpack.c.l.b16 %v56
  %v67 = vunpack.c.h.b16 %v56
  %v68 = vunpack.c.l.b16 %v57
  %v69 = vunpack.c.h.b16 %v57
  %v70 = vpack.c.b16 %v64, %v62
  %v71 = vpack.c.b16 %v65, %v63
  %v72 = vpack.c.b16 %v68, %v66
  %v73 = vpack.c.b16 %v69, %v67
  %vm78 = vcmask 261120
  %v80 = vsel %vm78, %v52, 0
  %v83 = vsel %vm78, %v53, 0
  %85 = vmatprep.subr.bf16.mxu0 0
  %86 = vmatpush1.bf16.msra.mxu0 0
  %87 = vmatprep.subr.bf16.mxu0 0
  %88 = vmatpush1.bf16.msra.mxu0 0
  %89 = vmatprep.subr.bf16.mxu0 0
  %90 = vmatpush1.bf16.msra.mxu0 0
  %91 = vmatprep.subr.bf16.mxu0 0
  %92 = vmatpush1.bf16.msra.mxu0 0
  %93 = vmatprep.subr.bf16.mxu0 0
  %94 = vmatpush1.bf16.msra.mxu0 0
  %95 = vmatprep.subr.bf16.mxu0 0
  %96 = vmatpush1.bf16.msra.mxu0 0
  %97 = vmatprep.subr.bf16.mxu0 %v73
  %98 = vmatpush1.bf16.msra.mxu0 %v72
  %99 = vmatprep.subr.bf16.mxu0 %v71
  %100 = vmatpush1.bf16.msra.mxu0 %v70
  %101 = vmatprep.subr.bf16.mxu0 0
  %102 = vmatpush2.bf16.msra.mxu0 0
  %103 = vmatprep.subr.bf16.mxu0 0
  %104 = vmatpush2.bf16.msra.mxu0 0
  %105 = vmatprep.subr.bf16.mxu0 0
  %106 = vmatpush2.bf16.msra.mxu0 0
  %107 = vmatprep.subr.bf16.mxu0 0
  %108 = vmatpush2.bf16.msra.mxu0 0
  %109 = vmatprep.subr.bf16.mxu0 0
  %110 = vmatpush2.bf16.msra.mxu0 0
  %111 = vmatprep.subr.bf16.mxu0 0
  %112 = vmatpush2.bf16.msra.mxu0 0
  %113 = vmatprep.subr.bf16.mxu0 0
  %114 = vmatpush2.bf16.msra.mxu0 0
  %115 = vmatprep.subr.bf16.mxu0 0
  %116 = vmatpush2.bf16.msra.mxu0 0
  %117 = vmatprep.mubr.bf16.mxu0 0
  %118 = vmatmul.mubr.bf16.gmra.mxu0 %v80
  %v119 = vpop.f32.mrf.mxu0
  %v120 = vadd.f32 0.0, %v119
  %v121 = vpop.f32.mrf.mxu0
  %v122 = vadd.f32 0.0, %v121
  %v123 = vpop.f32.mrf.mxu0
  %v124 = vadd.f32 0.0, %v123
  %v125 = vpop.f32.mrf.mxu0
  %v126 = vadd.f32 0.0, %v125
  %127 = vmatprep.mubr.bf16.mxu0 0
  %128 = vmatmul.mubr.bf16.gmra.mxu0 %v83
  %v129 = vpop.f32.mrf.mxu0
  %v130 = vadd.f32 0.0, %v129
  %v131 = vpop.f32.mrf.mxu0
  %v132 = vadd.f32 0.0, %v131
  %v133 = vpop.f32.mrf.mxu0
  %v134 = vadd.f32 0.0, %v133
  %v135 = vpop.f32.mrf.mxu0
  %v136 = vadd.f32 0.0, %v135
  %137 = vdwg.mxu0
  %v138 = vpack.c.bf16 %v124, %v120
  %v139 = vpack.c.bf16 %v126, %v122
  %v140 = vpack.c.bf16 %v134, %v130
  %v141 = vpack.c.bf16 %v136, %v132
  %v146 = vunpack.c.l.b16 %v138
  %v147 = vunpack.c.l.b16 %v139
  %v148 = vunpack.c.h.b16 %v138
  %v149 = vunpack.c.h.b16 %v139
  %v150 = vunpack.c.l.b16 %v140
  %v151 = vunpack.c.l.b16 %v141
  %v152 = vunpack.c.h.b16 %v140
  %v153 = vunpack.c.h.b16 %v141
  %v154 = vpack.c.b16 %v147, %v146
  %v155 = vpack.c.b16 %v149, %v148
  %v156 = vpack.c.b16 %v151, %v150
  %v157 = vpack.c.b16 %v153, %v152
  %162 = vst [vmem:[%s3] sm:$0xff] %v154
  %163 = vst [vmem:[%s3 + $0x8] sm:$0xff] %v155
  %164 = vst [vmem:[%s3 + $0x10] sm:$0xff] %v156
  %165 = vst [vmem:[%s3 + $0x18] sm:$0xff] %v157
  // Predicated region
  $region14: #{generator_forward.12} parent=0 // pred_check
    _
  $region15: #{generator_forward.12} parent=0 // pred_check_branch
    %167 = sbr.rel (0) target = $region17
  $region16: #{generator_forward.12} parent=0 // pred_region
    _
  $region17: #{generator_forward.12} parent=0 // pred_fallthru
    _
  // Predicated region
  $region18: #{generator_forward.12} parent=0 // pred_check
    _
  $region19: #{generator_forward.12} parent=0 // pred_check_branch
    %169 = sbr.rel (0) target = $region21
  $region20: #{generator_forward.12} parent=0 // pred_region
    _
  $region21: #{generator_forward.12} parent=0 // pred_fallthru
    _

// kernel: generator_forward.13
$region0: #{generator_forward.13}
  #allocation0 [shape = 'u32[]', space=smem, size = 0x4, offset = 0x4, fixed_abs, tag = 'smem constant byte address 0x4 - core index']
  #allocation1 [shape = 'u32[144,128]{1,0:T(1,128)}', space=vmem, size = 0x12000, scoped, tag = 'internal scratch']
  %s0 = inlined_call_operand.vmem [shape: bf16[128,16], index: 0, kind: input, shape index: {}]
  %s1 = inlined_call_operand.vmem [shape: f32[1,16], index: 1, kind: input, shape index: {}]
  %s2 = inlined_call_operand.vmem [shape: f32[1,16], index: 2, kind: input, shape index: {}]
  %s3 = inlined_call_operand.vmem [shape: f32[2,16], index: 3, kind: output, shape index: {}]
  %s4 = sld [smem:[#allocation0]]
  $region30: #{generator_forward.13} parent=0
    _
  %s6 = ssub.s32 1, %s4
  %s7 = scalar_select 0, %s6, %s4
  // Predicated region
  $region2: #{generator_forward.13} parent=0 // pred_check
    _
  $region3: #{generator_forward.13} parent=0 // pred_check_branch
    %9 = sbr.rel (0) target = $region5
  $region4: #{generator_forward.13} parent=0 // pred_region
    _
  $region5: #{generator_forward.13} parent=0 // pred_fallthru
    _
  // Predicated region
  $region6: #{generator_forward.13} parent=0 // pred_check
    _
  $region7: #{generator_forward.13} parent=0 // pred_check_branch
    %11 = sbr.rel (0) target = $region9
  $region8: #{generator_forward.13} parent=0 // pred_region
    _
  $region9: #{generator_forward.13} parent=0 // pred_fallthru
    _
  // Predicated region
  $region10: #{generator_forward.13} parent=0 // pred_check
    _
  $region11: #{generator_forward.13} parent=0 // pred_check_branch
    %13 = sbr.rel (0) target = $region13
  $region12: #{generator_forward.13} parent=0 // pred_region
    _
  $region13: #{generator_forward.13} parent=0 // pred_fallthru
    _
  %p14 = scmp.eq.s32.totalorder 0, 0
  // Predicated region
  $region14: #{generator_forward.13} parent=0 // pred_check
    %p15 = pneg %p14
  $region15: #{generator_forward.13} parent=0 // pred_check_branch
    %17 = sbr.rel (%p15) target = $region17
  $region16: #{generator_forward.13} parent=0 // pred_region
    %vm18 = vcmask 123904
    %19 = vst.msk [vmem:[%s3] sm:$0x3] %vm18, 0.0
  $region17: #{generator_forward.13} parent=0 // pred_fallthru
    _
  %v20 = vld [vmem:[%s0] sm:$0xf]
  %v21 = vld [vmem:[%s0 + $0x4] sm:$0xf]
  %v22 = vld [vmem:[%s0 + $0x8] sm:$0xf]
  %v23 = vld [vmem:[%s0 + $0xc] sm:$0xf]
  %v24 = vld [vmem:[%s0 + $0x10] sm:$0xf]
  %v25 = vld [vmem:[%s0 + $0x14] sm:$0xf]
  %v26 = vld [vmem:[%s0 + $0x18] sm:$0xf]
  %v27 = vld [vmem:[%s0 + $0x1c] sm:$0xf]
  %v28 = vld [vmem:[%s0 + $0x20] sm:$0xf]
  %v29 = vld [vmem:[%s0 + $0x24] sm:$0xf]
  %v30 = vld [vmem:[%s0 + $0x28] sm:$0xf]
  %v31 = vld [vmem:[%s0 + $0x2c] sm:$0xf]
  %v32 = vld [vmem:[%s0 + $0x30] sm:$0xf]
  %v33 = vld [vmem:[%s0 + $0x34] sm:$0xf]
  %v34 = vld [vmem:[%s0 + $0x38] sm:$0xf]
  %v35 = vld [vmem:[%s0 + $0x3c] sm:$0xf]
  %v36 = vunpack.c.l.bf16 %v20
  %v37 = vunpack.c.l.bf16 %v21
  %v38 = vunpack.c.l.bf16 %v22
  %v39 = vunpack.c.l.bf16 %v23
  %v40 = vunpack.c.l.bf16 %v24
  %v41 = vunpack.c.l.bf16 %v25
  %v42 = vunpack.c.l.bf16 %v26
  %v43 = vunpack.c.l.bf16 %v27
  %v44 = vunpack.c.l.bf16 %v28
  %v45 = vunpack.c.l.bf16 %v29
  %v46 = vunpack.c.l.bf16 %v30
  %v47 = vunpack.c.l.bf16 %v31
  %v48 = vunpack.c.l.bf16 %v32
  %v49 = vunpack.c.l.bf16 %v33
  %v50 = vunpack.c.l.bf16 %v34
  %v51 = vunpack.c.l.bf16 %v35
  %vm52 = vcmask 130048
  %v53 = vsel %vm52, %v36, 0.0
  %v54 = vsel %vm52, %v37, 0.0
  %v55 = vadd.f32 %v53, %v54
  %v56 = vsel %vm52, %v38, 0.0
  %v57 = vadd.f32 %v55, %v56
  %v58 = vsel %vm52, %v39, 0.0
  %v59 = vadd.f32 %v57, %v58
  %v60 = vsel %vm52, %v40, 0.0
  %v61 = vadd.f32 %v59, %v60
  %v62 = vsel %vm52, %v41, 0.0
  %v63 = vadd.f32 %v61, %v62
  %v64 = vsel %vm52, %v42, 0.0
  %v65 = vadd.f32 %v63, %v64
  %v66 = vsel %vm52, %v43, 0.0
  %v67 = vadd.f32 %v65, %v66
  %v68 = vsel %vm52, %v44, 0.0
  %v69 = vadd.f32 %v67, %v68
  %v70 = vsel %vm52, %v45, 0.0
  %v71 = vadd.f32 %v69, %v70
  %v72 = vsel %vm52, %v46, 0.0
  %v73 = vadd.f32 %v71, %v72
  %v74 = vsel %vm52, %v47, 0.0
  %v75 = vadd.f32 %v73, %v74
  %v76 = vsel %vm52, %v48, 0.0
  %v77 = vadd.f32 %v75, %v76
  %v78 = vsel %vm52, %v49, 0.0
  %v79 = vadd.f32 %v77, %v78
  %v80 = vsel %vm52, %v50, 0.0
  %v81 = vadd.f32 %v79, %v80
  %v82 = vsel %vm52, %v51, 0.0
  %v83 = vadd.f32 %v81, %v82
  %v84 = vrot.slane %v83, 4
  %v85 = vadd.f32 %v83, %v84
  %v86 = vrot.slane %v85, 2
  %v87 = vadd.f32 %v85, %v86
  %v88 = vrot.slane %v87, 1
  %v89 = vadd.f32 %v87, %v88
  %v90 = vmul.f32 %v36, %v36
  %v91 = vmul.f32 %v37, %v37
  %v92 = vmul.f32 %v38, %v38
  %v93 = vmul.f32 %v39, %v39
  %v94 = vmul.f32 %v40, %v40
  %v95 = vmul.f32 %v41, %v41
  %v96 = vmul.f32 %v42, %v42
  %v97 = vmul.f32 %v43, %v43
  %v98 = vmul.f32 %v44, %v44
  %v99 = vmul.f32 %v45, %v45
  %v100 = vmul.f32 %v46, %v46
  %v101 = vmul.f32 %v47, %v47
  %v102 = vmul.f32 %v48, %v48
  %v103 = vmul.f32 %v49, %v49
  %v104 = vmul.f32 %v50, %v50
  %v105 = vmul.f32 %v51, %v51
  %v106 = vsel %vm52, %v90, 0.0
  %v107 = vsel %vm52, %v91, 0.0
  %v108 = vadd.f32 %v106, %v107
  %v109 = vsel %vm52, %v92, 0.0
  %v110 = vadd.f32 %v108, %v109
  %v111 = vsel %vm52, %v93, 0.0
  %v112 = vadd.f32 %v110, %v111
  %v113 = vsel %vm52, %v94, 0.0
  %v114 = vadd.f32 %v112, %v113
  %v115 = vsel %vm52, %v95, 0.0
  %v116 = vadd.f32 %v114, %v115
  %v117 = vsel %vm52, %v96, 0.0
  %v118 = vadd.f32 %v116, %v117
  %v119 = vsel %vm52, %v97, 0.0
  %v120 = vadd.f32 %v118, %v119
  %v121 = vsel %vm52, %v98, 0.0
  %v122 = vadd.f32 %v120, %v121
  %v123 = vsel %vm52, %v99, 0.0
  %v124 = vadd.f32 %v122, %v123
  %v125 = vsel %vm52, %v100, 0.0
  %v126 = vadd.f32 %v124, %v125
  %v127 = vsel %vm52, %v101, 0.0
  %v128 = vadd.f32 %v126, %v127
  %v129 = vsel %vm52, %v102, 0.0
  %v130 = vadd.f32 %v128, %v129
  %v131 = vsel %vm52, %v103, 0.0
  %v132 = vadd.f32 %v130, %v131
  %v133 = vsel %vm52, %v104, 0.0
  %v134 = vadd.f32 %v132, %v133
  %v135 = vsel %vm52, %v105, 0.0
  %v136 = vadd.f32 %v134, %v135
  %v137 = vrot.slane %v136, 4
  %v138 = vadd.f32 %v136, %v137
  %v139 = vrot.slane %v138, 2
  %v140 = vadd.f32 %v138, %v139
  %v141 = vrot.slane %v140, 1
  %v142 = vadd.f32 %v140, %v141
  %v143 = vld [vmem:[%s3] sm:$0x3]
  %vm144 = vcmask 1040384
  %v145 = vsel %vm144, %v89, %v142
  %v146 = vadd.f32 %v143, %v145
  %vm147 = vcmask 123904
  %148 = vst.msk [vmem:[%s3] sm:$0x3] %vm147, %v146
  // Predicated region
  $region18: #{generator_forward.13} parent=0 // pred_check
    %p149 = pneg %p14
  $region19: #{generator_forward.13} parent=0 // pred_check_branch
    %151 = sbr.rel (%p149) target = $region21
  $region20: #{generator_forward.13} parent=0 // pred_region
    %v152 = vld [vmem:[%s3] sm:$0x3]
    %v153 = vrcp.pop 128.0
    %v154 = vmul.f32 %v152, %v153
    %v155 = vmul.f32 %v154, %v154
    %v157 = vrot.slane %v155, 7
    %v159 = vsub.f32 %v154, %v157
    %v160 = vmax.f32 %v159, 0.0
    %v161 = vld [vmem:[%s1] sm:$0x1]
    %v162 = vadd.f32 %v160, 1e-05
    %v163 = vrsqrt.pop %v162
    %v166 = vunpack.c.l.s4 1966171168
    %v167 = vunpack.c.0.s8 %v166
    %v168 = vlaneseq
    %v169 = vshrl.u32 %v168, 7
    %v170 = vsub.s32 %v167, %v169
    %v171 = vrot.slane %v163, %v170
    %v172 = vcombine.high %v171, %v171
    %v174 = vunpack.c.l.s4 1966171168
    %v175 = vunpack.c.0.s8 %v174
    %v176 = vlaneseq
    %v177 = vshrl.u32 %v176, 7
    %v178 = vsub.s32 %v175, %v177
    %v179 = vrot.slane %v172, %v178
    %v181 = vmul.f32 %v161, %v179
    %v182 = vld [vmem:[%s2] sm:$0x1]
    %v183 = vmul.f32 %v154, %v181
    %v184 = vsub.f32 %v182, %v183
    %v186 = vlaneseq
    %v187 = vshrl.u32 %v186, 7
    %v188 = vsub.s32 0, %v187
    %v189 = vrot.slane %v184, %v188
    %v191 = vsel %vm144, %v181, %v189
    %192 = vst.msk [vmem:[%s3] sm:$0x3] %vm147, %v191
  $region21: #{generator_forward.13} parent=0 // pred_fallthru
    _
  // Predicated region
  $region22: #{generator_forward.13} parent=0 // pred_check
    _
  $region23: #{generator_forward.13} parent=0 // pred_check_branch
    %194 = sbr.rel (0) target = $region25
  $region24: #{generator_forward.13} parent=0 // pred_region
    _
  $region25: #{generator_forward.13} parent=0 // pred_fallthru
    _
  // Predicated region
  $region26: #{generator_forward.13} parent=0 // pred_check
    _
  $region27: #{generator_forward.13} parent=0 // pred_check_branch
    %196 = sbr.rel (0) target = $region29
  $region28: #{generator_forward.13} parent=0 // pred_region
    _
  $region29: #{generator_forward.13} parent=0 // pred_fallthru
    _

// kernel: generator_forward.14
$region0: #{generator_forward.14}
  #allocation0 [shape = 'u32[]', space=smem, size = 0x4, offset = 0x4, fixed_abs, tag = 'smem constant byte address 0x4 - core index']
  #allocation1 [shape = 'u32[144,128]{1,0:T(1,128)}', space=vmem, size = 0x12000, scoped, tag = 'internal scratch']
  %s0 = inlined_call_operand.vmem [shape: bf16[128,16], index: 0, kind: input, shape index: {}]
  %s1 = inlined_call_operand.vmem [shape: bf16[16,256], index: 1, kind: input, shape index: {}]
  %s2 = inlined_call_operand.vmem [shape: f32[2,16], index: 2, kind: input, shape index: {}]
  %s3 = inlined_call_operand.vmem [shape: bf16[128,256], index: 3, kind: output, shape index: {}]
  %s4 = sld [smem:[#allocation0]]
  $region22: #{generator_forward.14} parent=0
    _
  %s6 = ssub.s32 1, %s4
  %s7 = scalar_select 0, %s6, %s4
  // Predicated region
  $region2: #{generator_forward.14} parent=0 // pred_check
    _
  $region3: #{generator_forward.14} parent=0 // pred_check_branch
    %9 = sbr.rel (0) target = $region5
  $region4: #{generator_forward.14} parent=0 // pred_region
    _
  $region5: #{generator_forward.14} parent=0 // pred_fallthru
    _
  // Predicated region
  $region6: #{generator_forward.14} parent=0 // pred_check
    _
  $region7: #{generator_forward.14} parent=0 // pred_check_branch
    %11 = sbr.rel (0) target = $region9
  $region8: #{generator_forward.14} parent=0 // pred_region
    _
  $region9: #{generator_forward.14} parent=0 // pred_fallthru
    _
  // Predicated region
  $region10: #{generator_forward.14} parent=0 // pred_check
    _
  $region11: #{generator_forward.14} parent=0 // pred_check_branch
    %13 = sbr.rel (0) target = $region13
  $region12: #{generator_forward.14} parent=0 // pred_region
    _
  $region13: #{generator_forward.14} parent=0 // pred_fallthru
    _
  %v15 = vld [vmem:[%s2] sm:$0x3]
  %v16 = vld [vmem:[%s0] sm:$0xf]
  %v17 = vld [vmem:[%s0 + $0x4] sm:$0xf]
  %v18 = vld [vmem:[%s0 + $0x8] sm:$0xf]
  %v19 = vld [vmem:[%s0 + $0xc] sm:$0xf]
  %v20 = vld [vmem:[%s0 + $0x10] sm:$0xf]
  %v21 = vld [vmem:[%s0 + $0x14] sm:$0xf]
  %v22 = vld [vmem:[%s0 + $0x18] sm:$0xf]
  %v23 = vld [vmem:[%s0 + $0x1c] sm:$0xf]
  %v24 = vld [vmem:[%s0 + $0x20] sm:$0xf]
  %v25 = vld [vmem:[%s0 + $0x24] sm:$0xf]
  %v26 = vld [vmem:[%s0 + $0x28] sm:$0xf]
  %v27 = vld [vmem:[%s0 + $0x2c] sm:$0xf]
  %v28 = vld [vmem:[%s0 + $0x30] sm:$0xf]
  %v29 = vld [vmem:[%s0 + $0x34] sm:$0xf]
  %v30 = vld [vmem:[%s0 + $0x38] sm:$0xf]
  %v31 = vld [vmem:[%s0 + $0x3c] sm:$0xf]
  %v32 = vunpack.c.l.bf16 %v16
  %v33 = vunpack.c.l.bf16 %v17
  %v34 = vunpack.c.l.bf16 %v18
  %v35 = vunpack.c.l.bf16 %v19
  %v36 = vunpack.c.l.bf16 %v20
  %v37 = vunpack.c.l.bf16 %v21
  %v38 = vunpack.c.l.bf16 %v22
  %v39 = vunpack.c.l.bf16 %v23
  %v40 = vunpack.c.l.bf16 %v24
  %v41 = vunpack.c.l.bf16 %v25
  %v42 = vunpack.c.l.bf16 %v26
  %v43 = vunpack.c.l.bf16 %v27
  %v44 = vunpack.c.l.bf16 %v28
  %v45 = vunpack.c.l.bf16 %v29
  %v46 = vunpack.c.l.bf16 %v30
  %v47 = vunpack.c.l.bf16 %v31
  %v48 = vlaneseq
  %v49 = vshrl.u32 %v48, 7
  %v50 = vsub.s32 0, %v49
  %v51 = vrot.slane %v15, %v50
  %v52 = vmul.f32 %v32, %v51
  %v53 = vmul.f32 %v33, %v51
  %v54 = vmul.f32 %v34, %v51
  %v55 = vmul.f32 %v35, %v51
  %v56 = vmul.f32 %v36, %v51
  %v57 = vmul.f32 %v37, %v51
  %v58 = vmul.f32 %v38, %v51
  %v59 = vmul.f32 %v39, %v51
  %v60 = vmul.f32 %v40, %v51
  %v61 = vmul.f32 %v41, %v51
  %v62 = vmul.f32 %v42, %v51
  %v63 = vmul.f32 %v43, %v51
  %v64 = vmul.f32 %v44, %v51
  %v65 = vmul.f32 %v45, %v51
  %v66 = vmul.f32 %v46, %v51
  %v67 = vmul.f32 %v47, %v51
  %v68 = vlaneseq
  %v69 = vshrl.u32 %v68, 7
  %v70 = vsub.s32 1, %v69
  %v71 = vrot.slane %v15, %v70
  %v72 = vadd.f32 %v52, %v71
  %v73 = vadd.f32 %v53, %v71
  %v74 = vadd.f32 %v54, %v71
  %v75 = vadd.f32 %v55, %v71
  %v76 = vadd.f32 %v56, %v71
  %v77 = vadd.f32 %v57, %v71
  %v78 = vadd.f32 %v58, %v71
  %v79 = vadd.f32 %v59, %v71
  %v80 = vadd.f32 %v60, %v71
  %v81 = vadd.f32 %v61, %v71
  %v82 = vadd.f32 %v62, %v71
  %v83 = vadd.f32 %v63, %v71
  %v84 = vadd.f32 %v64, %v71
  %v85 = vadd.f32 %v65, %v71
  %v86 = vadd.f32 %v66, %v71
  %v87 = vadd.f32 %v67, %v71
  %vm88 = vcmp.ge.f32.partialorder %v72, 0.0
  %vm89 = vcmp.ge.f32.partialorder %v73, 0.0
  %vm90 = vcmp.ge.f32.partialorder %v74, 0.0
  %vm91 = vcmp.ge.f32.partialorder %v75, 0.0
  %vm92 = vcmp.ge.f32.partialorder %v76, 0.0
  %vm93 = vcmp.ge.f32.partialorder %v77, 0.0
  %vm94 = vcmp.ge.f32.partialorder %v78, 0.0
  %vm95 = vcmp.ge.f32.partialorder %v79, 0.0
  %vm96 = vcmp.ge.f32.partialorder %v80, 0.0
  %vm97 = vcmp.ge.f32.partialorder %v81, 0.0
  %vm98 = vcmp.ge.f32.partialorder %v82, 0.0
  %vm99 = vcmp.ge.f32.partialorder %v83, 0.0
  %vm100 = vcmp.ge.f32.partialorder %v84, 0.0
  %vm101 = vcmp.ge.f32.partialorder %v85, 0.0
  %vm102 = vcmp.ge.f32.partialorder %v86, 0.0
  %vm103 = vcmp.ge.f32.partialorder %v87, 0.0
  %v104 = vmul.f32 %v72, 0.01
  %v105 = vmul.f32 %v73, 0.01
  %v106 = vmul.f32 %v74, 0.01
  %v107 = vmul.f32 %v75, 0.01
  %v108 = vmul.f32 %v76, 0.01
  %v109 = vmul.f32 %v77, 0.01
  %v110 = vmul.f32 %v78, 0.01
  %v111 = vmul.f32 %v79, 0.01
  %v112 = vmul.f32 %v80, 0.01
  %v113 = vmul.f32 %v81, 0.01
  %v114 = vmul.f32 %v82, 0.01
  %v115 = vmul.f32 %v83, 0.01
  %v116 = vmul.f32 %v84, 0.01
  %v117 = vmul.f32 %v85, 0.01
  %v118 = vmul.f32 %v86, 0.01
  %v119 = vmul.f32 %v87, 0.01
  %v120 = vsel %vm88, %v72, %v104
  %v121 = vsel %vm89, %v73, %v105
  %v122 = vsel %vm90, %v74, %v106
  %v123 = vsel %vm91, %v75, %v107
  %v124 = vsel %vm92, %v76, %v108
  %v125 = vsel %vm93, %v77, %v109
  %v126 = vsel %vm94, %v78, %v110
  %v127 = vsel %vm95, %v79, %v111
  %v128 = vsel %vm96, %v80, %v112
  %v129 = vsel %vm97, %v81, %v113
  %v130 = vsel %vm98, %v82, %v114
  %v131 = vsel %vm99, %v83, %v115
  %v132 = vsel %vm100, %v84, %v116
  %v133 = vsel %vm101, %v85, %v117
  %v134 = vsel %vm102, %v86, %v118
  %v135 = vsel %vm103, %v87, %v119
  %v136 = vpack.c.bf16 %v121, %v120
  %v137 = vpack.c.bf16 %v123, %v122
  %v138 = vpack.c.bf16 %v125, %v124
  %v139 = vpack.c.bf16 %v127, %v126
  %v140 = vpack.c.bf16 %v129, %v128
  %v141 = vpack.c.bf16 %v131, %v130
  %v142 = vpack.c.bf16 %v133, %v132
  %v143 = vpack.c.bf16 %v135, %v134
  %v144 = vld [vmem:[%s1] sm:$0xff]
  %v145 = vld [vmem:[%s1 + $0x8] sm:$0xff]
  %v148 = vunpack.c.l.b16 %v144
  %v149 = vunpack.c.h.b16 %v144
  %v150 = vunpack.c.l.b16 %v145
  %v151 = vunpack.c.h.b16 %v145
  %v152 = vpack.c.b16 %v150, %v148
  %v153 = vpack.c.b16 %v151, %v149
  %vm156 = vcmask 130048
  %v158 = vsel %vm156, %v136, 0
  %v161 = vsel %vm156, %v137, 0
  %v164 = vsel %vm156, %v138, 0
  %v167 = vsel %vm156, %v139, 0
  %v170 = vsel %vm156, %v140, 0
  %v173 = vsel %vm156, %v141, 0
  %v176 = vsel %vm156, %v142, 0
  %v179 = vsel %vm156, %v143, 0
  %181 = vmatprep.subr.bf16.mxu0 0
  %182 = vmatpush1.bf16.msra.mxu0 0
  %183 = vmatprep.subr.bf16.mxu0 0
  %184 = vmatpush1.bf16.msra.mxu0 0
  %185 = vmatprep.subr.bf16.mxu0 0
  %186 = vmatpush1.bf16.msra.mxu0 0
  %187 = vmatprep.subr.bf16.mxu0 0
  %188 = vmatpush1.bf16.msra.mxu0 0
  %189 = vmatprep.subr.bf16.mxu0 0
  %190 = vmatpush1.bf16.msra.mxu0 0
  %191 = vmatprep.subr.bf16.mxu0 0
  %192 = vmatpush1.bf16.msra.mxu0 0
  %193 = vmatprep.subr.bf16.mxu0 0
  %194 = vmatpush1.bf16.msra.mxu0 0
  %195 = vmatprep.subr.bf16.mxu0 %v153
  %196 = vmatpush1.bf16.msra.mxu0 %v152
  %197 = vmatprep.subr.bf16.mxu0 0
  %198 = vmatpush2.bf16.msra.mxu0 0
  %199 = vmatprep.subr.bf16.mxu0 0
  %200 = vmatpush2.bf16.msra.mxu0 0
  %201 = vmatprep.subr.bf16.mxu0 0
  %202 = vmatpush2.bf16.msra.mxu0 0
  %203 = vmatprep.subr.bf16.mxu0 0
  %204 = vmatpush2.bf16.msra.mxu0 0
  %205 = vmatprep.subr.bf16.mxu0 0
  %206 = vmatpush2.bf16.msra.mxu0 0
  %207 = vmatprep.subr.bf16.mxu0 0
  %208 = vmatpush2.bf16.msra.mxu0 0
  %209 = vmatprep.subr.bf16.mxu0 0
  %210 = vmatpush2.bf16.msra.mxu0 0
  %211 = vmatprep.subr.bf16.mxu0 0
  %212 = vmatpush2.bf16.msra.mxu0 0
  %213 = vmatprep.mubr.bf16.mxu0 0
  %214 = vmatmul.mubr.bf16.gmra.mxu0 %v158
  %v215 = vpop.f32.mrf.mxu0
  %v216 = vadd.f32 0.0, %v215
  %v217 = vpop.f32.mrf.mxu0
  %v218 = vadd.f32 0.0, %v217
  %v219 = vpop.f32.mrf.mxu0
  %v220 = vadd.f32 0.0, %v219
  %v221 = vpop.f32.mrf.mxu0
  %v222 = vadd.f32 0.0, %v221
  %223 = vmatprep.mubr.bf16.mxu0 0
  %224 = vmatmul.mubr.bf16.gmra.mxu0 %v161
  %v225 = vpop.f32.mrf.mxu0
  %v226 = vadd.f32 0.0, %v225
  %v227 = vpop.f32.mrf.mxu0
  %v228 = vadd.f32 0.0, %v227
  %v229 = vpop.f32.mrf.mxu0
  %v230 = vadd.f32 0.0, %v229
  %v231 = vpop.f32.mrf.mxu0
  %v232 = vadd.f32 0.0, %v231
  %233 = vmatprep.mubr.bf16.mxu0 0
  %234 = vmatmul.mubr.bf16.gmra.mxu0 %v164
  %v235 = vpop.f32.mrf.mxu0
  %v236 = vadd.f32 0.0, %v235
  %v237 = vpop.f32.mrf.mxu0
  %v238 = vadd.f32 0.0, %v237
  %v239 = vpop.f32.mrf.mxu0
  %v240 = vadd.f32 0.0, %v239
  %v241 = vpop.f32.mrf.mxu0
  %v242 = vadd.f32 0.0, %v241
  %243 = vmatprep.mubr.bf16.mxu0 0
  %244 = vmatmul.mubr.bf16.gmra.mxu0 %v167
  %v245 = vpop.f32.mrf.mxu0
  %v246 = vadd.f32 0.0, %v245
  %v247 = vpop.f32.mrf.mxu0
  %v248 = vadd.f32 0.0, %v247
  %v249 = vpop.f32.mrf.mxu0
  %v250 = vadd.f32 0.0, %v249
  %v251 = vpop.f32.mrf.mxu0
  %v252 = vadd.f32 0.0, %v251
  %253 = vmatprep.mubr.bf16.mxu0 0
  %254 = vmatmul.mubr.bf16.gmra.mxu0 %v170
  %v255 = vpop.f32.mrf.mxu0
  %v256 = vadd.f32 0.0, %v255
  %v257 = vpop.f32.mrf.mxu0
  %v258 = vadd.f32 0.0, %v257
  %v259 = vpop.f32.mrf.mxu0
  %v260 = vadd.f32 0.0, %v259
  %v261 = vpop.f32.mrf.mxu0
  %v262 = vadd.f32 0.0, %v261
  %263 = vmatprep.mubr.bf16.mxu0 0
  %264 = vmatmul.mubr.bf16.gmra.mxu0 %v173
  %v265 = vpop.f32.mrf.mxu0
  %v266 = vadd.f32 0.0, %v265
  %v267 = vpop.f32.mrf.mxu0
  %v268 = vadd.f32 0.0, %v267
  %v269 = vpop.f32.mrf.mxu0
  %v270 = vadd.f32 0.0, %v269
  %v271 = vpop.f32.mrf.mxu0
  %v272 = vadd.f32 0.0, %v271
  %273 = vmatprep.mubr.bf16.mxu0 0
  %274 = vmatmul.mubr.bf16.gmra.mxu0 %v176
  %v275 = vpop.f32.mrf.mxu0
  %v276 = vadd.f32 0.0, %v275
  %v277 = vpop.f32.mrf.mxu0
  %v278 = vadd.f32 0.0, %v277
  %v279 = vpop.f32.mrf.mxu0
  %v280 = vadd.f32 0.0, %v279
  %v281 = vpop.f32.mrf.mxu0
  %v282 = vadd.f32 0.0, %v281
  %283 = vmatprep.mubr.bf16.mxu0 0
  %284 = vmatmul.mubr.bf16.gmra.mxu0 %v179
  %v285 = vpop.f32.mrf.mxu0
  %v286 = vadd.f32 0.0, %v285
  %v287 = vpop.f32.mrf.mxu0
  %v288 = vadd.f32 0.0, %v287
  %v289 = vpop.f32.mrf.mxu0
  %v290 = vadd.f32 0.0, %v289
  %v291 = vpop.f32.mrf.mxu0
  %v292 = vadd.f32 0.0, %v291
  %293 = vdwg.mxu0
  %v294 = vpack.c.bf16 %v220, %v216
  %v295 = vpack.c.bf16 %v222, %v218
  %v296 = vpack.c.bf16 %v230, %v226
  %v297 = vpack.c.bf16 %v232, %v228
  %v298 = vpack.c.bf16 %v240, %v236
  %v299 = vpack.c.bf16 %v242, %v238
  %v300 = vpack.c.bf16 %v250, %v246
  %v301 = vpack.c.bf16 %v252, %v248
  %v302 = vpack.c.bf16 %v260, %v256
  %v303 = vpack.c.bf16 %v262, %v258
  %v304 = vpack.c.bf16 %v270, %v266
  %v305 = vpack.c.bf16 %v272, %v268
  %v306 = vpack.c.bf16 %v280, %v276
  %v307 = vpack.c.bf16 %v282, %v278
  %v308 = vpack.c.bf16 %v290, %v286
  %v309 = vpack.c.bf16 %v292, %v288
  %v326 = vunpack.c.l.b16 %v294
  %v327 = vunpack.c.l.b16 %v295
  %v328 = vunpack.c.h.b16 %v294
  %v329 = vunpack.c.h.b16 %v295
  %v330 = vunpack.c.l.b16 %v296
  %v331 = vunpack.c.l.b16 %v297
  %v332 = vunpack.c.h.b16 %v296
  %v333 = vunpack.c.h.b16 %v297
  %v334 = vunpack.c.l.b16 %v298
  %v335 = vunpack.c.l.b16 %v299
  %v336 = vunpack.c.h.b16 %v298
  %v337 = vunpack.c.h.b16 %v299
  %v338 = vunpack.c.l.b16 %v300
  %v339 = vunpack.c.l.b16 %v301
  %v340 = vunpack.c.h.b16 %v300
  %v341 = vunpack.c.h.b16 %v301
  %v342 = vunpack.c.l.b16 %v302
  %v343 = vunpack.c.l.b16 %v303
  %v344 = vunpack.c.h.b16 %v302
  %v345 = vunpack.c.h.b16 %v303
  %v346 = vunpack.c.l.b16 %v304
  %v347 = vunpack.c.l.b16 %v305
  %v348 = vunpack.c.h.b16 %v304
  %v349 = vunpack.c.h.b16 %v305
  %v350 = vunpack.c.l.b16 %v306
  %v351 = vunpack.c.l.b16 %v307
  %v352 = vunpack.c.h.b16 %v306
  %v353 = vunpack.c.h.b16 %v307
  %v354 = vunpack.c.l.b16 %v308
  %v355 = vunpack.c.l.b16 %v309
  %v356 = vunpack.c.h.b16 %v308
  %v357 = vunpack.c.h.b16 %v309
  %v358 = vpack.c.b16 %v327, %v326
  %v359 = vpack.c.b16 %v329, %v328
  %v360 = vpack.c.b16 %v331, %v330
  %v361 = vpack.c.b16 %v333, %v332
  %v362 = vpack.c.b16 %v335, %v334
  %v363 = vpack.c.b16 %v337, %v336
  %v364 = vpack.c.b16 %v339, %v338
  %v365 = vpack.c.b16 %v341, %v340
  %v366 = vpack.c.b16 %v343, %v342
  %v367 = vpack.c.b16 %v345, %v344
  %v368 = vpack.c.b16 %v347, %v346
  %v369 = vpack.c.b16 %v349, %v348
  %v370 = vpack.c.b16 %v351, %v350
  %v371 = vpack.c.b16 %v353, %v352
  %v372 = vpack.c.b16 %v355, %v354
  %v373 = vpack.c.b16 %v357, %v356
  %390 = vst [vmem:[%s3] sm:$0xff] %v358
  %391 = vst [vmem:[%s3 + $0x8] sm:$0xff] %v359
  %392 = vst [vmem:[%s3 + $0x10] sm:$0xff] %v360
  %393 = vst [vmem:[%s3 + $0x18] sm:$0xff] %v361
  %394 = vst [vmem:[%s3 + $0x20] sm:$0xff] %v362
  %395 = vst [vmem:[%s3 + $0x28] sm:$0xff] %v363
  %396 = vst [vmem:[%s3 + $0x30] sm:$0xff] %v364
  %397 = vst [vmem:[%s3 + $0x38] sm:$0xff] %v365
  %398 = vst [vmem:[%s3 + $0x40] sm:$0xff] %v366
  %399 = vst [vmem:[%s3 + $0x48] sm:$0xff] %v367
  %400 = vst [vmem:[%s3 + $0x50] sm:$0xff] %v368
  %401 = vst [vmem:[%s3 + $0x58] sm:$0xff] %v369
  %402 = vst [vmem:[%s3 + $0x60] sm:$0xff] %v370
  %403 = vst [vmem:[%s3 + $0x68] sm:$0xff] %v371
  %404 = vst [vmem:[%s3 + $0x70] sm:$0xff] %v372
  %405 = vst [vmem:[%s3 + $0x78] sm:$0xff] %v373
  // Predicated region
  $region14: #{generator_forward.14} parent=0 // pred_check
    _
  $region15: #{generator_forward.14} parent=0 // pred_check_branch
    %407 = sbr.rel (0) target = $region17
  $region16: #{generator_forward.14} parent=0 // pred_region
    _
  $region17: #{generator_forward.14} parent=0 // pred_fallthru
    _
  // Predicated region
  $region18: #{generator_forward.14} parent=0 // pred_check
    _
  $region19: #{generator_forward.14} parent=0 // pred_check_branch
    %409 = sbr.rel (0) target = $region21
  $region20: #{generator_forward.14} parent=0 // pred_region
    _
  $region21: #{generator_forward.14} parent=0 // pred_fallthru
    _

// kernel: generator_forward.15
$region0: #{generator_forward.15}
  #allocation0 [shape = 'u32[]', space=smem, size = 0x4, offset = 0x4, fixed_abs, tag = 'smem constant byte address 0x4 - core index']
  #allocation1 [shape = 'u32[144,128]{1,0:T(1,128)}', space=vmem, size = 0x12000, scoped, tag = 'internal scratch']
  %s0 = inlined_call_operand.vmem [shape: bf16[512,16], index: 0, kind: input, shape index: {}]
  %s1 = inlined_call_operand.vmem [shape: f32[1,16], index: 1, kind: input, shape index: {}]
  %s2 = inlined_call_operand.vmem [shape: f32[1,16], index: 2, kind: input, shape index: {}]
  %s3 = inlined_call_operand.vmem [shape: f32[2,16], index: 3, kind: output, shape index: {}]
  %s4 = sld [smem:[#allocation0]]
  $region30: #{generator_forward.15} parent=0
    _
  %s6 = ssub.s32 1, %s4
  %s7 = scalar_select 0, %s6, %s4
  // Predicated region
  $region2: #{generator_forward.15} parent=0 // pred_check
    _
  $region3: #{generator_forward.15} parent=0 // pred_check_branch
    %9 = sbr.rel (0) target = $region5
  $region4: #{generator_forward.15} parent=0 // pred_region
    _
  $region5: #{generator_forward.15} parent=0 // pred_fallthru
    _
  // Predicated region
  $region6: #{generator_forward.15} parent=0 // pred_check
    _
  $region7: #{generator_forward.15} parent=0 // pred_check_branch
    %11 = sbr.rel (0) target = $region9
  $region8: #{generator_forward.15} parent=0 // pred_region
    _
  $region9: #{generator_forward.15} parent=0 // pred_fallthru
    _
  // Predicated region
  $region10: #{generator_forward.15} parent=0 // pred_check
    _
  $region11: #{generator_forward.15} parent=0 // pred_check_branch
    %13 = sbr.rel (0) target = $region13
  $region12: #{generator_forward.15} parent=0 // pred_region
    _
  $region13: #{generator_forward.15} parent=0 // pred_fallthru
    _
  %p14 = scmp.eq.s32.totalorder 0, 0
  // Predicated region
  $region14: #{generator_forward.15} parent=0 // pred_check
    %p15 = pneg %p14
  $region15: #{generator_forward.15} parent=0 // pred_check_branch
    %17 = sbr.rel (%p15) target = $region17
  $region16: #{generator_forward.15} parent=0 // pred_region
    %vm18 = vcmask 123904
    %19 = vst.msk [vmem:[%s3] sm:$0x3] %vm18, 0.0
  $region17: #{generator_forward.15} parent=0 // pred_fallthru
    _
  %v20 = vld [vmem:[%s0] sm:$0xf]
  %v21 = vld [vmem:[%s0 + $0x4] sm:$0xf]
  %v22 = vld [vmem:[%s0 + $0x8] sm:$0xf]
  %v23 = vld [vmem:[%s0 + $0xc] sm:$0xf]
  %v24 = vld [vmem:[%s0 + $0x10] sm:$0xf]
  %v25 = vld [vmem:[%s0 + $0x14] sm:$0xf]
  %v26 = vld [vmem:[%s0 + $0x18] sm:$0xf]
  %v27 = vld [vmem:[%s0 + $0x1c] sm:$0xf]
  %v28 = vld [vmem:[%s0 + $0x20] sm:$0xf]
  %v29 = vld [vmem:[%s0 + $0x24] sm:$0xf]
  %v30 = vld [vmem:[%s0 + $0x28] sm:$0xf]
  %v31 = vld [vmem:[%s0 + $0x2c] sm:$0xf]
  %v32 = vld [vmem:[%s0 + $0x30] sm:$0xf]
  %v33 = vld [vmem:[%s0 + $0x34] sm:$0xf]
  %v34 = vld [vmem:[%s0 + $0x38] sm:$0xf]
  %v35 = vld [vmem:[%s0 + $0x3c] sm:$0xf]
  %v36 = vld [vmem:[%s0 + $0x40] sm:$0xf]
  %v37 = vld [vmem:[%s0 + $0x44] sm:$0xf]
  %v38 = vld [vmem:[%s0 + $0x48] sm:$0xf]
  %v39 = vld [vmem:[%s0 + $0x4c] sm:$0xf]
  %v40 = vld [vmem:[%s0 + $0x50] sm:$0xf]
  %v41 = vld [vmem:[%s0 + $0x54] sm:$0xf]
  %v42 = vld [vmem:[%s0 + $0x58] sm:$0xf]
  %v43 = vld [vmem:[%s0 + $0x5c] sm:$0xf]
  %v44 = vld [vmem:[%s0 + $0x60] sm:$0xf]
  %v45 = vld [vmem:[%s0 + $0x64] sm:$0xf]
  %v46 = vld [vmem:[%s0 + $0x68] sm:$0xf]
  %v47 = vld [vmem:[%s0 + $0x6c] sm:$0xf]
  %v48 = vld [vmem:[%s0 + $0x70] sm:$0xf]
  %v49 = vld [vmem:[%s0 + $0x74] sm:$0xf]
  %v50 = vld [vmem:[%s0 + $0x78] sm:$0xf]
  %v51 = vld [vmem:[%s0 + $0x7c] sm:$0xf]
  %v52 = vld [vmem:[%s0 + $0x80] sm:$0xf]
  %v53 = vld [vmem:[%s0 + $0x84] sm:$0xf]
  %v54 = vld [vmem:[%s0 + $0x88] sm:$0xf]
  %v55 = vld [vmem:[%s0 + $0x8c] sm:$0xf]
  %v56 = vld [vmem:[%s0 + $0x90] sm:$0xf]
  %v57 = vld [vmem:[%s0 + $0x94] sm:$0xf]
  %v58 = vld [vmem:[%s0 + $0x98] sm:$0xf]
  %v59 = vld [vmem:[%s0 + $0x9c] sm:$0xf]
  %v60 = vld [vmem:[%s0 + $0xa0] sm:$0xf]
  %v61 = vld [vmem:[%s0 + $0xa4] sm:$0xf]
  %v62 = vld [vmem:[%s0 + $0xa8] sm:$0xf]
  %v63 = vld [vmem:[%s0 + $0xac] sm:$0xf]
  %v64 = vld [vmem:[%s0 + $0xb0] sm:$0xf]
  %v65 = vld [vmem:[%s0 + $0xb4] sm:$0xf]
  %v66 = vld [vmem:[%s0 + $0xb8] sm:$0xf]
  %v67 = vld [vmem:[%s0 + $0xbc] sm:$0xf]
  %v68 = vld [vmem:[%s0 + $0xc0] sm:$0xf]
  %v69 = vld [vmem:[%s0 + $0xc4] sm:$0xf]
  %v70 = vld [vmem:[%s0 + $0xc8] sm:$0xf]
  %v71 = vld [vmem:[%s0 + $0xcc] sm:$0xf]
  %v72 = vld [vmem:[%s0 + $0xd0] sm:$0xf]
  %v73 = vld [vmem:[%s0 + $0xd4] sm:$0xf]
  %v74 = vld [vmem:[%s0 + $0xd8] sm:$0xf]
  %v75 = vld [vmem:[%s0 + $0xdc] sm:$0xf]
  %v76 = vld [vmem:[%s0 + $0xe0] sm:$0xf]
  %v77 = vld [vmem:[%s0 + $0xe4] sm:$0xf]
  %v78 = vld [vmem:[%s0 + $0xe8] sm:$0xf]
  %v79 = vld [vmem:[%s0 + $0xec] sm:$0xf]
  %v80 = vld [vmem:[%s0 + $0xf0] sm:$0xf]
  %v81 = vld [vmem:[%s0 + $0xf4] sm:$0xf]
  %v82 = vld [vmem:[%s0 + $0xf8] sm:$0xf]
  %v83 = vld [vmem:[%s0 + $0xfc] sm:$0xf]
  %v84 = vunpack.c.l.bf16 %v20
  %v85 = vunpack.c.l.bf16 %v21
  %v86 = vunpack.c.l.bf16 %v22
  %v87 = vunpack.c.l.bf16 %v23
  %v88 = vunpack.c.l.bf16 %v24
  %v89 = vunpack.c.l.bf16 %v25
  %v90 = vunpack.c.l.bf16 %v26
  %v91 = vunpack.c.l.bf16 %v27
  %v92 = vunpack.c.l.bf16 %v28
  %v93 = vunpack.c.l.bf16 %v29
  %v94 = vunpack.c.l.bf16 %v30
  %v95 = vunpack.c.l.bf16 %v31
  %v96 = vunpack.c.l.bf16 %v32
  %v97 = vunpack.c.l.bf16 %v33
  %v98 = vunpack.c.l.bf16 %v34
  %v99 = vunpack.c.l.bf16 %v35
  %v100 = vunpack.c.l.bf16 %v36
  %v101 = vunpack.c.l.bf16 %v37
  %v102 = vunpack.c.l.bf16 %v38
  %v103 = vunpack.c.l.bf16 %v39
  %v104 = vunpack.c.l.bf16 %v40
  %v105 = vunpack.c.l.bf16 %v41
  %v106 = vunpack.c.l.bf16 %v42
  %v107 = vunpack.c.l.bf16 %v43
  %v108 = vunpack.c.l.bf16 %v44
  %v109 = vunpack.c.l.bf16 %v45
  %v110 = vunpack.c.l.bf16 %v46
  %v111 = vunpack.c.l.bf16 %v47
  %v112 = vunpack.c.l.bf16 %v48
  %v113 = vunpack.c.l.bf16 %v49
  %v114 = vunpack.c.l.bf16 %v50
  %v115 = vunpack.c.l.bf16 %v51
  %v116 = vunpack.c.l.bf16 %v52
  %v117 = vunpack.c.l.bf16 %v53
  %v118 = vunpack.c.l.bf16 %v54
  %v119 = vunpack.c.l.bf16 %v55
  %v120 = vunpack.c.l.bf16 %v56
  %v121 = vunpack.c.l.bf16 %v57
  %v122 = vunpack.c.l.bf16 %v58
  %v123 = vunpack.c.l.bf16 %v59
  %v124 = vunpack.c.l.bf16 %v60
  %v125 = vunpack.c.l.bf16 %v61
  %v126 = vunpack.c.l.bf16 %v62
  %v127 = vunpack.c.l.bf16 %v63
  %v128 = vunpack.c.l.bf16 %v64
  %v129 = vunpack.c.l.bf16 %v65
  %v130 = vunpack.c.l.bf16 %v66
  %v131 = vunpack.c.l.bf16 %v67
  %v132 = vunpack.c.l.bf16 %v68
  %v133 = vunpack.c.l.bf16 %v69
  %v134 = vunpack.c.l.bf16 %v70
  %v135 = vunpack.c.l.bf16 %v71
  %v136 = vunpack.c.l.bf16 %v72
  %v137 = vunpack.c.l.bf16 %v73
  %v138 = vunpack.c.l.bf16 %v74
  %v139 = vunpack.c.l.bf16 %v75
  %v140 = vunpack.c.l.bf16 %v76
  %v141 = vunpack.c.l.bf16 %v77
  %v142 = vunpack.c.l.bf16 %v78
  %v143 = vunpack.c.l.bf16 %v79
  %v144 = vunpack.c.l.bf16 %v80
  %v145 = vunpack.c.l.bf16 %v81
  %v146 = vunpack.c.l.bf16 %v82
  %v147 = vunpack.c.l.bf16 %v83
  %vm148 = vcmask 130048
  %v149 = vsel %vm148, %v84, 0.0
  %v150 = vsel %vm148, %v85, 0.0
  %v151 = vadd.f32 %v149, %v150
  %v152 = vsel %vm148, %v86, 0.0
  %v153 = vadd.f32 %v151, %v152
  %v154 = vsel %vm148, %v87, 0.0
  %v155 = vadd.f32 %v153, %v154
  %v156 = vsel %vm148, %v88, 0.0
  %v157 = vadd.f32 %v155, %v156
  %v158 = vsel %vm148, %v89, 0.0
  %v159 = vadd.f32 %v157, %v158
  %v160 = vsel %vm148, %v90, 0.0
  %v161 = vadd.f32 %v159, %v160
  %v162 = vsel %vm148, %v91, 0.0
  %v163 = vadd.f32 %v161, %v162
  %v164 = vsel %vm148, %v92, 0.0
  %v165 = vadd.f32 %v163, %v164
  %v166 = vsel %vm148, %v93, 0.0
  %v167 = vadd.f32 %v165, %v166
  %v168 = vsel %vm148, %v94, 0.0
  %v169 = vadd.f32 %v167, %v168
  %v170 = vsel %vm148, %v95, 0.0
  %v171 = vadd.f32 %v169, %v170
  %v172 = vsel %vm148, %v96, 0.0
  %v173 = vadd.f32 %v171, %v172
  %v174 = vsel %vm148, %v97, 0.0
  %v175 = vadd.f32 %v173, %v174
  %v176 = vsel %vm148, %v98, 0.0
  %v177 = vadd.f32 %v175, %v176
  %v178 = vsel %vm148, %v99, 0.0
  %v179 = vadd.f32 %v177, %v178
  %v180 = vsel %vm148, %v100, 0.0
  %v181 = vadd.f32 %v179, %v180
  %v182 = vsel %vm148, %v101, 0.0
  %v183 = vadd.f32 %v181, %v182
  %v184 = vsel %vm148, %v102, 0.0
  %v185 = vadd.f32 %v183, %v184
  %v186 = vsel %vm148, %v103, 0.0
  %v187 = vadd.f32 %v185, %v186
  %v188 = vsel %vm148, %v104, 0.0
  %v189 = vadd.f32 %v187, %v188
  %v190 = vsel %vm148, %v105, 0.0
  %v191 = vadd.f32 %v189, %v190
  %v192 = vsel %vm148, %v106, 0.0
  %v193 = vadd.f32 %v191, %v192
  %v194 = vsel %vm148, %v107, 0.0
  %v195 = vadd.f32 %v193, %v194
  %v196 = vsel %vm148, %v108, 0.0
  %v197 = vadd.f32 %v195, %v196
  %v198 = vsel %vm148, %v109, 0.0
  %v199 = vadd.f32 %v197, %v198
  %v200 = vsel %vm148, %v110, 0.0
  %v201 = vadd.f32 %v199, %v200
  %v202 = vsel %vm148, %v111, 0.0
  %v203 = vadd.f32 %v201, %v202
  %v204 = vsel %vm148, %v112, 0.0
  %v205 = vadd.f32 %v203, %v204
  %v206 = vsel %vm148, %v113, 0.0
  %v207 = vadd.f32 %v205, %v206
  %v208 = vsel %vm148, %v114, 0.0
  %v209 = vadd.f32 %v207, %v208
  %v210 = vsel %vm148, %v115, 0.0
  %v211 = vadd.f32 %v209, %v210
  %v212 = vsel %vm148, %v116, 0.0
  %v213 = vadd.f32 %v211, %v212
  %v214 = vsel %vm148, %v117, 0.0
  %v215 = vadd.f32 %v213, %v214
  %v216 = vsel %vm148, %v118, 0.0
  %v217 = vadd.f32 %v215, %v216
  %v218 = vsel %vm148, %v119, 0.0
  %v219 = vadd.f32 %v217, %v218
  %v220 = vsel %vm148, %v120, 0.0
  %v221 = vadd.f32 %v219, %v220
  %v222 = vsel %vm148, %v121, 0.0
  %v223 = vadd.f32 %v221, %v222
  %v224 = vsel %vm148, %v122, 0.0
  %v225 = vadd.f32 %v223, %v224
  %v226 = vsel %vm148, %v123, 0.0
  %v227 = vadd.f32 %v225, %v226
  %v228 = vsel %vm148, %v124, 0.0
  %v229 = vadd.f32 %v227, %v228
  %v230 = vsel %vm148, %v125, 0.0
  %v231 = vadd.f32 %v229, %v230
  %v232 = vsel %vm148, %v126, 0.0
  %v233 = vadd.f32 %v231, %v232
  %v234 = vsel %vm148, %v127, 0.0
  %v235 = vadd.f32 %v233, %v234
  %v236 = vsel %vm148, %v128, 0.0
  %v237 = vadd.f32 %v235, %v236
  %v238 = vsel %vm148, %v129, 0.0
  %v239 = vadd.f32 %v237, %v238
  %v240 = vsel %vm148, %v130, 0.0
  %v241 = vadd.f32 %v239, %v240
  %v242 = vsel %vm148, %v131, 0.0
  %v243 = vadd.f32 %v241, %v242
  %v244 = vsel %vm148, %v132, 0.0
  %v245 = vadd.f32 %v243, %v244
  %v246 = vsel %vm148, %v133, 0.0
  %v247 = vadd.f32 %v245, %v246
  %v248 = vsel %vm148, %v134, 0.0
  %v249 = vadd.f32 %v247, %v248
  %v250 = vsel %vm148, %v135, 0.0
  %v251 = vadd.f32 %v249, %v250
  %v252 = vsel %vm148, %v136, 0.0
  %v253 = vadd.f32 %v251, %v252
  %v254 = vsel %vm148, %v137, 0.0
  %v255 = vadd.f32 %v253, %v254
  %v256 = vsel %vm148, %v138, 0.0
  %v257 = vadd.f32 %v255, %v256
  %v258 = vsel %vm148, %v139, 0.0
  %v259 = vadd.f32 %v257, %v258
  %v260 = vsel %vm148, %v140, 0.0
  %v261 = vadd.f32 %v259, %v260
  %v262 = vsel %vm148, %v141, 0.0
  %v263 = vadd.f32 %v261, %v262
  %v264 = vsel %vm148, %v142, 0.0
  %v265 = vadd.f32 %v263, %v264
  %v266 = vsel %vm148, %v143, 0.0
  %v267 = vadd.f32 %v265, %v266
  %v268 = vsel %vm148, %v144, 0.0
  %v269 = vadd.f32 %v267, %v268
  %v270 = vsel %vm148, %v145, 0.0
  %v271 = vadd.f32 %v269, %v270
  %v272 = vsel %vm148, %v146, 0.0
  %v273 = vadd.f32 %v271, %v272
  %v274 = vsel %vm148, %v147, 0.0
  %v275 = vadd.f32 %v273, %v274
  %v276 = vrot.slane %v275, 4
  %v277 = vadd.f32 %v275, %v276
  %v278 = vrot.slane %v277, 2
  %v279 = vadd.f32 %v277, %v278
  %v280 = vrot.slane %v279, 1
  %v281 = vadd.f32 %v279, %v280
  %v282 = vmul.f32 %v84, %v84
  %v283 = vmul.f32 %v85, %v85
  %v284 = vmul.f32 %v86, %v86
  %v285 = vmul.f32 %v87, %v87
  %v286 = vmul.f32 %v88, %v88
  %v287 = vmul.f32 %v89, %v89
  %v288 = vmul.f32 %v90, %v90
  %v289 = vmul.f32 %v91, %v91
  %v290 = vmul.f32 %v92, %v92
  %v291 = vmul.f32 %v93, %v93
  %v292 = vmul.f32 %v94, %v94
  %v293 = vmul.f32 %v95, %v95
  %v294 = vmul.f32 %v96, %v96
  %v295 = vmul.f32 %v97, %v97
  %v296 = vmul.f32 %v98, %v98
  %v297 = vmul.f32 %v99, %v99
  %v298 = vmul.f32 %v100, %v100
  %v299 = vmul.f32 %v101, %v101
  %v300 = vmul.f32 %v102, %v102
  %v301 = vmul.f32 %v103, %v103
  %v302 = vmul.f32 %v104, %v104
  %v303 = vmul.f32 %v105, %v105
  %v304 = vmul.f32 %v106, %v106
  %v305 = vmul.f32 %v107, %v107
  %v306 = vmul.f32 %v108, %v108
  %v307 = vmul.f32 %v109, %v109
  %v308 = vmul.f32 %v110, %v110
  %v309 = vmul.f32 %v111, %v111
  %v310 = vmul.f32 %v112, %v112
  %v311 = vmul.f32 %v113, %v113
  %v312 = vmul.f32 %v114, %v114
  %v313 = vmul.f32 %v115, %v115
  %v314 = vmul.f32 %v116, %v116
  %v315 = vmul.f32 %v117, %v117
  %v316 = vmul.f32 %v118, %v118
  %v317 = vmul.f32 %v119, %v119
  %v318 = vmul.f32 %v120, %v120
  %v319 = vmul.f32 %v121, %v121
  %v320 = vmul.f32 %v122, %v122
  %v321 = vmul.f32 %v123, %v123
  %v322 = vmul.f32 %v124, %v124
  %v323 = vmul.f32 %v125, %v125
  %v324 = vmul.f32 %v126, %v126
  %v325 = vmul.f32 %v127, %v127
  %v326 = vmul.f32 %v128, %v128
  %v327 = vmul.f32 %v129, %v129
  %v328 = vmul.f32 %v130, %v130
  %v329 = vmul.f32 %v131, %v131
  %v330 = vmul.f32 %v132, %v132
  %v331 = vmul.f32 %v133, %v133
  %v332 = vmul.f32 %v134, %v134
  %v333 = vmul.f32 %v135, %v135
  %v334 = vmul.f32 %v136, %v136
  %v335 = vmul.f32 %v137, %v137
  %v336 = vmul.f32 %v138, %v138
  %v337 = vmul.f32 %v139, %v139
  %v338 = vmul.f32 %v140, %v140
  %v339 = vmul.f32 %v141, %v141
  %v340 = vmul.f32 %v142, %v142
  %v341 = vmul.f32 %v143, %v143
  %v342 = vmul.f32 %v144, %v144
  %v343 = vmul.f32 %v145, %v145
  %v344 = vmul.f32 %v146, %v146
  %v345 = vmul.f32 %v147, %v147
  %v346 = vsel %vm148, %v282, 0.0
  %v347 = vsel %vm148, %v283, 0.0
  %v348 = vadd.f32 %v346, %v347
  %v349 = vsel %vm148, %v284, 0.0
  %v350 = vadd.f32 %v348, %v349
  %v351 = vsel %vm148, %v285, 0.0
  %v352 = vadd.f32 %v350, %v351
  %v353 = vsel %vm148, %v286, 0.0
  %v354 = vadd.f32 %v352, %v353
  %v355 = vsel %vm148, %v287, 0.0
  %v356 = vadd.f32 %v354, %v355
  %v357 = vsel %vm148, %v288, 0.0
  %v358 = vadd.f32 %v356, %v357
  %v359 = vsel %vm148, %v289, 0.0
  %v360 = vadd.f32 %v358, %v359
  %v361 = vsel %vm148, %v290, 0.0
  %v362 = vadd.f32 %v360, %v361
  %v363 = vsel %vm148, %v291, 0.0
  %v364 = vadd.f32 %v362, %v363
  %v365 = vsel %vm148, %v292, 0.0
  %v366 = vadd.f32 %v364, %v365
  %v367 = vsel %vm148, %v293, 0.0
  %v368 = vadd.f32 %v366, %v367
  %v369 = vsel %vm148, %v294, 0.0
  %v370 = vadd.f32 %v368, %v369
  %v371 = vsel %vm148, %v295, 0.0
  %v372 = vadd.f32 %v370, %v371
  %v373 = vsel %vm148, %v296, 0.0
  %v374 = vadd.f32 %v372, %v373
  %v375 = vsel %vm148, %v297, 0.0
  %v376 = vadd.f32 %v374, %v375
  %v377 = vsel %vm148, %v298, 0.0
  %v378 = vadd.f32 %v376, %v377
  %v379 = vsel %vm148, %v299, 0.0
  %v380 = vadd.f32 %v378, %v379
  %v381 = vsel %vm148, %v300, 0.0
  %v382 = vadd.f32 %v380, %v381
  %v383 = vsel %vm148, %v301, 0.0
  %v384 = vadd.f32 %v382, %v383
  %v385 = vsel %vm148, %v302, 0.0
  %v386 = vadd.f32 %v384, %v385
  %v387 = vsel %vm148, %v303, 0.0
  %v388 = vadd.f32 %v386, %v387
  %v389 = vsel %vm148, %v304, 0.0
  %v390 = vadd.f32 %v388, %v389
  %v391 = vsel %vm148, %v305, 0.0
  %v392 = vadd.f32 %v390, %v391
  %v393 = vsel %vm148, %v306, 0.0
  %v394 = vadd.f32 %v392, %v393
  %v395 = vsel %vm148, %v307, 0.0
  %v396 = vadd.f32 %v394, %v395
  %v397 = vsel %vm148, %v308, 0.0
  %v398 = vadd.f32 %v396, %v397
  %v399 = vsel %vm148, %v309, 0.0
  %v400 = vadd.f32 %v398, %v399
  %v401 = vsel %vm148, %v310, 0.0
  %v402 = vadd.f32 %v400, %v401
  %v403 = vsel %vm148, %v311, 0.0
  %v404 = vadd.f32 %v402, %v403
  %v405 = vsel %vm148, %v312, 0.0
  %v406 = vadd.f32 %v404, %v405
  %v407 = vsel %vm148, %v313, 0.0
  %v408 = vadd.f32 %v406, %v407
  %v409 = vsel %vm148, %v314, 0.0
  %v410 = vadd.f32 %v408, %v409
  %v411 = vsel %vm148, %v315, 0.0
  %v412 = vadd.f32 %v410, %v411
  %v413 = vsel %vm148, %v316, 0.0
  %v414 = vadd.f32 %v412, %v413
  %v415 = vsel %vm148, %v317, 0.0
  %v416 = vadd.f32 %v414, %v415
  %v417 = vsel %vm148, %v318, 0.0
  %v418 = vadd.f32 %v416, %v417
  %v419 = vsel %vm148, %v319, 0.0
  %v420 = vadd.f32 %v418, %v419
  %v421 = vsel %vm148, %v320, 0.0
  %v422 = vadd.f32 %v420, %v421
  %v423 = vsel %vm148, %v321, 0.0
  %v424 = vadd.f32 %v422, %v423
  %v425 = vsel %vm148, %v322, 0.0
  %v426 = vadd.f32 %v424, %v425
  %v427 = vsel %vm148, %v323, 0.0
  %v428 = vadd.f32 %v426, %v427
  %v429 = vsel %vm148, %v324, 0.0
  %v430 = vadd.f32 %v428, %v429
  %v431 = vsel %vm148, %v325, 0.0
  %v432 = vadd.f32 %v430, %v431
  %v433 = vsel %vm148, %v326, 0.0
  %v434 = vadd.f32 %v432, %v433
  %v435 = vsel %vm148, %v327, 0.0
  %v436 = vadd.f32 %v434, %v435
  %v437 = vsel %vm148, %v328, 0.0
  %v438 = vadd.f32 %v436, %v437
  %v439 = vsel %vm148, %v329, 0.0
  %v440 = vadd.f32 %v438, %v439
  %v441 = vsel %vm148, %v330, 0.0
  %v442 = vadd.f32 %v440, %v441
  %v443 = vsel %vm148, %v331, 0.0
  %v444 = vadd.f32 %v442, %v443
  %v445 = vsel %vm148, %v332, 0.0
  %v446 = vadd.f32 %v444, %v445
  %v447 = vsel %vm148, %v333, 0.0
  %v448 = vadd.f32 %v446, %v447
  %v449 = vsel %vm148, %v334, 0.0
  %v450 = vadd.f32 %v448, %v449
  %v451 = vsel %vm148, %v335, 0.0
  %v452 = vadd.f32 %v450, %v451
  %v453 = vsel %vm148, %v336, 0.0
  %v454 = vadd.f32 %v452, %v453
  %v455 = vsel %vm148, %v337, 0.0
  %v456 = vadd.f32 %v454, %v455
  %v457 = vsel %vm148, %v338, 0.0
  %v458 = vadd.f32 %v456, %v457
  %v459 = vsel %vm148, %v339, 0.0
  %v460 = vadd.f32 %v458, %v459
  %v461 = vsel %vm148, %v340, 0.0
  %v462 = vadd.f32 %v460, %v461
  %v463 = vsel %vm148, %v341, 0.0
  %v464 = vadd.f32 %v462, %v463
  %v465 = vsel %vm148, %v342, 0.0
  %v466 = vadd.f32 %v464, %v465
  %v467 = vsel %vm148, %v343, 0.0
  %v468 = vadd.f32 %v466, %v467
  %v469 = vsel %vm148, %v344, 0.0
  %v470 = vadd.f32 %v468, %v469
  %v471 = vsel %vm148, %v345, 0.0
  %v472 = vadd.f32 %v470, %v471
  %v473 = vrot.slane %v472, 4
  %v474 = vadd.f32 %v472, %v473
  %v475 = vrot.slane %v474, 2
  %v476 = vadd.f32 %v474, %v475
  %v477 = vrot.slane %v476, 1
  %v478 = vadd.f32 %v476, %v477
  %v479 = vld [vmem:[%s3] sm:$0x3]
  %vm480 = vcmask 1040384
  %v481 = vsel %vm480, %v281, %v478
  %v482 = vadd.f32 %v479, %v481
  %vm483 = vcmask 123904
  %484 = vst.msk [vmem:[%s3] sm:$0x3] %vm483, %v482
  // Predicated region
  $region18: #{generator_forward.15} parent=0 // pred_check
    %p485 = pneg %p14
  $region19: #{generator_forward.15} parent=0 // pred_check_branch
    %487 = sbr.rel (%p485) target = $region21
  $region20: #{generator_forward.15} parent=0 // pred_region
    %v488 = vld [vmem:[%s3] sm:$0x3]
    %v489 = vrcp.pop 512.0
    %v490 = vmul.f32 %v488, %v489
    %v491 = vmul.f32 %v490, %v490
    %v493 = vrot.slane %v491, 7
    %v495 = vsub.f32 %v490, %v493
    %v496 = vmax.f32 %v495, 0.0
    %v497 = vld [vmem:[%s1] sm:$0x1]
    %v498 = vadd.f32 %v496, 1e-05
    %v499 = vrsqrt.pop %v498
    %v502 = vunpack.c.l.s4 1966171168
    %v503 = vunpack.c.0.s8 %v502
    %v504 = vlaneseq
    %v505 = vshrl.u32 %v504, 7
    %v506 = vsub.s32 %v503, %v505
    %v507 = vrot.slane %v499, %v506
    %v508 = vcombine.high %v507, %v507
    %v510 = vunpack.c.l.s4 1966171168
    %v511 = vunpack.c.0.s8 %v510
    %v512 = vlaneseq
    %v513 = vshrl.u32 %v512, 7
    %v514 = vsub.s32 %v511, %v513
    %v515 = vrot.slane %v508, %v514
    %v517 = vmul.f32 %v497, %v515
    %v518 = vld [vmem:[%s2] sm:$0x1]
    %v519 = vmul.f32 %v490, %v517
    %v520 = vsub.f32 %v518, %v519
    %v522 = vlaneseq
    %v523 = vshrl.u32 %v522, 7
    %v524 = vsub.s32 0, %v523
    %v525 = vrot.slane %v520, %v524
    %v527 = vsel %vm480, %v517, %v525
    %528 = vst.msk [vmem:[%s3] sm:$0x3] %vm483, %v527
  $region21: #{generator_forward.15} parent=0 // pred_fallthru
    _
  // Predicated region
  $region22: #{generator_forward.15} parent=0 // pred_check
    _
  $region23: #{generator_forward.15} parent=0 // pred_check_branch
    %530 = sbr.rel (0) target = $region25
  $region24: #{generator_forward.15} parent=0 // pred_region
    _
  $region25: #{generator_forward.15} parent=0 // pred_fallthru
    _
  // Predicated region
  $region26: #{generator_forward.15} parent=0 // pred_check
    _
  $region27: #{generator_forward.15} parent=0 // pred_check_branch
    %532 = sbr.rel (0) target = $region29
  $region28: #{generator_forward.15} parent=0 // pred_region
    _
  $region29: #{generator_forward.15} parent=0 // pred_fallthru
    _

// kernel: generator_forward.16
$region0: #{generator_forward.16}
  #allocation0 [shape = 'u32[]', space=smem, size = 0x4, offset = 0x4, fixed_abs, tag = 'smem constant byte address 0x4 - core index']
  #allocation1 [shape = 'u32[144,128]{1,0:T(1,128)}', space=vmem, size = 0x12000, scoped, tag = 'internal scratch']
  %s0 = inlined_call_operand.vmem [shape: bf16[512,16], index: 0, kind: input, shape index: {}]
  %s1 = inlined_call_operand.vmem [shape: bf16[16,128], index: 1, kind: input, shape index: {}]
  %s2 = inlined_call_operand.vmem [shape: f32[2,16], index: 2, kind: input, shape index: {}]
  %s3 = inlined_call_operand.vmem [shape: bf16[512,128], index: 3, kind: output, shape index: {}]
  %s4 = sld [smem:[#allocation0]]
  $region22: #{generator_forward.16} parent=0
    _
  %s6 = ssub.s32 1, %s4
  %s7 = scalar_select 0, %s6, %s4
  // Predicated region
  $region2: #{generator_forward.16} parent=0 // pred_check
    _
  $region3: #{generator_forward.16} parent=0 // pred_check_branch
    %9 = sbr.rel (0) target = $region5
  $region4: #{generator_forward.16} parent=0 // pred_region
    _
  $region5: #{generator_forward.16} parent=0 // pred_fallthru
    _
  // Predicated region
  $region6: #{generator_forward.16} parent=0 // pred_check
    _
  $region7: #{generator_forward.16} parent=0 // pred_check_branch
    %11 = sbr.rel (0) target = $region9
  $region8: #{generator_forward.16} parent=0 // pred_region
    _
  $region9: #{generator_forward.16} parent=0 // pred_fallthru
    _
  // Predicated region
  $region10: #{generator_forward.16} parent=0 // pred_check
    _
  $region11: #{generator_forward.16} parent=0 // pred_check_branch
    %13 = sbr.rel (0) target = $region13
  $region12: #{generator_forward.16} parent=0 // pred_region
    _
  $region13: #{generator_forward.16} parent=0 // pred_fallthru
    _
  %v15 = vld [vmem:[%s2] sm:$0x3]
  %v16 = vld [vmem:[%s0] sm:$0xf]
  %v17 = vld [vmem:[%s0 + $0x4] sm:$0xf]
  %v18 = vld [vmem:[%s0 + $0x8] sm:$0xf]
  %v19 = vld [vmem:[%s0 + $0xc] sm:$0xf]
  %v20 = vld [vmem:[%s0 + $0x10] sm:$0xf]
  %v21 = vld [vmem:[%s0 + $0x14] sm:$0xf]
  %v22 = vld [vmem:[%s0 + $0x18] sm:$0xf]
  %v23 = vld [vmem:[%s0 + $0x1c] sm:$0xf]
  %v24 = vld [vmem:[%s0 + $0x20] sm:$0xf]
  %v25 = vld [vmem:[%s0 + $0x24] sm:$0xf]
  %v26 = vld [vmem:[%s0 + $0x28] sm:$0xf]
  %v27 = vld [vmem:[%s0 + $0x2c] sm:$0xf]
  %v28 = vld [vmem:[%s0 + $0x30] sm:$0xf]
  %v29 = vld [vmem:[%s0 + $0x34] sm:$0xf]
  %v30 = vld [vmem:[%s0 + $0x38] sm:$0xf]
  %v31 = vld [vmem:[%s0 + $0x3c] sm:$0xf]
  %v32 = vld [vmem:[%s0 + $0x40] sm:$0xf]
  %v33 = vld [vmem:[%s0 + $0x44] sm:$0xf]
  %v34 = vld [vmem:[%s0 + $0x48] sm:$0xf]
  %v35 = vld [vmem:[%s0 + $0x4c] sm:$0xf]
  %v36 = vld [vmem:[%s0 + $0x50] sm:$0xf]
  %v37 = vld [vmem:[%s0 + $0x54] sm:$0xf]
  %v38 = vld [vmem:[%s0 + $0x58] sm:$0xf]
  %v39 = vld [vmem:[%s0 + $0x5c] sm:$0xf]
  %v40 = vld [vmem:[%s0 + $0x60] sm:$0xf]
  %v41 = vld [vmem:[%s0 + $0x64] sm:$0xf]
  %v42 = vld [vmem:[%s0 + $0x68] sm:$0xf]
  %v43 = vld [vmem:[%s0 + $0x6c] sm:$0xf]
  %v44 = vld [vmem:[%s0 + $0x70] sm:$0xf]
  %v45 = vld [vmem:[%s0 + $0x74] sm:$0xf]
  %v46 = vld [vmem:[%s0 + $0x78] sm:$0xf]
  %v47 = vld [vmem:[%s0 + $0x7c] sm:$0xf]
  %v48 = vld [vmem:[%s0 + $0x80] sm:$0xf]
  %v49 = vld [vmem:[%s0 + $0x84] sm:$0xf]
  %v50 = vld [vmem:[%s0 + $0x88] sm:$0xf]
  %v51 = vld [vmem:[%s0 + $0x8c] sm:$0xf]
  %v52 = vld [vmem:[%s0 + $0x90] sm:$0xf]
  %v53 = vld [vmem:[%s0 + $0x94] sm:$0xf]
  %v54 = vld [vmem:[%s0 + $0x98] sm:$0xf]
  %v55 = vld [vmem:[%s0 + $0x9c] sm:$0xf]
  %v56 = vld [vmem:[%s0 + $0xa0] sm:$0xf]
  %v57 = vld [vmem:[%s0 + $0xa4] sm:$0xf]
  %v58 = vld [vmem:[%s0 + $0xa8] sm:$0xf]
  %v59 = vld [vmem:[%s0 + $0xac] sm:$0xf]
  %v60 = vld [vmem:[%s0 + $0xb0] sm:$0xf]
  %v61 = vld [vmem:[%s0 + $0xb4] sm:$0xf]
  %v62 = vld [vmem:[%s0 + $0xb8] sm:$0xf]
  %v63 = vld [vmem:[%s0 + $0xbc] sm:$0xf]
  %v64 = vld [vmem:[%s0 + $0xc0] sm:$0xf]
  %v65 = vld [vmem:[%s0 + $0xc4] sm:$0xf]
  %v66 = vld [vmem:[%s0 + $0xc8] sm:$0xf]
  %v67 = vld [vmem:[%s0 + $0xcc] sm:$0xf]
  %v68 = vld [vmem:[%s0 + $0xd0] sm:$0xf]
  %v69 = vld [vmem:[%s0 + $0xd4] sm:$0xf]
  %v70 = vld [vmem:[%s0 + $0xd8] sm:$0xf]
  %v71 = vld [vmem:[%s0 + $0xdc] sm:$0xf]
  %v72 = vld [vmem:[%s0 + $0xe0] sm:$0xf]
  %v73 = vld [vmem:[%s0 + $0xe4] sm:$0xf]
  %v74 = vld [vmem:[%s0 + $0xe8] sm:$0xf]
  %v75 = vld [vmem:[%s0 + $0xec] sm:$0xf]
  %v76 = vld [vmem:[%s0 + $0xf0] sm:$0xf]
  %v77 = vld [vmem:[%s0 + $0xf4] sm:$0xf]
  %v78 = vld [vmem:[%s0 + $0xf8] sm:$0xf]
  %v79 = vld [vmem:[%s0 + $0xfc] sm:$0xf]
  %v80 = vunpack.c.l.bf16 %v16
  %v81 = vunpack.c.l.bf16 %v17
  %v82 = vunpack.c.l.bf16 %v18
  %v83 = vunpack.c.l.bf16 %v19
  %v84 = vunpack.c.l.bf16 %v20
  %v85 = vunpack.c.l.bf16 %v21
  %v86 = vunpack.c.l.bf16 %v22
  %v87 = vunpack.c.l.bf16 %v23
  %v88 = vunpack.c.l.bf16 %v24
  %v89 = vunpack.c.l.bf16 %v25
  %v90 = vunpack.c.l.bf16 %v26
  %v91 = vunpack.c.l.bf16 %v27
  %v92 = vunpack.c.l.bf16 %v28
  %v93 = vunpack.c.l.bf16 %v29
  %v94 = vunpack.c.l.bf16 %v30
  %v95 = vunpack.c.l.bf16 %v31
  %v96 = vunpack.c.l.bf16 %v32
  %v97 = vunpack.c.l.bf16 %v33
  %v98 = vunpack.c.l.bf16 %v34
  %v99 = vunpack.c.l.bf16 %v35
  %v100 = vunpack.c.l.bf16 %v36
  %v101 = vunpack.c.l.bf16 %v37
  %v102 = vunpack.c.l.bf16 %v38
  %v103 = vunpack.c.l.bf16 %v39
  %v104 = vunpack.c.l.bf16 %v40
  %v105 = vunpack.c.l.bf16 %v41
  %v106 = vunpack.c.l.bf16 %v42
  %v107 = vunpack.c.l.bf16 %v43
  %v108 = vunpack.c.l.bf16 %v44
  %v109 = vunpack.c.l.bf16 %v45
  %v110 = vunpack.c.l.bf16 %v46
  %v111 = vunpack.c.l.bf16 %v47
  %v112 = vunpack.c.l.bf16 %v48
  %v113 = vunpack.c.l.bf16 %v49
  %v114 = vunpack.c.l.bf16 %v50
  %v115 = vunpack.c.l.bf16 %v51
  %v116 = vunpack.c.l.bf16 %v52
  %v117 = vunpack.c.l.bf16 %v53
  %v118 = vunpack.c.l.bf16 %v54
  %v119 = vunpack.c.l.bf16 %v55
  %v120 = vunpack.c.l.bf16 %v56
  %v121 = vunpack.c.l.bf16 %v57
  %v122 = vunpack.c.l.bf16 %v58
  %v123 = vunpack.c.l.bf16 %v59
  %v124 = vunpack.c.l.bf16 %v60
  %v125 = vunpack.c.l.bf16 %v61
  %v126 = vunpack.c.l.bf16 %v62
  %v127 = vunpack.c.l.bf16 %v63
  %v128 = vunpack.c.l.bf16 %v64
  %v129 = vunpack.c.l.bf16 %v65
  %v130 = vunpack.c.l.bf16 %v66
  %v131 = vunpack.c.l.bf16 %v67
  %v132 = vunpack.c.l.bf16 %v68
  %v133 = vunpack.c.l.bf16 %v69
  %v134 = vunpack.c.l.bf16 %v70
  %v135 = vunpack.c.l.bf16 %v71
  %v136 = vunpack.c.l.bf16 %v72
  %v137 = vunpack.c.l.bf16 %v73
  %v138 = vunpack.c.l.bf16 %v74
  %v139 = vunpack.c.l.bf16 %v75
  %v140 = vunpack.c.l.bf16 %v76
  %v141 = vunpack.c.l.bf16 %v77
  %v142 = vunpack.c.l.bf16 %v78
  %v143 = vunpack.c.l.bf16 %v79
  %v144 = vlaneseq
  %v145 = vshrl.u32 %v144, 7
  %v146 = vsub.s32 0, %v145
  %v147 = vrot.slane %v15, %v146
  %v148 = vmul.f32 %v80, %v147
  %v149 = vmul.f32 %v81, %v147
  %v150 = vmul.f32 %v82, %v147
  %v151 = vmul.f32 %v83, %v147
  %v152 = vmul.f32 %v84, %v147
  %v153 = vmul.f32 %v85, %v147
  %v154 = vmul.f32 %v86, %v147
  %v155 = vmul.f32 %v87, %v147
  %v156 = vmul.f32 %v88, %v147
  %v157 = vmul.f32 %v89, %v147
  %v158 = vmul.f32 %v90, %v147
  %v159 = vmul.f32 %v91, %v147
  %v160 = vmul.f32 %v92, %v147
  %v161 = vmul.f32 %v93, %v147
  %v162 = vmul.f32 %v94, %v147
  %v163 = vmul.f32 %v95, %v147
  %v164 = vmul.f32 %v96, %v147
  %v165 = vmul.f32 %v97, %v147
  %v166 = vmul.f32 %v98, %v147
  %v167 = vmul.f32 %v99, %v147
  %v168 = vmul.f32 %v100, %v147
  %v169 = vmul.f32 %v101, %v147
  %v170 = vmul.f32 %v102, %v147
  %v171 = vmul.f32 %v103, %v147
  %v172 = vmul.f32 %v104, %v147
  %v173 = vmul.f32 %v105, %v147
  %v174 = vmul.f32 %v106, %v147
  %v175 = vmul.f32 %v107, %v147
  %v176 = vmul.f32 %v108, %v147
  %v177 = vmul.f32 %v109, %v147
  %v178 = vmul.f32 %v110, %v147
  %v179 = vmul.f32 %v111, %v147
  %v180 = vmul.f32 %v112, %v147
  %v181 = vmul.f32 %v113, %v147
  %v182 = vmul.f32 %v114, %v147
  %v183 = vmul.f32 %v115, %v147
  %v184 = vmul.f32 %v116, %v147
  %v185 = vmul.f32 %v117, %v147
  %v186 = vmul.f32 %v118, %v147
  %v187 = vmul.f32 %v119, %v147
  %v188 = vmul.f32 %v120, %v147
  %v189 = vmul.f32 %v121, %v147
  %v190 = vmul.f32 %v122, %v147
  %v191 = vmul.f32 %v123, %v147
  %v192 = vmul.f32 %v124, %v147
  %v193 = vmul.f32 %v125, %v147
  %v194 = vmul.f32 %v126, %v147
  %v195 = vmul.f32 %v127, %v147
  %v196 = vmul.f32 %v128, %v147
  %v197 = vmul.f32 %v129, %v147
  %v198 = vmul.f32 %v130, %v147
  %v199 = vmul.f32 %v131, %v147
  %v200 = vmul.f32 %v132, %v147
  %v201 = vmul.f32 %v133, %v147
  %v202 = vmul.f32 %v134, %v147
  %v203 = vmul.f32 %v135, %v147
  %v204 = vmul.f32 %v136, %v147
  %v205 = vmul.f32 %v137, %v147
  %v206 = vmul.f32 %v138, %v147
  %v207 = vmul.f32 %v139, %v147
  %v208 = vmul.f32 %v140, %v147
  %v209 = vmul.f32 %v141, %v147
  %v210 = vmul.f32 %v142, %v147
  %v211 = vmul.f32 %v143, %v147
  %v212 = vlaneseq
  %v213 = vshrl.u32 %v212, 7
  %v214 = vsub.s32 1, %v213
  %v215 = vrot.slane %v15, %v214
  %v216 = vadd.f32 %v148, %v215
  %v217 = vadd.f32 %v149, %v215
  %v218 = vadd.f32 %v150, %v215
  %v219 = vadd.f32 %v151, %v215
  %v220 = vadd.f32 %v152, %v215
  %v221 = vadd.f32 %v153, %v215
  %v222 = vadd.f32 %v154, %v215
  %v223 = vadd.f32 %v155, %v215
  %v224 = vadd.f32 %v156, %v215
  %v225 = vadd.f32 %v157, %v215
  %v226 = vadd.f32 %v158, %v215
  %v227 = vadd.f32 %v159, %v215
  %v228 = vadd.f32 %v160, %v215
  %v229 = vadd.f32 %v161, %v215
  %v230 = vadd.f32 %v162, %v215
  %v231 = vadd.f32 %v163, %v215
  %v232 = vadd.f32 %v164, %v215
  %v233 = vadd.f32 %v165, %v215
  %v234 = vadd.f32 %v166, %v215
  %v235 = vadd.f32 %v167, %v215
  %v236 = vadd.f32 %v168, %v215
  %v237 = vadd.f32 %v169, %v215
  %v238 = vadd.f32 %v170, %v215
  %v239 = vadd.f32 %v171, %v215
  %v240 = vadd.f32 %v172, %v215
  %v241 = vadd.f32 %v173, %v215
  %v242 = vadd.f32 %v174, %v215
  %v243 = vadd.f32 %v175, %v215
  %v244 = vadd.f32 %v176, %v215
  %v245 = vadd.f32 %v177, %v215
  %v246 = vadd.f32 %v178, %v215
  %v247 = vadd.f32 %v179, %v215
  %v248 = vadd.f32 %v180, %v215
  %v249 = vadd.f32 %v181, %v215
  %v250 = vadd.f32 %v182, %v215
  %v251 = vadd.f32 %v183, %v215
  %v252 = vadd.f32 %v184, %v215
  %v253 = vadd.f32 %v185, %v215
  %v254 = vadd.f32 %v186, %v215
  %v255 = vadd.f32 %v187, %v215
  %v256 = vadd.f32 %v188, %v215
  %v257 = vadd.f32 %v189, %v215
  %v258 = vadd.f32 %v190, %v215
  %v259 = vadd.f32 %v191, %v215
  %v260 = vadd.f32 %v192, %v215
  %v261 = vadd.f32 %v193, %v215
  %v262 = vadd.f32 %v194, %v215
  %v263 = vadd.f32 %v195, %v215
  %v264 = vadd.f32 %v196, %v215
  %v265 = vadd.f32 %v197, %v215
  %v266 = vadd.f32 %v198, %v215
  %v267 = vadd.f32 %v199, %v215
  %v268 = vadd.f32 %v200, %v215
  %v269 = vadd.f32 %v201, %v215
  %v270 = vadd.f32 %v202, %v215
  %v271 = vadd.f32 %v203, %v215
  %v272 = vadd.f32 %v204, %v215
  %v273 = vadd.f32 %v205, %v215
  %v274 = vadd.f32 %v206, %v215
  %v275 = vadd.f32 %v207, %v215
  %v276 = vadd.f32 %v208, %v215
  %v277 = vadd.f32 %v209, %v215
  %v278 = vadd.f32 %v210, %v215
  %v279 = vadd.f32 %v211, %v215
  %vm280 = vcmp.ge.f32.partialorder %v216, 0.0
  %vm281 = vcmp.ge.f32.partialorder %v217, 0.0
  %vm282 = vcmp.ge.f32.partialorder %v218, 0.0
  %vm283 = vcmp.ge.f32.partialorder %v219, 0.0
  %vm284 = vcmp.ge.f32.partialorder %v220, 0.0
  %vm285 = vcmp.ge.f32.partialorder %v221, 0.0
  %vm286 = vcmp.ge.f32.partialorder %v222, 0.0
  %vm287 = vcmp.ge.f32.partialorder %v223, 0.0
  %vm288 = vcmp.ge.f32.partialorder %v224, 0.0
  %vm289 = vcmp.ge.f32.partialorder %v225, 0.0
  %vm290 = vcmp.ge.f32.partialorder %v226, 0.0
  %vm291 = vcmp.ge.f32.partialorder %v227, 0.0
  %vm292 = vcmp.ge.f32.partialorder %v228, 0.0
  %vm293 = vcmp.ge.f32.partialorder %v229, 0.0
  %vm294 = vcmp.ge.f32.partialorder %v230, 0.0
  %vm295 = vcmp.ge.f32.partialorder %v231, 0.0
  %vm296 = vcmp.ge.f32.partialorder %v232, 0.0
  %vm297 = vcmp.ge.f32.partialorder %v233, 0.0
  %vm298 = vcmp.ge.f32.partialorder %v234, 0.0
  %vm299 = vcmp.ge.f32.partialorder %v235, 0.0
  %vm300 = vcmp.ge.f32.partialorder %v236, 0.0
  %vm301 = vcmp.ge.f32.partialorder %v237, 0.0
  %vm302 = vcmp.ge.f32.partialorder %v238, 0.0
  %vm303 = vcmp.ge.f32.partialorder %v239, 0.0
  %vm304 = vcmp.ge.f32.partialorder %v240, 0.0
  %vm305 = vcmp.ge.f32.partialorder %v241, 0.0
  %vm306 = vcmp.ge.f32.partialorder %v242, 0.0
  %vm307 = vcmp.ge.f32.partialorder %v243, 0.0
  %vm308 = vcmp.ge.f32.partialorder %v244, 0.0
  %vm309 = vcmp.ge.f32.partialorder %v245, 0.0
  %vm310 = vcmp.ge.f32.partialorder %v246, 0.0
  %vm311 = vcmp.ge.f32.partialorder %v247, 0.0
  %vm312 = vcmp.ge.f32.partialorder %v248, 0.0
  %vm313 = vcmp.ge.f32.partialorder %v249, 0.0
  %vm314 = vcmp.ge.f32.partialorder %v250, 0.0
  %vm315 = vcmp.ge.f32.partialorder %v251, 0.0
  %vm316 = vcmp.ge.f32.partialorder %v252, 0.0
  %vm317 = vcmp.ge.f32.partialorder %v253, 0.0
  %vm318 = vcmp.ge.f32.partialorder %v254, 0.0
  %vm319 = vcmp.ge.f32.partialorder %v255, 0.0
  %vm320 = vcmp.ge.f32.partialorder %v256, 0.0
  %vm321 = vcmp.ge.f32.partialorder %v257, 0.0
  %vm322 = vcmp.ge.f32.partialorder %v258, 0.0
  %vm323 = vcmp.ge.f32.partialorder %v259, 0.0
  %vm324 = vcmp.ge.f32.partialorder %v260, 0.0
  %vm325 = vcmp.ge.f32.partialorder %v261, 0.0
  %vm326 = vcmp.ge.f32.partialorder %v262, 0.0
  %vm327 = vcmp.ge.f32.partialorder %v263, 0.0
  %vm328 = vcmp.ge.f32.partialorder %v264, 0.0
  %vm329 = vcmp.ge.f32.partialorder %v265, 0.0
  %vm330 = vcmp.ge.f32.partialorder %v266, 0.0
  %vm331 = vcmp.ge.f32.partialorder %v267, 0.0
  %vm332 = vcmp.ge.f32.partialorder %v268, 0.0
  %vm333 = vcmp.ge.f32.partialorder %v269, 0.0
  %vm334 = vcmp.ge.f32.partialorder %v270, 0.0
  %vm335 = vcmp.ge.f32.partialorder %v271, 0.0
  %vm336 = vcmp.ge.f32.partialorder %v272, 0.0
  %vm337 = vcmp.ge.f32.partialorder %v273, 0.0
  %vm338 = vcmp.ge.f32.partialorder %v274, 0.0
  %vm339 = vcmp.ge.f32.partialorder %v275, 0.0
  %vm340 = vcmp.ge.f32.partialorder %v276, 0.0
  %vm341 = vcmp.ge.f32.partialorder %v277, 0.0
  %vm342 = vcmp.ge.f32.partialorder %v278, 0.0
  %vm343 = vcmp.ge.f32.partialorder %v279, 0.0
  %v344 = vmul.f32 %v216, 0.01
  %v345 = vmul.f32 %v217, 0.01
  %v346 = vmul.f32 %v218, 0.01
  %v347 = vmul.f32 %v219, 0.01
  %v348 = vmul.f32 %v220, 0.01
  %v349 = vmul.f32 %v221, 0.01
  %v350 = vmul.f32 %v222, 0.01
  %v351 = vmul.f32 %v223, 0.01
  %v352 = vmul.f32 %v224, 0.01
  %v353 = vmul.f32 %v225, 0.01
  %v354 = vmul.f32 %v226, 0.01
  %v355 = vmul.f32 %v227, 0.01
  %v356 = vmul.f32 %v228, 0.01
  %v357 = vmul.f32 %v229, 0.01
  %v358 = vmul.f32 %v230, 0.01
  %v359 = vmul.f32 %v231, 0.01
  %v360 = vmul.f32 %v232, 0.01
  %v361 = vmul.f32 %v233, 0.01
  %v362 = vmul.f32 %v234, 0.01
  %v363 = vmul.f32 %v235, 0.01
  %v364 = vmul.f32 %v236, 0.01
  %v365 = vmul.f32 %v237, 0.01
  %v366 = vmul.f32 %v238, 0.01
  %v367 = vmul.f32 %v239, 0.01
  %v368 = vmul.f32 %v240, 0.01
  %v369 = vmul.f32 %v241, 0.01
  %v370 = vmul.f32 %v242, 0.01
  %v371 = vmul.f32 %v243, 0.01
  %v372 = vmul.f32 %v244, 0.01
  %v373 = vmul.f32 %v245, 0.01
  %v374 = vmul.f32 %v246, 0.01
  %v375 = vmul.f32 %v247, 0.01
  %v376 = vmul.f32 %v248, 0.01
  %v377 = vmul.f32 %v249, 0.01
  %v378 = vmul.f32 %v250, 0.01
  %v379 = vmul.f32 %v251, 0.01
  %v380 = vmul.f32 %v252, 0.01
  %v381 = vmul.f32 %v253, 0.01
  %v382 = vmul.f32 %v254, 0.01
  %v383 = vmul.f32 %v255, 0.01
  %v384 = vmul.f32 %v256, 0.01
  %v385 = vmul.f32 %v257, 0.01
  %v386 = vmul.f32 %v258, 0.01
  %v387 = vmul.f32 %v259, 0.01
  %v388 = vmul.f32 %v260, 0.01
  %v389 = vmul.f32 %v261, 0.01
  %v390 = vmul.f32 %v262, 0.01
  %v391 = vmul.f32 %v263, 0.01
  %v392 = vmul.f32 %v264, 0.01
  %v393 = vmul.f32 %v265, 0.01
  %v394 = vmul.f32 %v266, 0.01
  %v395 = vmul.f32 %v267, 0.01
  %v396 = vmul.f32 %v268, 0.01
  %v397 = vmul.f32 %v269, 0.01
  %v398 = vmul.f32 %v270, 0.01
  %v399 = vmul.f32 %v271, 0.01
  %v400 = vmul.f32 %v272, 0.01
  %v401 = vmul.f32 %v273, 0.01
  %v402 = vmul.f32 %v274, 0.01
  %v403 = vmul.f32 %v275, 0.01
  %v404 = vmul.f32 %v276, 0.01
  %v405 = vmul.f32 %v277, 0.01
  %v406 = vmul.f32 %v278, 0.01
  %v407 = vmul.f32 %v279, 0.01
  %v408 = vsel %vm280, %v216, %v344
  %v409 = vsel %vm281, %v217, %v345
  %v410 = vsel %vm282, %v218, %v346
  %v411 = vsel %vm283, %v219, %v347
  %v412 = vsel %vm284, %v220, %v348
  %v413 = vsel %vm285, %v221, %v349
  %v414 = vsel %vm286, %v222, %v350
  %v415 = vsel %vm287, %v223, %v351
  %v416 = vsel %vm288, %v224, %v352
  %v417 = vsel %vm289, %v225, %v353
  %v418 = vsel %vm290, %v226, %v354
  %v419 = vsel %vm291, %v227, %v355
  %v420 = vsel %vm292, %v228, %v356
  %v421 = vsel %vm293, %v229, %v357
  %v422 = vsel %vm294, %v230, %v358
  %v423 = vsel %vm295, %v231, %v359
  %v424 = vsel %vm296, %v232, %v360
  %v425 = vsel %vm297, %v233, %v361
  %v426 = vsel %vm298, %v234, %v362
  %v427 = vsel %vm299, %v235, %v363
  %v428 = vsel %vm300, %v236, %v364
  %v429 = vsel %vm301, %v237, %v365
  %v430 = vsel %vm302, %v238, %v366
  %v431 = vsel %vm303, %v239, %v367
  %v432 = vsel %vm304, %v240, %v368
  %v433 = vsel %vm305, %v241, %v369
  %v434 = vsel %vm306, %v242, %v370
  %v435 = vsel %vm307, %v243, %v371
  %v436 = vsel %vm308, %v244, %v372
  %v437 = vsel %vm309, %v245, %v373
  %v438 = vsel %vm310, %v246, %v374
  %v439 = vsel %vm311, %v247, %v375
  %v440 = vsel %vm312, %v248, %v376
  %v441 = vsel %vm313, %v249, %v377
  %v442 = vsel %vm314, %v250, %v378
  %v443 = vsel %vm315, %v251, %v379
  %v444 = vsel %vm316, %v252, %v380
  %v445 = vsel %vm317, %v253, %v381
  %v446 = vsel %vm318, %v254, %v382
  %v447 = vsel %vm319, %v255, %v383
  %v448 = vsel %vm320, %v256, %v384
  %v449 = vsel %vm321, %v257, %v385
  %v450 = vsel %vm322, %v258, %v386
  %v451 = vsel %vm323, %v259, %v387
  %v452 = vsel %vm324, %v260, %v388
  %v453 = vsel %vm325, %v261, %v389
  %v454 = vsel %vm326, %v262, %v390
  %v455 = vsel %vm327, %v263, %v391
  %v456 = vsel %vm328, %v264, %v392
  %v457 = vsel %vm329, %v265, %v393
  %v458 = vsel %vm330, %v266, %v394
  %v459 = vsel %vm331, %v267, %v395
  %v460 = vsel %vm332, %v268, %v396
  %v461 = vsel %vm333, %v269, %v397
  %v462 = vsel %vm334, %v270, %v398
  %v463 = vsel %vm335, %v271, %v399
  %v464 = vsel %vm336, %v272, %v400
  %v465 = vsel %vm337, %v273, %v401
  %v466 = vsel %vm338, %v274, %v402
  %v467 = vsel %vm339, %v275, %v403
  %v468 = vsel %vm340, %v276, %v404
  %v469 = vsel %vm341, %v277, %v405
  %v470 = vsel %vm342, %v278, %v406
  %v471 = vsel %vm343, %v279, %v407
  %v472 = vpack.c.bf16 %v409, %v408
  %v473 = vpack.c.bf16 %v411, %v410
  %v474 = vpack.c.bf16 %v413, %v412
  %v475 = vpack.c.bf16 %v415, %v414
  %v476 = vpack.c.bf16 %v417, %v416
  %v477 = vpack.c.bf16 %v419, %v418
  %v478 = vpack.c.bf16 %v421, %v420
  %v479 = vpack.c.bf16 %v423, %v422
  %v480 = vpack.c.bf16 %v425, %v424
  %v481 = vpack.c.bf16 %v427, %v426
  %v482 = vpack.c.bf16 %v429, %v428
  %v483 = vpack.c.bf16 %v431, %v430
  %v484 = vpack.c.bf16 %v433, %v432
  %v485 = vpack.c.bf16 %v435, %v434
  %v486 = vpack.c.bf16 %v437, %v436
  %v487 = vpack.c.bf16 %v439, %v438
  %v488 = vpack.c.bf16 %v441, %v440
  %v489 = vpack.c.bf16 %v443, %v442
  %v490 = vpack.c.bf16 %v445, %v444
  %v491 = vpack.c.bf16 %v447, %v446
  %v492 = vpack.c.bf16 %v449, %v448
  %v493 = vpack.c.bf16 %v451, %v450
  %v494 = vpack.c.bf16 %v453, %v452
  %v495 = vpack.c.bf16 %v455, %v454
  %v496 = vpack.c.bf16 %v457, %v456
  %v497 = vpack.c.bf16 %v459, %v458
  %v498 = vpack.c.bf16 %v461, %v460
  %v499 = vpack.c.bf16 %v463, %v462
  %v500 = vpack.c.bf16 %v465, %v464
  %v501 = vpack.c.bf16 %v467, %v466
  %v502 = vpack.c.bf16 %v469, %v468
  %v503 = vpack.c.bf16 %v471, %v470
  %v504 = vld [vmem:[%s1] sm:$0xf]
  %v505 = vld [vmem:[%s1 + $0x4] sm:$0xf]
  %v508 = vunpack.c.l.b16 %v504
  %v509 = vunpack.c.l.b16 %v505
  %v510 = vpack.c.b16 %v509, %v508
  %vm512 = vcmask 130048
  %v514 = vsel %vm512, %v472, 0
  %v517 = vsel %vm512, %v473, 0
  %v520 = vsel %vm512, %v474, 0
  %v523 = vsel %vm512, %v475, 0
  %v526 = vsel %vm512, %v476, 0
  %v529 = vsel %vm512, %v477, 0
  %v532 = vsel %vm512, %v478, 0
  %v535 = vsel %vm512, %v479, 0
  %v538 = vsel %vm512, %v480, 0
  %v541 = vsel %vm512, %v481, 0
  %v544 = vsel %vm512, %v482, 0
  %v547 = vsel %vm512, %v483, 0
  %v550 = vsel %vm512, %v484, 0
  %v553 = vsel %vm512, %v485, 0
  %v556 = vsel %vm512, %v486, 0
  %v559 = vsel %vm512, %v487, 0
  %v562 = vsel %vm512, %v488, 0
  %v565 = vsel %vm512, %v489, 0
  %v568 = vsel %vm512, %v490, 0
  %v571 = vsel %vm512, %v491, 0
  %v574 = vsel %vm512, %v492, 0
  %v577 = vsel %vm512, %v493, 0
  %v580 = vsel %vm512, %v494, 0
  %v583 = vsel %vm512, %v495, 0
  %v586 = vsel %vm512, %v496, 0
  %v589 = vsel %vm512, %v497, 0
  %v592 = vsel %vm512, %v498, 0
  %v595 = vsel %vm512, %v499, 0
  %v598 = vsel %vm512, %v500, 0
  %v601 = vsel %vm512, %v501, 0
  %v604 = vsel %vm512, %v502, 0
  %v607 = vsel %vm512, %v503, 0
  %609 = vmatprep.subr.bf16.mxu0 0
  %610 = vmatpush1.bf16.msra.mxu0 0
  %611 = vmatprep.subr.bf16.mxu0 0
  %612 = vmatpush1.bf16.msra.mxu0 0
  %613 = vmatprep.subr.bf16.mxu0 0
  %614 = vmatpush1.bf16.msra.mxu0 0
  %615 = vmatprep.subr.bf16.mxu0 0
  %616 = vmatpush1.bf16.msra.mxu0 0
  %617 = vmatprep.subr.bf16.mxu0 0
  %618 = vmatpush1.bf16.msra.mxu0 0
  %619 = vmatprep.subr.bf16.mxu0 0
  %620 = vmatpush1.bf16.msra.mxu0 0
  %621 = vmatprep.subr.bf16.mxu0 0
  %622 = vmatpush1.bf16.msra.mxu0 0
  %623 = vmatprep.subr.bf16.mxu0 0
  %624 = vmatpush1.bf16.msra.mxu0 %v510
  %625 = vmatprep.subr.bf16.mxu0 0
  %626 = vmatpush2.bf16.msra.mxu0 0
  %627 = vmatprep.subr.bf16.mxu0 0
  %628 = vmatpush2.bf16.msra.mxu0 0
  %629 = vmatprep.subr.bf16.mxu0 0
  %630 = vmatpush2.bf16.msra.mxu0 0
  %631 = vmatprep.subr.bf16.mxu0 0
  %632 = vmatpush2.bf16.msra.mxu0 0
  %633 = vmatprep.subr.bf16.mxu0 0
  %634 = vmatpush2.bf16.msra.mxu0 0
  %635 = vmatprep.subr.bf16.mxu0 0
  %636 = vmatpush2.bf16.msra.mxu0 0
  %637 = vmatprep.subr.bf16.mxu0 0
  %638 = vmatpush2.bf16.msra.mxu0 0
  %639 = vmatprep.subr.bf16.mxu0 0
  %640 = vmatpush2.bf16.msra.mxu0 0
  %641 = vmatprep.mubr.bf16.mxu0 0
  %642 = vmatmul.mubr.bf16.gmra.mxu0 %v514
  %v643 = vpop.f32.mrf.mxu0
  %v644 = vadd.f32 0.0, %v643
  %v645 = vpop.f32.mrf.mxu0
  %v646 = vpop.f32.mrf.mxu0
  %v647 = vadd.f32 0.0, %v646
  %v648 = vpop.f32.mrf.mxu0
  %649 = vmatprep.mubr.bf16.mxu0 0
  %650 = vmatmul.mubr.bf16.gmra.mxu0 %v517
  %v651 = vpop.f32.mrf.mxu0
  %v652 = vadd.f32 0.0, %v651
  %v653 = vpop.f32.mrf.mxu0
  %v654 = vpop.f32.mrf.mxu0
  %v655 = vadd.f32 0.0, %v654
  %v656 = vpop.f32.mrf.mxu0
  %657 = vmatprep.mubr.bf16.mxu0 0
  %658 = vmatmul.mubr.bf16.gmra.mxu0 %v520
  %v659 = vpop.f32.mrf.mxu0
  %v660 = vadd.f32 0.0, %v659
  %v661 = vpop.f32.mrf.mxu0
  %v662 = vpop.f32.mrf.mxu0
  %v663 = vadd.f32 0.0, %v662
  %v664 = vpop.f32.mrf.mxu0
  %665 = vmatprep.mubr.bf16.mxu0 0
  %666 = vmatmul.mubr.bf16.gmra.mxu0 %v523
  %v667 = vpop.f32.mrf.mxu0
  %v668 = vadd.f32 0.0, %v667
  %v669 = vpop.f32.mrf.mxu0
  %v670 = vpop.f32.mrf.mxu0
  %v671 = vadd.f32 0.0, %v670
  %v672 = vpop.f32.mrf.mxu0
  %673 = vmatprep.mubr.bf16.mxu0 0
  %674 = vmatmul.mubr.bf16.gmra.mxu0 %v526
  %v675 = vpop.f32.mrf.mxu0
  %v676 = vadd.f32 0.0, %v675
  %v677 = vpop.f32.mrf.mxu0
  %v678 = vpop.f32.mrf.mxu0
  %v679 = vadd.f32 0.0, %v678
  %v680 = vpop.f32.mrf.mxu0
  %681 = vmatprep.mubr.bf16.mxu0 0
  %682 = vmatmul.mubr.bf16.gmra.mxu0 %v529
  %v683 = vpop.f32.mrf.mxu0
  %v684 = vadd.f32 0.0, %v683
  %v685 = vpop.f32.mrf.mxu0
  %v686 = vpop.f32.mrf.mxu0
  %v687 = vadd.f32 0.0, %v686
  %v688 = vpop.f32.mrf.mxu0
  %689 = vmatprep.mubr.bf16.mxu0 0
  %690 = vmatmul.mubr.bf16.gmra.mxu0 %v532
  %v691 = vpop.f32.mrf.mxu0
  %v692 = vadd.f32 0.0, %v691
  %v693 = vpop.f32.mrf.mxu0
  %v694 = vpop.f32.mrf.mxu0
  %v695 = vadd.f32 0.0, %v694
  %v696 = vpop.f32.mrf.mxu0
  %697 = vmatprep.mubr.bf16.mxu0 0
  %698 = vmatmul.mubr.bf16.gmra.mxu0 %v535
  %v699 = vpop.f32.mrf.mxu0
  %v700 = vadd.f32 0.0, %v699
  %v701 = vpop.f32.mrf.mxu0
  %v702 = vpop.f32.mrf.mxu0
  %v703 = vadd.f32 0.0, %v702
  %v704 = vpop.f32.mrf.mxu0
  %705 = vmatprep.mubr.bf16.mxu0 0
  %706 = vmatmul.mubr.bf16.gmra.mxu0 %v538
  %v707 = vpop.f32.mrf.mxu0
  %v708 = vadd.f32 0.0, %v707
  %v709 = vpop.f32.mrf.mxu0
  %v710 = vpop.f32.mrf.mxu0
  %v711 = vadd.f32 0.0, %v710
  %v712 = vpop.f32.mrf.mxu0
  %713 = vmatprep.mubr.bf16.mxu0 0
  %714 = vmatmul.mubr.bf16.gmra.mxu0 %v541
  %v715 = vpop.f32.mrf.mxu0
  %v716 = vadd.f32 0.0, %v715
  %v717 = vpop.f32.mrf.mxu0
  %v718 = vpop.f32.mrf.mxu0
  %v719 = vadd.f32 0.0, %v718
  %v720 = vpop.f32.mrf.mxu0
  %721 = vmatprep.mubr.bf16.mxu0 0
  %722 = vmatmul.mubr.bf16.gmra.mxu0 %v544
  %v723 = vpop.f32.mrf.mxu0
  %v724 = vadd.f32 0.0, %v723
  %v725 = vpop.f32.mrf.mxu0
  %v726 = vpop.f32.mrf.mxu0
  %v727 = vadd.f32 0.0, %v726
  %v728 = vpop.f32.mrf.mxu0
  %729 = vmatprep.mubr.bf16.mxu0 0
  %730 = vmatmul.mubr.bf16.gmra.mxu0 %v547
  %v731 = vpop.f32.mrf.mxu0
  %v732 = vadd.f32 0.0, %v731
  %v733 = vpop.f32.mrf.mxu0
  %v734 = vpop.f32.mrf.mxu0
  %v735 = vadd.f32 0.0, %v734
  %v736 = vpop.f32.mrf.mxu0
  %737 = vmatprep.mubr.bf16.mxu0 0
  %738 = vmatmul.mubr.bf16.gmra.mxu0 %v550
  %v739 = vpop.f32.mrf.mxu0
  %v740 = vadd.f32 0.0, %v739
  %v741 = vpop.f32.mrf.mxu0
  %v742 = vpop.f32.mrf.mxu0
  %v743 = vadd.f32 0.0, %v742
  %v744 = vpop.f32.mrf.mxu0
  %745 = vmatprep.mubr.bf16.mxu0 0
  %746 = vmatmul.mubr.bf16.gmra.mxu0 %v553
  %v747 = vpop.f32.mrf.mxu0
  %v748 = vadd.f32 0.0, %v747
  %v749 = vpop.f32.mrf.mxu0
  %v750 = vpop.f32.mrf.mxu0
  %v751 = vadd.f32 0.0, %v750
  %v752 = vpop.f32.mrf.mxu0
  %753 = vmatprep.mubr.bf16.mxu0 0
  %754 = vmatmul.mubr.bf16.gmra.mxu0 %v556
  %v755 = vpop.f32.mrf.mxu0
  %v756 = vadd.f32 0.0, %v755
  %v757 = vpop.f32.mrf.mxu0
  %v758 = vpop.f32.mrf.mxu0
  %v759 = vadd.f32 0.0, %v758
  %v760 = vpop.f32.mrf.mxu0
  %761 = vmatprep.mubr.bf16.mxu0 0
  %762 = vmatmul.mubr.bf16.gmra.mxu0 %v559
  %v763 = vpop.f32.mrf.mxu0
  %v764 = vadd.f32 0.0, %v763
  %v765 = vpop.f32.mrf.mxu0
  %v766 = vpop.f32.mrf.mxu0
  %v767 = vadd.f32 0.0, %v766
  %v768 = vpop.f32.mrf.mxu0
  %769 = vmatprep.mubr.bf16.mxu0 0
  %770 = vmatmul.mubr.bf16.gmra.mxu0 %v562
  %v771 = vpop.f32.mrf.mxu0
  %v772 = vadd.f32 0.0, %v771
  %v773 = vpop.f32.mrf.mxu0
  %v774 = vpop.f32.mrf.mxu0
  %v775 = vadd.f32 0.0, %v774
  %v776 = vpop.f32.mrf.mxu0
  %777 = vmatprep.mubr.bf16.mxu0 0
  %778 = vmatmul.mubr.bf16.gmra.mxu0 %v565
  %v779 = vpop.f32.mrf.mxu0
  %v780 = vadd.f32 0.0, %v779
  %v781 = vpop.f32.mrf.mxu0
  %v782 = vpop.f32.mrf.mxu0
  %v783 = vadd.f32 0.0, %v782
  %v784 = vpop.f32.mrf.mxu0
  %785 = vmatprep.mubr.bf16.mxu0 0
  %786 = vmatmul.mubr.bf16.gmra.mxu0 %v568
  %v787 = vpop.f32.mrf.mxu0
  %v788 = vadd.f32 0.0, %v787
  %v789 = vpop.f32.mrf.mxu0
  %v790 = vpop.f32.mrf.mxu0
  %v791 = vadd.f32 0.0, %v790
  %v792 = vpop.f32.mrf.mxu0
  %793 = vmatprep.mubr.bf16.mxu0 0
  %794 = vmatmul.mubr.bf16.gmra.mxu0 %v571
  %v795 = vpop.f32.mrf.mxu0
  %v796 = vadd.f32 0.0, %v795
  %v797 = vpop.f32.mrf.mxu0
  %v798 = vpop.f32.mrf.mxu0
  %v799 = vadd.f32 0.0, %v798
  %v800 = vpop.f32.mrf.mxu0
  %801 = vmatprep.mubr.bf16.mxu0 0
  %802 = vmatmul.mubr.bf16.gmra.mxu0 %v574
  %v803 = vpop.f32.mrf.mxu0
  %v804 = vadd.f32 0.0, %v803
  %v805 = vpop.f32.mrf.mxu0
  %v806 = vpop.f32.mrf.mxu0
  %v807 = vadd.f32 0.0, %v806
  %v808 = vpop.f32.mrf.mxu0
  %809 = vmatprep.mubr.bf16.mxu0 0
  %810 = vmatmul.mubr.bf16.gmra.mxu0 %v577
  %v811 = vpop.f32.mrf.mxu0
  %v812 = vadd.f32 0.0, %v811
  %v813 = vpop.f32.mrf.mxu0
  %v814 = vpop.f32.mrf.mxu0
  %v815 = vadd.f32 0.0, %v814
  %v816 = vpop.f32.mrf.mxu0
  %817 = vmatprep.mubr.bf16.mxu0 0
  %818 = vmatmul.mubr.bf16.gmra.mxu0 %v580
  %v819 = vpop.f32.mrf.mxu0
  %v820 = vadd.f32 0.0, %v819
  %v821 = vpop.f32.mrf.mxu0
  %v822 = vpop.f32.mrf.mxu0
  %v823 = vadd.f32 0.0, %v822
  %v824 = vpop.f32.mrf.mxu0
  %825 = vmatprep.mubr.bf16.mxu0 0
  %826 = vmatmul.mubr.bf16.gmra.mxu0 %v583
  %v827 = vpop.f32.mrf.mxu0
  %v828 = vadd.f32 0.0, %v827
  %v829 = vpop.f32.mrf.mxu0
  %v830 = vpop.f32.mrf.mxu0
  %v831 = vadd.f32 0.0, %v830
  %v832 = vpop.f32.mrf.mxu0
  %833 = vmatprep.mubr.bf16.mxu0 0
  %834 = vmatmul.mubr.bf16.gmra.mxu0 %v586
  %v835 = vpop.f32.mrf.mxu0
  %v836 = vadd.f32 0.0, %v835
  %v837 = vpop.f32.mrf.mxu0
  %v838 = vpop.f32.mrf.mxu0
  %v839 = vadd.f32 0.0, %v838
  %v840 = vpop.f32.mrf.mxu0
  %841 = vmatprep.mubr.bf16.mxu0 0
  %842 = vmatmul.mubr.bf16.gmra.mxu0 %v589
  %v843 = vpop.f32.mrf.mxu0
  %v844 = vadd.f32 0.0, %v843
  %v845 = vpop.f32.mrf.mxu0
  %v846 = vpop.f32.mrf.mxu0
  %v847 = vadd.f32 0.0, %v846
  %v848 = vpop.f32.mrf.mxu0
  %849 = vmatprep.mubr.bf16.mxu0 0
  %850 = vmatmul.mubr.bf16.gmra.mxu0 %v592
  %v851 = vpop.f32.mrf.mxu0
  %v852 = vadd.f32 0.0, %v851
  %v853 = vpop.f32.mrf.mxu0
  %v854 = vpop.f32.mrf.mxu0
  %v855 = vadd.f32 0.0, %v854
  %v856 = vpop.f32.mrf.mxu0
  %857 = vmatprep.mubr.bf16.mxu0 0
  %858 = vmatmul.mubr.bf16.gmra.mxu0 %v595
  %v859 = vpop.f32.mrf.mxu0
  %v860 = vadd.f32 0.0, %v859
  %v861 = vpop.f32.mrf.mxu0
  %v862 = vpop.f32.mrf.mxu0
  %v863 = vadd.f32 0.0, %v862
  %v864 = vpop.f32.mrf.mxu0
  %865 = vmatprep.mubr.bf16.mxu0 0
  %866 = vmatmul.mubr.bf16.gmra.mxu0 %v598
  %v867 = vpop.f32.mrf.mxu0
  %v868 = vadd.f32 0.0, %v867
  %v869 = vpop.f32.mrf.mxu0
  %v870 = vpop.f32.mrf.mxu0
  %v871 = vadd.f32 0.0, %v870
  %v872 = vpop.f32.mrf.mxu0
  %873 = vmatprep.mubr.bf16.mxu0 0
  %874 = vmatmul.mubr.bf16.gmra.mxu0 %v601
  %v875 = vpop.f32.mrf.mxu0
  %v876 = vadd.f32 0.0, %v875
  %v877 = vpop.f32.mrf.mxu0
  %v878 = vpop.f32.mrf.mxu0
  %v879 = vadd.f32 0.0, %v878
  %v880 = vpop.f32.mrf.mxu0
  %881 = vmatprep.mubr.bf16.mxu0 0
  %882 = vmatmul.mubr.bf16.gmra.mxu0 %v604
  %v883 = vpop.f32.mrf.mxu0
  %v884 = vadd.f32 0.0, %v883
  %v885 = vpop.f32.mrf.mxu0
  %v886 = vpop.f32.mrf.mxu0
  %v887 = vadd.f32 0.0, %v886
  %v888 = vpop.f32.mrf.mxu0
  %889 = vmatprep.mubr.bf16.mxu0 0
  %890 = vmatmul.mubr.bf16.gmra.mxu0 %v607
  %v891 = vpop.f32.mrf.mxu0
  %v892 = vadd.f32 0.0, %v891
  %v893 = vpop.f32.mrf.mxu0
  %v894 = vpop.f32.mrf.mxu0
  %v895 = vadd.f32 0.0, %v894
  %v896 = vpop.f32.mrf.mxu0
  %897 = vdwg.mxu0
  %v898 = vpack.c.bf16 %v647, %v644
  %v899 = vpack.c.bf16 %v655, %v652
  %v900 = vpack.c.bf16 %v663, %v660
  %v901 = vpack.c.bf16 %v671, %v668
  %v902 = vpack.c.bf16 %v679, %v676
  %v903 = vpack.c.bf16 %v687, %v684
  %v904 = vpack.c.bf16 %v695, %v692
  %v905 = vpack.c.bf16 %v703, %v700
  %v906 = vpack.c.bf16 %v711, %v708
  %v907 = vpack.c.bf16 %v719, %v716
  %v908 = vpack.c.bf16 %v727, %v724
  %v909 = vpack.c.bf16 %v735, %v732
  %v910 = vpack.c.bf16 %v743, %v740
  %v911 = vpack.c.bf16 %v751, %v748
  %v912 = vpack.c.bf16 %v759, %v756
  %v913 = vpack.c.bf16 %v767, %v764
  %v914 = vpack.c.bf16 %v775, %v772
  %v915 = vpack.c.bf16 %v783, %v780
  %v916 = vpack.c.bf16 %v791, %v788
  %v917 = vpack.c.bf16 %v799, %v796
  %v918 = vpack.c.bf16 %v807, %v804
  %v919 = vpack.c.bf16 %v815, %v812
  %v920 = vpack.c.bf16 %v823, %v820
  %v921 = vpack.c.bf16 %v831, %v828
  %v922 = vpack.c.bf16 %v839, %v836
  %v923 = vpack.c.bf16 %v847, %v844
  %v924 = vpack.c.bf16 %v855, %v852
  %v925 = vpack.c.bf16 %v863, %v860
  %v926 = vpack.c.bf16 %v871, %v868
  %v927 = vpack.c.bf16 %v879, %v876
  %v928 = vpack.c.bf16 %v887, %v884
  %v929 = vpack.c.bf16 %v895, %v892
  %v962 = vunpack.c.l.b16 %v898
  %v963 = vunpack.c.h.b16 %v898
  %v964 = vunpack.c.l.b16 %v899
  %v965 = vunpack.c.h.b16 %v899
  %v966 = vunpack.c.l.b16 %v900
  %v967 = vunpack.c.h.b16 %v900
  %v968 = vunpack.c.l.b16 %v901
  %v969 = vunpack.c.h.b16 %v901
  %v970 = vunpack.c.l.b16 %v902
  %v971 = vunpack.c.h.b16 %v902
  %v972 = vunpack.c.l.b16 %v903
  %v973 = vunpack.c.h.b16 %v903
  %v974 = vunpack.c.l.b16 %v904
  %v975 = vunpack.c.h.b16 %v904
  %v976 = vunpack.c.l.b16 %v905
  %v977 = vunpack.c.h.b16 %v905
  %v978 = vunpack.c.l.b16 %v906
  %v979 = vunpack.c.h.b16 %v906
  %v980 = vunpack.c.l.b16 %v907
  %v981 = vunpack.c.h.b16 %v907
  %v982 = vunpack.c.l.b16 %v908
  %v983 = vunpack.c.h.b16 %v908
  %v984 = vunpack.c.l.b16 %v909
  %v985 = vunpack.c.h.b16 %v909
  %v986 = vunpack.c.l.b16 %v910
  %v987 = vunpack.c.h.b16 %v910
  %v988 = vunpack.c.l.b16 %v911
  %v989 = vunpack.c.h.b16 %v911
  %v990 = vunpack.c.l.b16 %v912
  %v991 = vunpack.c.h.b16 %v912
  %v992 = vunpack.c.l.b16 %v913
  %v993 = vunpack.c.h.b16 %v913
  %v994 = vunpack.c.l.b16 %v914
  %v995 = vunpack.c.h.b16 %v914
  %v996 = vunpack.c.l.b16 %v915
  %v997 = vunpack.c.h.b16 %v915
  %v998 = vunpack.c.l.b16 %v916
  %v999 = vunpack.c.h.b16 %v916
  %v1000 = vunpack.c.l.b16 %v917
  %v1001 = vunpack.c.h.b16 %v917
  %v1002 = vunpack.c.l.b16 %v918
  %v1003 = vunpack.c.h.b16 %v918
  %v1004 = vunpack.c.l.b16 %v919
  %v1005 = vunpack.c.h.b16 %v919
  %v1006 = vunpack.c.l.b16 %v920
  %v1007 = vunpack.c.h.b16 %v920
  %v1008 = vunpack.c.l.b16 %v921
  %v1009 = vunpack.c.h.b16 %v921
  %v1010 = vunpack.c.l.b16 %v922
  %v1011 = vunpack.c.h.b16 %v922
  %v1012 = vunpack.c.l.b16 %v923
  %v1013 = vunpack.c.h.b16 %v923
  %v1014 = vunpack.c.l.b16 %v924
  %v1015 = vunpack.c.h.b16 %v924
  %v1016 = vunpack.c.l.b16 %v925
  %v1017 = vunpack.c.h.b16 %v925
  %v1018 = vunpack.c.l.b16 %v926
  %v1019 = vunpack.c.h.b16 %v926
  %v1020 = vunpack.c.l.b16 %v927
  %v1021 = vunpack.c.h.b16 %v927
  %v1022 = vunpack.c.l.b16 %v928
  %v1023 = vunpack.c.h.b16 %v928
  %v1024 = vunpack.c.l.b16 %v929
  %v1025 = vunpack.c.h.b16 %v929
  %v1026 = vpack.c.b16 %v962, %v962
  %v1027 = vpack.c.b16 %v963, %v963
  %v1028 = vpack.c.b16 %v964, %v964
  %v1029 = vpack.c.b16 %v965, %v965
  %v1030 = vpack.c.b16 %v966, %v966
  %v1031 = vpack.c.b16 %v967, %v967
  %v1032 = vpack.c.b16 %v968, %v968
  %v1033 = vpack.c.b16 %v969, %v969
  %v1034 = vpack.c.b16 %v970, %v970
  %v1035 = vpack.c.b16 %v971, %v971
  %v1036 = vpack.c.b16 %v972, %v972
  %v1037 = vpack.c.b16 %v973, %v973
  %v1038 = vpack.c.b16 %v974, %v974
  %v1039 = vpack.c.b16 %v975, %v975
  %v1040 = vpack.c.b16 %v976, %v976
  %v1041 = vpack.c.b16 %v977, %v977
  %v1042 = vpack.c.b16 %v978, %v978
  %v1043 = vpack.c.b16 %v979, %v979
  %v1044 = vpack.c.b16 %v980, %v980
  %v1045 = vpack.c.b16 %v981, %v981
  %v1046 = vpack.c.b16 %v982, %v982
  %v1047 = vpack.c.b16 %v983, %v983
  %v1048 = vpack.c.b16 %v984, %v984
  %v1049 = vpack.c.b16 %v985, %v985
  %v1050 = vpack.c.b16 %v986, %v986
  %v1051 = vpack.c.b16 %v987, %v987
  %v1052 = vpack.c.b16 %v988, %v988
  %v1053 = vpack.c.b16 %v989, %v989
  %v1054 = vpack.c.b16 %v990, %v990
  %v1055 = vpack.c.b16 %v991, %v991
  %v1056 = vpack.c.b16 %v992, %v992
  %v1057 = vpack.c.b16 %v993, %v993
  %v1058 = vpack.c.b16 %v994, %v994
  %v1059 = vpack.c.b16 %v995, %v995
  %v1060 = vpack.c.b16 %v996, %v996
  %v1061 = vpack.c.b16 %v997, %v997
  %v1062 = vpack.c.b16 %v998, %v998
  %v1063 = vpack.c.b16 %v999, %v999
  %v1064 = vpack.c.b16 %v1000, %v1000
  %v1065 = vpack.c.b16 %v1001, %v1001
  %v1066 = vpack.c.b16 %v1002, %v1002
  %v1067 = vpack.c.b16 %v1003, %v1003
  %v1068 = vpack.c.b16 %v1004, %v1004
  %v1069 = vpack.c.b16 %v1005, %v1005
  %v1070 = vpack.c.b16 %v1006, %v1006
  %v1071 = vpack.c.b16 %v1007, %v1007
  %v1072 = vpack.c.b16 %v1008, %v1008
  %v1073 = vpack.c.b16 %v1009, %v1009
  %v1074 = vpack.c.b16 %v1010, %v1010
  %v1075 = vpack.c.b16 %v1011, %v1011
  %v1076 = vpack.c.b16 %v1012, %v1012
  %v1077 = vpack.c.b16 %v1013, %v1013
  %v1078 = vpack.c.b16 %v1014, %v1014
  %v1079 = vpack.c.b16 %v1015, %v1015
  %v1080 = vpack.c.b16 %v1016, %v1016
  %v1081 = vpack.c.b16 %v1017, %v1017
  %v1082 = vpack.c.b16 %v1018, %v1018
  %v1083 = vpack.c.b16 %v1019, %v1019
  %v1084 = vpack.c.b16 %v1020, %v1020
  %v1085 = vpack.c.b16 %v1021, %v1021
  %v1086 = vpack.c.b16 %v1022, %v1022
  %v1087 = vpack.c.b16 %v1023, %v1023
  %v1088 = vpack.c.b16 %v1024, %v1024
  %v1089 = vpack.c.b16 %v1025, %v1025
  %1154 = vst [vmem:[%s3] sm:$0xf] %v1026
  %1155 = vst [vmem:[%s3 + $0x4] sm:$0xf] %v1027
  %1156 = vst [vmem:[%s3 + $0x8] sm:$0xf] %v1028
  %1157 = vst [vmem:[%s3 + $0xc] sm:$0xf] %v1029
  %1158 = vst [vmem:[%s3 + $0x10] sm:$0xf] %v1030
  %1159 = vst [vmem:[%s3 + $0x14] sm:$0xf] %v1031
  %1160 = vst [vmem:[%s3 + $0x18] sm:$0xf] %v1032
  %1161 = vst [vmem:[%s3 + $0x1c] sm:$0xf] %v1033
  %1162 = vst [vmem:[%s3 + $0x20] sm:$0xf] %v1034
  %1163 = vst [vmem:[%s3 + $0x24] sm:$0xf] %v1035
  %1164 = vst [vmem:[%s3 + $0x28] sm:$0xf] %v1036
  %1165 = vst [vmem:[%s3 + $0x2c] sm:$0xf] %v1037
  %1166 = vst [vmem:[%s3 + $0x30] sm:$0xf] %v1038
  %1167 = vst [vmem:[%s3 + $0x34] sm:$0xf] %v1039
  %1168 = vst [vmem:[%s3 + $0x38] sm:$0xf] %v1040
  %1169 = vst [vmem:[%s3 + $0x3c] sm:$0xf] %v1041
  %1170 = vst [vmem:[%s3 + $0x40] sm:$0xf] %v1042
  %1171 = vst [vmem:[%s3 + $0x44] sm:$0xf] %v1043
  %1172 = vst [vmem:[%s3 + $0x48] sm:$0xf] %v1044
  %1173 = vst [vmem:[%s3 + $0x4c] sm:$0xf] %v1045
  %1174 = vst [vmem:[%s3 + $0x50] sm:$0xf] %v1046
  %1175 = vst [vmem:[%s3 + $0x54] sm:$0xf] %v1047
  %1176 = vst [vmem:[%s3 + $0x58] sm:$0xf] %v1048
  %1177 = vst [vmem:[%s3 + $0x5c] sm:$0xf] %v1049
  %1178 = vst [vmem:[%s3 + $0x60] sm:$0xf] %v1050
  %1179 = vst [vmem:[%s3 + $0x64] sm:$0xf] %v1051
  %1180 = vst [vmem:[%s3 + $0x68] sm:$0xf] %v1052
  %1181 = vst [vmem:[%s3 + $0x6c] sm:$0xf] %v1053
  %1182 = vst [vmem:[%s3 + $0x70] sm:$0xf] %v1054
  %1183 = vst [vmem:[%s3 + $0x74] sm:$0xf] %v1055
  %1184 = vst [vmem:[%s3 + $0x78] sm:$0xf] %v1056
  %1185 = vst [vmem:[%s3 + $0x7c] sm:$0xf] %v1057
  %1186 = vst [vmem:[%s3 + $0x80] sm:$0xf] %v1058
  %1187 = vst [vmem:[%s3 + $0x84] sm:$0xf] %v1059
  %1188 = vst [vmem:[%s3 + $0x88] sm:$0xf] %v1060
  %1189 = vst [vmem:[%s3 + $0x8c] sm:$0xf] %v1061
  %1190 = vst [vmem:[%s3 + $0x90] sm:$0xf] %v1062
  %1191 = vst [vmem:[%s3 + $0x94] sm:$0xf] %v1063
  %1192 = vst [vmem:[%s3 + $0x98] sm:$0xf] %v1064
  %1193 = vst [vmem:[%s3 + $0x9c] sm:$0xf] %v1065
  %1194 = vst [vmem:[%s3 + $0xa0] sm:$0xf] %v1066
  %1195 = vst [vmem:[%s3 + $0xa4] sm:$0xf] %v1067
  %1196 = vst [vmem:[%s3 + $0xa8] sm:$0xf] %v1068
  %1197 = vst [vmem:[%s3 + $0xac] sm:$0xf] %v1069
  %1198 = vst [vmem:[%s3 + $0xb0] sm:$0xf] %v1070
  %1199 = vst [vmem:[%s3 + $0xb4] sm:$0xf] %v1071
  %1200 = vst [vmem:[%s3 + $0xb8] sm:$0xf] %v1072
  %1201 = vst [vmem:[%s3 + $0xbc] sm:$0xf] %v1073
  %1202 = vst [vmem:[%s3 + $0xc0] sm:$0xf] %v1074
  %1203 = vst [vmem:[%s3 + $0xc4] sm:$0xf] %v1075
  %1204 = vst [vmem:[%s3 + $0xc8] sm:$0xf] %v1076
  %1205 = vst [vmem:[%s3 + $0xcc] sm:$0xf] %v1077
  %1206 = vst [vmem:[%s3 + $0xd0] sm:$0xf] %v1078
  %1207 = vst [vmem:[%s3 + $0xd4] sm:$0xf] %v1079
  %1208 = vst [vmem:[%s3 + $0xd8] sm:$0xf] %v1080
  %1209 = vst [vmem:[%s3 + $0xdc] sm:$0xf] %v1081
  %1210 = vst [vmem:[%s3 + $0xe0] sm:$0xf] %v1082
  %1211 = vst [vmem:[%s3 + $0xe4] sm:$0xf] %v1083
  %1212 = vst [vmem:[%s3 + $0xe8] sm:$0xf] %v1084
  %1213 = vst [vmem:[%s3 + $0xec] sm:$0xf] %v1085
  %1214 = vst [vmem:[%s3 + $0xf0] sm:$0xf] %v1086
  %1215 = vst [vmem:[%s3 + $0xf4] sm:$0xf] %v1087
  %1216 = vst [vmem:[%s3 + $0xf8] sm:$0xf] %v1088
  %1217 = vst [vmem:[%s3 + $0xfc] sm:$0xf] %v1089
  // Predicated region
  $region14: #{generator_forward.16} parent=0 // pred_check
    _
  $region15: #{generator_forward.16} parent=0 // pred_check_branch
    %1219 = sbr.rel (0) target = $region17
  $region16: #{generator_forward.16} parent=0 // pred_region
    _
  $region17: #{generator_forward.16} parent=0 // pred_fallthru
    _
  // Predicated region
  $region18: #{generator_forward.16} parent=0 // pred_check
    _
  $region19: #{generator_forward.16} parent=0 // pred_check_branch
    %1221 = sbr.rel (0) target = $region21
  $region20: #{generator_forward.16} parent=0 // pred_region
    _
  $region21: #{generator_forward.16} parent=0 // pred_fallthru
    _

// kernel: generator_forward.17
$region0: #{generator_forward.17}
  #allocation0 [shape = 'u32[]', space=smem, size = 0x4, offset = 0x4, fixed_abs, tag = 'smem constant byte address 0x4 - core index']
  #allocation1 [shape = 'u32[144,128]{1,0:T(1,128)}', space=vmem, size = 0x12000, scoped, tag = 'internal scratch']
  %s0 = inlined_call_operand.vmem [shape: bf16[2048,8], index: 0, kind: input, shape index: {}]
  %s1 = inlined_call_operand.vmem [shape: f32[1,8], index: 1, kind: input, shape index: {}]
  %s2 = inlined_call_operand.vmem [shape: f32[1,8], index: 2, kind: input, shape index: {}]
  %s3 = inlined_call_operand.vmem [shape: f32[2,8], index: 3, kind: output, shape index: {}]
  %s4 = sld [smem:[#allocation0]]
  $region53: #{generator_forward.17} parent=0
    _
  %s6 = ssub.s32 1, %s4
  %s7 = scalar_select 0, %s6, %s4
  loop: start=0, step=1, limit=6
  $region2: #{generator_forward.17} parent=0 // loop_pre_header
    _
  $region3: #{generator_forward.17} parent=0 // loop_header
    %s9 = sphi 0, %s13
    %p10 = scmp.ge.s32.totalorder %s9, 6
    %s19 = sphi 0, %s21
    %s22 = sphi 0, %s19
    %s23 = sphi 0, %s22
    %s39 = sphi 0, %s23
    %s43 = sphi 0, %s43
    %s45 = sphi 0, %s43
    %s46 = sphi 0, %s45
    %s60 = sphi 0, %s46
    %s64 = sphi 0, %s64
    %s66 = sphi 0, %s64
    %s67 = sphi 0, %s66
    %s81 = sphi 0, %s67
    %s85 = sphi 0, %s85
    %s87 = sphi 0, %s85
    %s88 = sphi 0, %s87
    %s102 = sphi 0, %s88
  $region4: #{generator_forward.17} parent=0 // loop_header_branch
    %12 = sbr.rel (%p10) target = $region8
  $region5: #{generator_forward.17} parent=0 // loop_body
    %s14 = ssub.s32 %s9, 1
    %s15 = ssub.s32 %s9, 2
    %s16 = sadd.s32 %s9, 1
    %s17 = ssub.s32 %s9, %s16
    %p18 = scmp.eq.s32.totalorder %s17, 0
    %s20 = sadd.s32 %s19, 1
    %s21 = scalar_select %p18, %s19, %s20
    %p24 = pneg %p18
    %p25 = scmp.eq.s32.totalorder %s9, 3
    %p26 = por %p24, %p25
    %p27 = scmp.ne.s32.totalorder %s19, %s22
    %p28 = scmp.eq.s32.totalorder %s9, 0
    %p29 = por %p27, %p28
    %p30 = scmp.ne.s32.totalorder %s19, %s22
    %p31 = scmp.eq.s32.totalorder %s14, 3
    %p32 = por %p30, %p31
    %p33 = scmp.ne.s32.totalorder %s22, %s23
    %p34 = scmp.eq.s32.totalorder %s14, 0
    %p35 = por %p33, %p34
    %p36 = scmp.ne.s32.totalorder %s22, %s23
    %p37 = scmp.eq.s32.totalorder %s15, 3
    %p38 = por %p36, %p37
    %p40 = scmp.ne.s32.totalorder %s23, %s39
    %p41 = scmp.eq.s32.totalorder %s15, 0
    %p42 = por %p40, %p41
    %s44 = sadd.s32 %s43, 1
    %p47 = scmp.eq.s32.totalorder %s9, 3
    %p48 = scmp.ne.s32.totalorder %s43, %s45
    %p49 = scmp.eq.s32.totalorder %s9, 0
    %p50 = por %p48, %p49
    %p51 = scmp.ne.s32.totalorder %s43, %s45
    %p52 = scmp.eq.s32.totalorder %s14, 3
    %p53 = por %p51, %p52
    %p54 = scmp.ne.s32.totalorder %s45, %s46
    %p55 = scmp.eq.s32.totalorder %s14, 0
    %p56 = por %p54, %p55
    %p57 = scmp.ne.s32.totalorder %s45, %s46
    %p58 = scmp.eq.s32.totalorder %s15, 3
    %p59 = por %p57, %p58
    %p61 = scmp.ne.s32.totalorder %s46, %s60
    %p62 = scmp.eq.s32.totalorder %s15, 0
    %p63 = por %p61, %p62
    %s65 = sadd.s32 %s64, 1
    %p68 = scmp.eq.s32.totalorder %s9, 3
    %p69 = scmp.ne.s32.totalorder %s64, %s66
    %p70 = scmp.eq.s32.totalorder %s9, 0
    %p71 = por %p69, %p70
    %p72 = scmp.ne.s32.totalorder %s64, %s66
    %p73 = scmp.eq.s32.totalorder %s14, 3
    %p74 = por %p72, %p73
    %p75 = scmp.ne.s32.totalorder %s66, %s67
    %p76 = scmp.eq.s32.totalorder %s14, 0
    %p77 = por %p75, %p76
    %p78 = scmp.ne.s32.totalorder %s66, %s67
    %p79 = scmp.eq.s32.totalorder %s15, 3
    %p80 = por %p78, %p79
    %p82 = scmp.ne.s32.totalorder %s67, %s81
    %p83 = scmp.eq.s32.totalorder %s15, 0
    %p84 = por %p82, %p83
    %s86 = sadd.s32 %s85, 1
    %p89 = scmp.eq.s32.totalorder %s9, 3
    %p90 = scmp.ne.s32.totalorder %s85, %s87
    %p91 = scmp.eq.s32.totalorder %s9, 0
    %p92 = por %p90, %p91
    %p93 = scmp.ne.s32.totalorder %s85, %s87
    %p94 = scmp.eq.s32.totalorder %s14, 3
    %p95 = por %p93, %p94
    %p96 = scmp.ne.s32.totalorder %s87, %s88
    %p97 = scmp.eq.s32.totalorder %s14, 0
    %p98 = por %p96, %p97
    %p99 = scmp.ne.s32.totalorder %s87, %s88
    %p100 = scmp.eq.s32.totalorder %s15, 3
    %p101 = por %p99, %p100
    %p103 = scmp.ne.s32.totalorder %s88, %s102
    %p104 = scmp.eq.s32.totalorder %s15, 0
    %p105 = por %p103, %p104
    %p106 = scmp.le.s32.totalorder 1, %s9
    %p107 = scmp.lt.s32.totalorder %s9, 5
    %p108 = pnand %p106, %p107
    %p109 = pneg %p108
    // Predicated region
    $region9: #{generator_forward.17} parent=5 // pred_check
      _
    $region10: #{generator_forward.17} parent=5 // pred_check_branch
      %111 = sbr.rel (%p108) target = $region12
    $region11: #{generator_forward.17} parent=5 // pred_region
      %s112 = ssub.s32 %s9, 1
      // Predicated region
      $region13: #{generator_forward.17} parent=11 // pred_check
        %p113 = pneg %p56
      $region14: #{generator_forward.17} parent=11 // pred_check_branch
        %115 = sbr.rel (%p113) target = $region16
      $region15: #{generator_forward.17} parent=11 // pred_region
        _
      $region16: #{generator_forward.17} parent=11 // pred_fallthru
        _
      // Predicated region
      $region17: #{generator_forward.17} parent=11 // pred_check
        %p116 = pneg %p77
      $region18: #{generator_forward.17} parent=11 // pred_check_branch
        %118 = sbr.rel (%p116) target = $region20
      $region19: #{generator_forward.17} parent=11 // pred_region
        _
      $region20: #{generator_forward.17} parent=11 // pred_fallthru
        _
    $region12: #{generator_forward.17} parent=5 // pred_fallthru
      _
    %p119 = scmp.lt.s32.totalorder %s9, 4
    // Predicated region
    $region21: #{generator_forward.17} parent=5 // pred_check
      %p120 = pneg %p119
    $region22: #{generator_forward.17} parent=5 // pred_check_branch
      %122 = sbr.rel (%p120) target = $region24
    $region23: #{generator_forward.17} parent=5 // pred_region
      // Predicated region
      $region25: #{generator_forward.17} parent=23 // pred_check
        %p123 = pneg %p29
      $region26: #{generator_forward.17} parent=23 // pred_check_branch
        %125 = sbr.rel (%p123) target = $region28
      $region27: #{generator_forward.17} parent=23 // pred_region
        %s126 = smul.u32 64, %s9
        %p127 = scmp.lt.s32.totalorder %s126, 255
        %s128 = scalar_select %p127, %s126, 255
        %s129 = smul.addr %s128, 4
        %s130 = scalar_lea.vmem %s0, %s129
        %s131 = smul.u32 64, %s9
      $region28: #{generator_forward.17} parent=23 // pred_fallthru
        _
    $region24: #{generator_forward.17} parent=5 // pred_fallthru
      _
    %p132 = scmp.le.s32.totalorder 1, %s9
    %p133 = scmp.lt.s32.totalorder %s9, 5
    %p134 = pnand %p132, %p133
    %p135 = pneg %p134
    // Predicated region
    $region29: #{generator_forward.17} parent=5 // pred_check
      _
    $region30: #{generator_forward.17} parent=5 // pred_check_branch
      %137 = sbr.rel (%p134) target = $region32
    $region31: #{generator_forward.17} parent=5 // pred_region
      %s138 = ssub.s32 %s9, 1
      %s139 = smul.u32 64, %s14
      %p140 = scmp.lt.s32.totalorder %s139, 255
      %s141 = scalar_select %p140, %s139, 255
      %s142 = smul.addr %s141, 4
      %s143 = scalar_lea.vmem %s0, %s142
      %p144 = pneg %p35
      %p145 = pneg %p32
      %p146 = pneg %p56
      %p147 = pneg %p53
      %p148 = pneg %p77
      %p149 = pneg %p74
      %p150 = pneg %p98
      %p151 = pneg %p95
      %s152 = smul.u32 64, %s14
      %p153 = scmp.lt.s32.totalorder %s152, 255
      %s154 = scalar_select %p153, %s152, 255
      %s155 = smul.addr %s154, 4
      %s156 = scalar_lea.vmem %s0, %s155
      %s157 = smul.u32 64, %s14
      %p158 = scmp.eq.s32.totalorder %s14, 0
      // Predicated region
      $region33: #{generator_forward.17} parent=31 // pred_check
        %p159 = pneg %p158
      $region34: #{generator_forward.17} parent=31 // pred_check_branch
        %161 = sbr.rel (%p159) target = $region36
      $region35: #{generator_forward.17} parent=31 // pred_region
        %vm162 = vcmask 58368
        %163 = vst.msk [vmem:[%s3] sm:$0x3] %vm162, 0.0
      $region36: #{generator_forward.17} parent=31 // pred_fallthru
        _
      %v164 = vld [vmem:[%s156] sm:$0xf]
      %v165 = vld [vmem:[%s156 + $0x4] sm:$0xf]
      %v166 = vld [vmem:[%s156 + $0x8] sm:$0xf]
      %v167 = vld [vmem:[%s156 + $0xc] sm:$0xf]
      %v168 = vld [vmem:[%s156 + $0x10] sm:$0xf]
      %v169 = vld [vmem:[%s156 + $0x14] sm:$0xf]
      %v170 = vld [vmem:[%s156 + $0x18] sm:$0xf]
      %v171 = vld [vmem:[%s156 + $0x1c] sm:$0xf]
      %v172 = vld [vmem:[%s156 + $0x20] sm:$0xf]
      %v173 = vld [vmem:[%s156 + $0x24] sm:$0xf]
      %v174 = vld [vmem:[%s156 + $0x28] sm:$0xf]
      %v175 = vld [vmem:[%s156 + $0x2c] sm:$0xf]
      %v176 = vld [vmem:[%s156 + $0x30] sm:$0xf]
      %v177 = vld [vmem:[%s156 + $0x34] sm:$0xf]
      %v178 = vld [vmem:[%s156 + $0x38] sm:$0xf]
      %v179 = vld [vmem:[%s156 + $0x3c] sm:$0xf]
      %v180 = vld [vmem:[%s156 + $0x40] sm:$0xf]
      %v181 = vld [vmem:[%s156 + $0x44] sm:$0xf]
      %v182 = vld [vmem:[%s156 + $0x48] sm:$0xf]
      %v183 = vld [vmem:[%s156 + $0x4c] sm:$0xf]
      %v184 = vld [vmem:[%s156 + $0x50] sm:$0xf]
      %v185 = vld [vmem:[%s156 + $0x54] sm:$0xf]
      %v186 = vld [vmem:[%s156 + $0x58] sm:$0xf]
      %v187 = vld [vmem:[%s156 + $0x5c] sm:$0xf]
      %v188 = vld [vmem:[%s156 + $0x60] sm:$0xf]
      %v189 = vld [vmem:[%s156 + $0x64] sm:$0xf]
      %v190 = vld [vmem:[%s156 + $0x68] sm:$0xf]
      %v191 = vld [vmem:[%s156 + $0x6c] sm:$0xf]
      %v192 = vld [vmem:[%s156 + $0x70] sm:$0xf]
      %v193 = vld [vmem:[%s156 + $0x74] sm:$0xf]
      %v194 = vld [vmem:[%s156 + $0x78] sm:$0xf]
      %v195 = vld [vmem:[%s156 + $0x7c] sm:$0xf]
      %v196 = vld [vmem:[%s156 + $0x80] sm:$0xf]
      %v197 = vld [vmem:[%s156 + $0x84] sm:$0xf]
      %v198 = vld [vmem:[%s156 + $0x88] sm:$0xf]
      %v199 = vld [vmem:[%s156 + $0x8c] sm:$0xf]
      %v200 = vld [vmem:[%s156 + $0x90] sm:$0xf]
      %v201 = vld [vmem:[%s156 + $0x94] sm:$0xf]
      %v202 = vld [vmem:[%s156 + $0x98] sm:$0xf]
      %v203 = vld [vmem:[%s156 + $0x9c] sm:$0xf]
      %v204 = vld [vmem:[%s156 + $0xa0] sm:$0xf]
      %v205 = vld [vmem:[%s156 + $0xa4] sm:$0xf]
      %v206 = vld [vmem:[%s156 + $0xa8] sm:$0xf]
      %v207 = vld [vmem:[%s156 + $0xac] sm:$0xf]
      %v208 = vld [vmem:[%s156 + $0xb0] sm:$0xf]
      %v209 = vld [vmem:[%s156 + $0xb4] sm:$0xf]
      %v210 = vld [vmem:[%s156 + $0xb8] sm:$0xf]
      %v211 = vld [vmem:[%s156 + $0xbc] sm:$0xf]
      %v212 = vld [vmem:[%s156 + $0xc0] sm:$0xf]
      %v213 = vld [vmem:[%s156 + $0xc4] sm:$0xf]
      %v214 = vld [vmem:[%s156 + $0xc8] sm:$0xf]
      %v215 = vld [vmem:[%s156 + $0xcc] sm:$0xf]
      %v216 = vld [vmem:[%s156 + $0xd0] sm:$0xf]
      %v217 = vld [vmem:[%s156 + $0xd4] sm:$0xf]
      %v218 = vld [vmem:[%s156 + $0xd8] sm:$0xf]
      %v219 = vld [vmem:[%s156 + $0xdc] sm:$0xf]
      %v220 = vld [vmem:[%s156 + $0xe0] sm:$0xf]
      %v221 = vld [vmem:[%s156 + $0xe4] sm:$0xf]
      %v222 = vld [vmem:[%s156 + $0xe8] sm:$0xf]
      %v223 = vld [vmem:[%s156 + $0xec] sm:$0xf]
      %v224 = vld [vmem:[%s156 + $0xf0] sm:$0xf]
      %v225 = vld [vmem:[%s156 + $0xf4] sm:$0xf]
      %v226 = vld [vmem:[%s156 + $0xf8] sm:$0xf]
      %v227 = vld [vmem:[%s156 + $0xfc] sm:$0xf]
      %v228 = vunpack.c.l.bf16 %v164
      %v229 = vunpack.c.l.bf16 %v165
      %v230 = vunpack.c.l.bf16 %v166
      %v231 = vunpack.c.l.bf16 %v167
      %v232 = vunpack.c.l.bf16 %v168
      %v233 = vunpack.c.l.bf16 %v169
      %v234 = vunpack.c.l.bf16 %v170
      %v235 = vunpack.c.l.bf16 %v171
      %v236 = vunpack.c.l.bf16 %v172
      %v237 = vunpack.c.l.bf16 %v173
      %v238 = vunpack.c.l.bf16 %v174
      %v239 = vunpack.c.l.bf16 %v175
      %v240 = vunpack.c.l.bf16 %v176
      %v241 = vunpack.c.l.bf16 %v177
      %v242 = vunpack.c.l.bf16 %v178
      %v243 = vunpack.c.l.bf16 %v179
      %v244 = vunpack.c.l.bf16 %v180
      %v245 = vunpack.c.l.bf16 %v181
      %v246 = vunpack.c.l.bf16 %v182
      %v247 = vunpack.c.l.bf16 %v183
      %v248 = vunpack.c.l.bf16 %v184
      %v249 = vunpack.c.l.bf16 %v185
      %v250 = vunpack.c.l.bf16 %v186
      %v251 = vunpack.c.l.bf16 %v187
      %v252 = vunpack.c.l.bf16 %v188
      %v253 = vunpack.c.l.bf16 %v189
      %v254 = vunpack.c.l.bf16 %v190
      %v255 = vunpack.c.l.bf16 %v191
      %v256 = vunpack.c.l.bf16 %v192
      %v257 = vunpack.c.l.bf16 %v193
      %v258 = vunpack.c.l.bf16 %v194
      %v259 = vunpack.c.l.bf16 %v195
      %v260 = vunpack.c.l.bf16 %v196
      %v261 = vunpack.c.l.bf16 %v197
      %v262 = vunpack.c.l.bf16 %v198
      %v263 = vunpack.c.l.bf16 %v199
      %v264 = vunpack.c.l.bf16 %v200
      %v265 = vunpack.c.l.bf16 %v201
      %v266 = vunpack.c.l.bf16 %v202
      %v267 = vunpack.c.l.bf16 %v203
      %v268 = vunpack.c.l.bf16 %v204
      %v269 = vunpack.c.l.bf16 %v205
      %v270 = vunpack.c.l.bf16 %v206
      %v271 = vunpack.c.l.bf16 %v207
      %v272 = vunpack.c.l.bf16 %v208
      %v273 = vunpack.c.l.bf16 %v209
      %v274 = vunpack.c.l.bf16 %v210
      %v275 = vunpack.c.l.bf16 %v211
      %v276 = vunpack.c.l.bf16 %v212
      %v277 = vunpack.c.l.bf16 %v213
      %v278 = vunpack.c.l.bf16 %v214
      %v279 = vunpack.c.l.bf16 %v215
      %v280 = vunpack.c.l.bf16 %v216
      %v281 = vunpack.c.l.bf16 %v217
      %v282 = vunpack.c.l.bf16 %v218
      %v283 = vunpack.c.l.bf16 %v219
      %v284 = vunpack.c.l.bf16 %v220
      %v285 = vunpack.c.l.bf16 %v221
      %v286 = vunpack.c.l.bf16 %v222
      %v287 = vunpack.c.l.bf16 %v223
      %v288 = vunpack.c.l.bf16 %v224
      %v289 = vunpack.c.l.bf16 %v225
      %v290 = vunpack.c.l.bf16 %v226
      %v291 = vunpack.c.l.bf16 %v227
      %vm292 = vcmask 64512
      %v293 = vsel %vm292, %v228, 0.0
      %v294 = vsel %vm292, %v229, 0.0
      %v295 = vadd.f32 %v293, %v294
      %v296 = vsel %vm292, %v230, 0.0
      %v297 = vadd.f32 %v295, %v296
      %v298 = vsel %vm292, %v231, 0.0
      %v299 = vadd.f32 %v297, %v298
      %v300 = vsel %vm292, %v232, 0.0
      %v301 = vadd.f32 %v299, %v300
      %v302 = vsel %vm292, %v233, 0.0
      %v303 = vadd.f32 %v301, %v302
      %v304 = vsel %vm292, %v234, 0.0
      %v305 = vadd.f32 %v303, %v304
      %v306 = vsel %vm292, %v235, 0.0
      %v307 = vadd.f32 %v305, %v306
      %v308 = vsel %vm292, %v236, 0.0
      %v309 = vadd.f32 %v307, %v308
      %v310 = vsel %vm292, %v237, 0.0
      %v311 = vadd.f32 %v309, %v310
      %v312 = vsel %vm292, %v238, 0.0
      %v313 = vadd.f32 %v311, %v312
      %v314 = vsel %vm292, %v239, 0.0
      %v315 = vadd.f32 %v313, %v314
      %v316 = vsel %vm292, %v240, 0.0
      %v317 = vadd.f32 %v315, %v316
      %v318 = vsel %vm292, %v241, 0.0
      %v319 = vadd.f32 %v317, %v318
      %v320 = vsel %vm292, %v242, 0.0
      %v321 = vadd.f32 %v319, %v320
      %v322 = vsel %vm292, %v243, 0.0
      %v323 = vadd.f32 %v321, %v322
      %v324 = vsel %vm292, %v244, 0.0
      %v325 = vadd.f32 %v323, %v324
      %v326 = vsel %vm292, %v245, 0.0
      %v327 = vadd.f32 %v325, %v326
      %v328 = vsel %vm292, %v246, 0.0
      %v329 = vadd.f32 %v327, %v328
      %v330 = vsel %vm292, %v247, 0.0
      %v331 = vadd.f32 %v329, %v330
      %v332 = vsel %vm292, %v248, 0.0
      %v333 = vadd.f32 %v331, %v332
      %v334 = vsel %vm292, %v249, 0.0
      %v335 = vadd.f32 %v333, %v334
      %v336 = vsel %vm292, %v250, 0.0
      %v337 = vadd.f32 %v335, %v336
      %v338 = vsel %vm292, %v251, 0.0
      %v339 = vadd.f32 %v337, %v338
      %v340 = vsel %vm292, %v252, 0.0
      %v341 = vadd.f32 %v339, %v340
      %v342 = vsel %vm292, %v253, 0.0
      %v343 = vadd.f32 %v341, %v342
      %v344 = vsel %vm292, %v254, 0.0
      %v345 = vadd.f32 %v343, %v344
      %v346 = vsel %vm292, %v255, 0.0
      %v347 = vadd.f32 %v345, %v346
      %v348 = vsel %vm292, %v256, 0.0
      %v349 = vadd.f32 %v347, %v348
      %v350 = vsel %vm292, %v257, 0.0
      %v351 = vadd.f32 %v349, %v350
      %v352 = vsel %vm292, %v258, 0.0
      %v353 = vadd.f32 %v351, %v352
      %v354 = vsel %vm292, %v259, 0.0
      %v355 = vadd.f32 %v353, %v354
      %v356 = vsel %vm292, %v260, 0.0
      %v357 = vadd.f32 %v355, %v356
      %v358 = vsel %vm292, %v261, 0.0
      %v359 = vadd.f32 %v357, %v358
      %v360 = vsel %vm292, %v262, 0.0
      %v361 = vadd.f32 %v359, %v360
      %v362 = vsel %vm292, %v263, 0.0
      %v363 = vadd.f32 %v361, %v362
      %v364 = vsel %vm292, %v264, 0.0
      %v365 = vadd.f32 %v363, %v364
      %v366 = vsel %vm292, %v265, 0.0
      %v367 = vadd.f32 %v365, %v366
      %v368 = vsel %vm292, %v266, 0.0
      %v369 = vadd.f32 %v367, %v368
      %v370 = vsel %vm292, %v267, 0.0
      %v371 = vadd.f32 %v369, %v370
      %v372 = vsel %vm292, %v268, 0.0
      %v373 = vadd.f32 %v371, %v372
      %v374 = vsel %vm292, %v269, 0.0
      %v375 = vadd.f32 %v373, %v374
      %v376 = vsel %vm292, %v270, 0.0
      %v377 = vadd.f32 %v375, %v376
      %v378 = vsel %vm292, %v271, 0.0
      %v379 = vadd.f32 %v377, %v378
      %v380 = vsel %vm292, %v272, 0.0
      %v381 = vadd.f32 %v379, %v380
      %v382 = vsel %vm292, %v273, 0.0
      %v383 = vadd.f32 %v381, %v382
      %v384 = vsel %vm292, %v274, 0.0
      %v385 = vadd.f32 %v383, %v384
      %v386 = vsel %vm292, %v275, 0.0
      %v387 = vadd.f32 %v385, %v386
      %v388 = vsel %vm292, %v276, 0.0
      %v389 = vadd.f32 %v387, %v388
      %v390 = vsel %vm292, %v277, 0.0
      %v391 = vadd.f32 %v389, %v390
      %v392 = vsel %vm292, %v278, 0.0
      %v393 = vadd.f32 %v391, %v392
      %v394 = vsel %vm292, %v279, 0.0
      %v395 = vadd.f32 %v393, %v394
      %v396 = vsel %vm292, %v280, 0.0
      %v397 = vadd.f32 %v395, %v396
      %v398 = vsel %vm292, %v281, 0.0
      %v399 = vadd.f32 %v397, %v398
      %v400 = vsel %vm292, %v282, 0.0
      %v401 = vadd.f32 %v399, %v400
      %v402 = vsel %vm292, %v283, 0.0
      %v403 = vadd.f32 %v401, %v402
      %v404 = vsel %vm292, %v284, 0.0
      %v405 = vadd.f32 %v403, %v404
      %v406 = vsel %vm292, %v285, 0.0
      %v407 = vadd.f32 %v405, %v406
      %v408 = vsel %vm292, %v286, 0.0
      %v409 = vadd.f32 %v407, %v408
      %v410 = vsel %vm292, %v287, 0.0
      %v411 = vadd.f32 %v409, %v410
      %v412 = vsel %vm292, %v288, 0.0
      %v413 = vadd.f32 %v411, %v412
      %v414 = vsel %vm292, %v289, 0.0
      %v415 = vadd.f32 %v413, %v414
      %v416 = vsel %vm292, %v290, 0.0
      %v417 = vadd.f32 %v415, %v416
      %v418 = vsel %vm292, %v291, 0.0
      %v419 = vadd.f32 %v417, %v418
      %v420 = vrot.slane %v419, 4
      %v421 = vadd.f32 %v419, %v420
      %v422 = vrot.slane %v421, 2
      %v423 = vadd.f32 %v421, %v422
      %v424 = vrot.slane %v423, 1
      %v425 = vadd.f32 %v423, %v424
      %v426 = vmul.f32 %v228, %v228
      %v427 = vmul.f32 %v229, %v229
      %v428 = vmul.f32 %v230, %v230
      %v429 = vmul.f32 %v231, %v231
      %v430 = vmul.f32 %v232, %v232
      %v431 = vmul.f32 %v233, %v233
      %v432 = vmul.f32 %v234, %v234
      %v433 = vmul.f32 %v235, %v235
      %v434 = vmul.f32 %v236, %v236
      %v435 = vmul.f32 %v237, %v237
      %v436 = vmul.f32 %v238, %v238
      %v437 = vmul.f32 %v239, %v239
      %v438 = vmul.f32 %v240, %v240
      %v439 = vmul.f32 %v241, %v241
      %v440 = vmul.f32 %v242, %v242
      %v441 = vmul.f32 %v243, %v243
      %v442 = vmul.f32 %v244, %v244
      %v443 = vmul.f32 %v245, %v245
      %v444 = vmul.f32 %v246, %v246
      %v445 = vmul.f32 %v247, %v247
      %v446 = vmul.f32 %v248, %v248
      %v447 = vmul.f32 %v249, %v249
      %v448 = vmul.f32 %v250, %v250
      %v449 = vmul.f32 %v251, %v251
      %v450 = vmul.f32 %v252, %v252
      %v451 = vmul.f32 %v253, %v253
      %v452 = vmul.f32 %v254, %v254
      %v453 = vmul.f32 %v255, %v255
      %v454 = vmul.f32 %v256, %v256
      %v455 = vmul.f32 %v257, %v257
      %v456 = vmul.f32 %v258, %v258
      %v457 = vmul.f32 %v259, %v259
      %v458 = vmul.f32 %v260, %v260
      %v459 = vmul.f32 %v261, %v261
      %v460 = vmul.f32 %v262, %v262
      %v461 = vmul.f32 %v263, %v263
      %v462 = vmul.f32 %v264, %v264
      %v463 = vmul.f32 %v265, %v265
      %v464 = vmul.f32 %v266, %v266
      %v465 = vmul.f32 %v267, %v267
      %v466 = vmul.f32 %v268, %v268
      %v467 = vmul.f32 %v269, %v269
      %v468 = vmul.f32 %v270, %v270
      %v469 = vmul.f32 %v271, %v271
      %v470 = vmul.f32 %v272, %v272
      %v471 = vmul.f32 %v273, %v273
      %v472 = vmul.f32 %v274, %v274
      %v473 = vmul.f32 %v275, %v275
      %v474 = vmul.f32 %v276, %v276
      %v475 = vmul.f32 %v277, %v277
      %v476 = vmul.f32 %v278, %v278
      %v477 = vmul.f32 %v279, %v279
      %v478 = vmul.f32 %v280, %v280
      %v479 = vmul.f32 %v281, %v281
      %v480 = vmul.f32 %v282, %v282
      %v481 = vmul.f32 %v283, %v283
      %v482 = vmul.f32 %v284, %v284
      %v483 = vmul.f32 %v285, %v285
      %v484 = vmul.f32 %v286, %v286
      %v485 = vmul.f32 %v287, %v287
      %v486 = vmul.f32 %v288, %v288
      %v487 = vmul.f32 %v289, %v289
      %v488 = vmul.f32 %v290, %v290
      %v489 = vmul.f32 %v291, %v291
      %v490 = vsel %vm292, %v426, 0.0
      %v491 = vsel %vm292, %v427, 0.0
      %v492 = vadd.f32 %v490, %v491
      %v493 = vsel %vm292, %v428, 0.0
      %v494 = vadd.f32 %v492, %v493
      %v495 = vsel %vm292, %v429, 0.0
      %v496 = vadd.f32 %v494, %v495
      %v497 = vsel %vm292, %v430, 0.0
      %v498 = vadd.f32 %v496, %v497
      %v499 = vsel %vm292, %v431, 0.0
      %v500 = vadd.f32 %v498, %v499
      %v501 = vsel %vm292, %v432, 0.0
      %v502 = vadd.f32 %v500, %v501
      %v503 = vsel %vm292, %v433, 0.0
      %v504 = vadd.f32 %v502, %v503
      %v505 = vsel %vm292, %v434, 0.0
      %v506 = vadd.f32 %v504, %v505
      %v507 = vsel %vm292, %v435, 0.0
      %v508 = vadd.f32 %v506, %v507
      %v509 = vsel %vm292, %v436, 0.0
      %v510 = vadd.f32 %v508, %v509
      %v511 = vsel %vm292, %v437, 0.0
      %v512 = vadd.f32 %v510, %v511
      %v513 = vsel %vm292, %v438, 0.0
      %v514 = vadd.f32 %v512, %v513
      %v515 = vsel %vm292, %v439, 0.0
      %v516 = vadd.f32 %v514, %v515
      %v517 = vsel %vm292, %v440, 0.0
      %v518 = vadd.f32 %v516, %v517
      %v519 = vsel %vm292, %v441, 0.0
      %v520 = vadd.f32 %v518, %v519
      %v521 = vsel %vm292, %v442, 0.0
      %v522 = vadd.f32 %v520, %v521
      %v523 = vsel %vm292, %v443, 0.0
      %v524 = vadd.f32 %v522, %v523
      %v525 = vsel %vm292, %v444, 0.0
      %v526 = vadd.f32 %v524, %v525
      %v527 = vsel %vm292, %v445, 0.0
      %v528 = vadd.f32 %v526, %v527
      %v529 = vsel %vm292, %v446, 0.0
      %v530 = vadd.f32 %v528, %v529
      %v531 = vsel %vm292, %v447, 0.0
      %v532 = vadd.f32 %v530, %v531
      %v533 = vsel %vm292, %v448, 0.0
      %v534 = vadd.f32 %v532, %v533
      %v535 = vsel %vm292, %v449, 0.0
      %v536 = vadd.f32 %v534, %v535
      %v537 = vsel %vm292, %v450, 0.0
      %v538 = vadd.f32 %v536, %v537
      %v539 = vsel %vm292, %v451, 0.0
      %v540 = vadd.f32 %v538, %v539
      %v541 = vsel %vm292, %v452, 0.0
      %v542 = vadd.f32 %v540, %v541
      %v543 = vsel %vm292, %v453, 0.0
      %v544 = vadd.f32 %v542, %v543
      %v545 = vsel %vm292, %v454, 0.0
      %v546 = vadd.f32 %v544, %v545
      %v547 = vsel %vm292, %v455, 0.0
      %v548 = vadd.f32 %v546, %v547
      %v549 = vsel %vm292, %v456, 0.0
      %v550 = vadd.f32 %v548, %v549
      %v551 = vsel %vm292, %v457, 0.0
      %v552 = vadd.f32 %v550, %v551
      %v553 = vsel %vm292, %v458, 0.0
      %v554 = vadd.f32 %v552, %v553
      %v555 = vsel %vm292, %v459, 0.0
      %v556 = vadd.f32 %v554, %v555
      %v557 = vsel %vm292, %v460, 0.0
      %v558 = vadd.f32 %v556, %v557
      %v559 = vsel %vm292, %v461, 0.0
      %v560 = vadd.f32 %v558, %v559
      %v561 = vsel %vm292, %v462, 0.0
      %v562 = vadd.f32 %v560, %v561
      %v563 = vsel %vm292, %v463, 0.0
      %v564 = vadd.f32 %v562, %v563
      %v565 = vsel %vm292, %v464, 0.0
      %v566 = vadd.f32 %v564, %v565
      %v567 = vsel %vm292, %v465, 0.0
      %v568 = vadd.f32 %v566, %v567
      %v569 = vsel %vm292, %v466, 0.0
      %v570 = vadd.f32 %v568, %v569
      %v571 = vsel %vm292, %v467, 0.0
      %v572 = vadd.f32 %v570, %v571
      %v573 = vsel %vm292, %v468, 0.0
      %v574 = vadd.f32 %v572, %v573
      %v575 = vsel %vm292, %v469, 0.0
      %v576 = vadd.f32 %v574, %v575
      %v577 = vsel %vm292, %v470, 0.0
      %v578 = vadd.f32 %v576, %v577
      %v579 = vsel %vm292, %v471, 0.0
      %v580 = vadd.f32 %v578, %v579
      %v581 = vsel %vm292, %v472, 0.0
      %v582 = vadd.f32 %v580, %v581
      %v583 = vsel %vm292, %v473, 0.0
      %v584 = vadd.f32 %v582, %v583
      %v585 = vsel %vm292, %v474, 0.0
      %v586 = vadd.f32 %v584, %v585
      %v587 = vsel %vm292, %v475, 0.0
      %v588 = vadd.f32 %v586, %v587
      %v589 = vsel %vm292, %v476, 0.0
      %v590 = vadd.f32 %v588, %v589
      %v591 = vsel %vm292, %v477, 0.0
      %v592 = vadd.f32 %v590, %v591
      %v593 = vsel %vm292, %v478, 0.0
      %v594 = vadd.f32 %v592, %v593
      %v595 = vsel %vm292, %v479, 0.0
      %v596 = vadd.f32 %v594, %v595
      %v597 = vsel %vm292, %v480, 0.0
      %v598 = vadd.f32 %v596, %v597
      %v599 = vsel %vm292, %v481, 0.0
      %v600 = vadd.f32 %v598, %v599
      %v601 = vsel %vm292, %v482, 0.0
      %v602 = vadd.f32 %v600, %v601
      %v603 = vsel %vm292, %v483, 0.0
      %v604 = vadd.f32 %v602, %v603
      %v605 = vsel %vm292, %v484, 0.0
      %v606 = vadd.f32 %v604, %v605
      %v607 = vsel %vm292, %v485, 0.0
      %v608 = vadd.f32 %v606, %v607
      %v609 = vsel %vm292, %v486, 0.0
      %v610 = vadd.f32 %v608, %v609
      %v611 = vsel %vm292, %v487, 0.0
      %v612 = vadd.f32 %v610, %v611
      %v613 = vsel %vm292, %v488, 0.0
      %v614 = vadd.f32 %v612, %v613
      %v615 = vsel %vm292, %v489, 0.0
      %v616 = vadd.f32 %v614, %v615
      %v617 = vrot.slane %v616, 4
      %v618 = vadd.f32 %v616, %v617
      %v619 = vrot.slane %v618, 2
      %v620 = vadd.f32 %v618, %v619
      %v621 = vrot.slane %v620, 1
      %v622 = vadd.f32 %v620, %v621
      %v623 = vld [vmem:[%s3] sm:$0x3]
      %vm624 = vcmask 1040384
      %v625 = vsel %vm624, %v425, %v622
      %v626 = vadd.f32 %v623, %v625
      %vm627 = vcmask 58368
      %628 = vst.msk [vmem:[%s3] sm:$0x3] %vm627, %v626
      %p629 = scmp.eq.s32.totalorder %s14, 3
      // Predicated region
      $region37: #{generator_forward.17} parent=31 // pred_check
        %p630 = pneg %p629
      $region38: #{generator_forward.17} parent=31 // pred_check_branch
        %632 = sbr.rel (%p630) target = $region40
      $region39: #{generator_forward.17} parent=31 // pred_region
        %v633 = vld [vmem:[%s3] sm:$0x3]
        %v634 = vrcp.pop 2048.0
        %v635 = vmul.f32 %v633, %v634
        %v636 = vmul.f32 %v635, %v635
        %v638 = vrot.slane %v636, 7
        %v640 = vsub.f32 %v635, %v638
        %v641 = vmax.f32 %v640, 0.0
        %v642 = vld [vmem:[%s1] sm:$0x1]
        %v643 = vadd.f32 %v641, 1e-05
        %v644 = vrsqrt.pop %v643
        %v647 = vunpack.c.l.s4 1966171168
        %v648 = vunpack.c.0.s8 %v647
        %v649 = vlaneseq
        %v650 = vshrl.u32 %v649, 7
        %v651 = vsub.s32 %v648, %v650
        %v652 = vrot.slane %v644, %v651
        %v653 = vcombine.high %v652, %v652
        %v655 = vunpack.c.l.s4 1966171168
        %v656 = vunpack.c.0.s8 %v655
        %v657 = vlaneseq
        %v658 = vshrl.u32 %v657, 7
        %v659 = vsub.s32 %v656, %v658
        %v660 = vrot.slane %v653, %v659
        %v662 = vmul.f32 %v642, %v660
        %v663 = vld [vmem:[%s2] sm:$0x1]
        %v664 = vmul.f32 %v635, %v662
        %v665 = vsub.f32 %v663, %v664
        %v667 = vlaneseq
        %v668 = vshrl.u32 %v667, 7
        %v669 = vsub.s32 0, %v668
        %v670 = vrot.slane %v665, %v669
        %v672 = vsel %vm624, %v662, %v670
        %673 = vst.msk [vmem:[%s3] sm:$0x3] %vm627, %v672
      $region40: #{generator_forward.17} parent=31 // pred_fallthru
        _
      // Predicated region
      $region41: #{generator_forward.17} parent=31 // pred_check
        %p674 = pneg %p95
      $region42: #{generator_forward.17} parent=31 // pred_check_branch
        %676 = sbr.rel (%p674) target = $region44
      $region43: #{generator_forward.17} parent=31 // pred_region
        _
      $region44: #{generator_forward.17} parent=31 // pred_fallthru
        _
      // Predicated region
      $region45: #{generator_forward.17} parent=31 // pred_check
        %p677 = pneg %p95
      $region46: #{generator_forward.17} parent=31 // pred_check_branch
        %679 = sbr.rel (%p677) target = $region48
      $region47: #{generator_forward.17} parent=31 // pred_region
        _
      $region48: #{generator_forward.17} parent=31 // pred_fallthru
        _
    $region32: #{generator_forward.17} parent=5 // pred_fallthru
      _
    %p680 = scmp.le.s32.totalorder 2, %s9
    // Predicated region
    $region49: #{generator_forward.17} parent=5 // pred_check
      %p681 = pneg %p680
    $region50: #{generator_forward.17} parent=5 // pred_check_branch
      %683 = sbr.rel (%p681) target = $region52
    $region51: #{generator_forward.17} parent=5 // pred_region
      %s684 = ssub.s32 %s9, 2
    $region52: #{generator_forward.17} parent=5 // pred_fallthru
      _
  $region6: #{generator_forward.17} parent=0 // loop_footer
    %s13 = sadd.s32 1, %s9
  $region7: #{generator_forward.17} parent=0 // loop_footer_branch
    %8 = sbr.rel target = $region3
  $region8: #{generator_forward.17} parent=0 // loop_exit
    _

// kernel: generator_forward.18
$region0: #{generator_forward.18}
  #allocation0 [shape = 'u32[]', space=smem, size = 0x4, offset = 0x4, fixed_abs, tag = 'smem constant byte address 0x4 - core index']
  #allocation1 [shape = 'u32[144,128]{1,0:T(1,128)}', space=vmem, size = 0x12000, scoped, tag = 'internal scratch']
  %s0 = inlined_call_operand.vmem [shape: bf16[2048,8], index: 0, kind: input, shape index: {}]
  %s1 = inlined_call_operand.vmem [shape: bf16[8,128], index: 1, kind: input, shape index: {}]
  %s2 = inlined_call_operand.vmem [shape: f32[2,8], index: 2, kind: input, shape index: {}]
  %s3 = inlined_call_operand.vmem [shape: bf16[2048,128], index: 3, kind: output, shape index: {}]
  %s4 = sld [smem:[#allocation0]]
  $region45: #{generator_forward.18} parent=0
    _
  %s6 = ssub.s32 1, %s4
  %s7 = scalar_select 0, %s6, %s4
  loop: start=0, step=1, limit=6
  $region2: #{generator_forward.18} parent=0 // loop_pre_header
    _
  $region3: #{generator_forward.18} parent=0 // loop_header
    %s9 = sphi 0, %s13
    %p10 = scmp.ge.s32.totalorder %s9, 6
    %s19 = sphi 0, %s21
    %s22 = sphi 0, %s19
    %s23 = sphi 0, %s22
    %s39 = sphi 0, %s23
    %s43 = sphi 0, %s43
    %s45 = sphi 0, %s43
    %s46 = sphi 0, %s45
    %s60 = sphi 0, %s46
    %s64 = sphi 0, %s64
    %s66 = sphi 0, %s64
    %s67 = sphi 0, %s66
    %s81 = sphi 0, %s67
    %s87 = sphi 0, %s89
    %s90 = sphi 0, %s87
    %s91 = sphi 0, %s90
    %s107 = sphi 0, %s91
  $region4: #{generator_forward.18} parent=0 // loop_header_branch
    %12 = sbr.rel (%p10) target = $region8
  $region5: #{generator_forward.18} parent=0 // loop_body
    %s14 = ssub.s32 %s9, 1
    %s15 = ssub.s32 %s9, 2
    %s16 = sadd.s32 %s9, 1
    %s17 = ssub.s32 %s9, %s16
    %p18 = scmp.eq.s32.totalorder %s17, 0
    %s20 = sadd.s32 %s19, 1
    %s21 = scalar_select %p18, %s19, %s20
    %p24 = pneg %p18
    %p25 = scmp.eq.s32.totalorder %s9, 3
    %p26 = por %p24, %p25
    %p27 = scmp.ne.s32.totalorder %s19, %s22
    %p28 = scmp.eq.s32.totalorder %s9, 0
    %p29 = por %p27, %p28
    %p30 = scmp.ne.s32.totalorder %s19, %s22
    %p31 = scmp.eq.s32.totalorder %s14, 3
    %p32 = por %p30, %p31
    %p33 = scmp.ne.s32.totalorder %s22, %s23
    %p34 = scmp.eq.s32.totalorder %s14, 0
    %p35 = por %p33, %p34
    %p36 = scmp.ne.s32.totalorder %s22, %s23
    %p37 = scmp.eq.s32.totalorder %s15, 3
    %p38 = por %p36, %p37
    %p40 = scmp.ne.s32.totalorder %s23, %s39
    %p41 = scmp.eq.s32.totalorder %s15, 0
    %p42 = por %p40, %p41
    %s44 = sadd.s32 %s43, 1
    %p47 = scmp.eq.s32.totalorder %s9, 3
    %p48 = scmp.ne.s32.totalorder %s43, %s45
    %p49 = scmp.eq.s32.totalorder %s9, 0
    %p50 = por %p48, %p49
    %p51 = scmp.ne.s32.totalorder %s43, %s45
    %p52 = scmp.eq.s32.totalorder %s14, 3
    %p53 = por %p51, %p52
    %p54 = scmp.ne.s32.totalorder %s45, %s46
    %p55 = scmp.eq.s32.totalorder %s14, 0
    %p56 = por %p54, %p55
    %p57 = scmp.ne.s32.totalorder %s45, %s46
    %p58 = scmp.eq.s32.totalorder %s15, 3
    %p59 = por %p57, %p58
    %p61 = scmp.ne.s32.totalorder %s46, %s60
    %p62 = scmp.eq.s32.totalorder %s15, 0
    %p63 = por %p61, %p62
    %s65 = sadd.s32 %s64, 1
    %p68 = scmp.eq.s32.totalorder %s9, 3
    %p69 = scmp.ne.s32.totalorder %s64, %s66
    %p70 = scmp.eq.s32.totalorder %s9, 0
    %p71 = por %p69, %p70
    %p72 = scmp.ne.s32.totalorder %s64, %s66
    %p73 = scmp.eq.s32.totalorder %s14, 3
    %p74 = por %p72, %p73
    %p75 = scmp.ne.s32.totalorder %s66, %s67
    %p76 = scmp.eq.s32.totalorder %s14, 0
    %p77 = por %p75, %p76
    %p78 = scmp.ne.s32.totalorder %s66, %s67
    %p79 = scmp.eq.s32.totalorder %s15, 3
    %p80 = por %p78, %p79
    %p82 = scmp.ne.s32.totalorder %s67, %s81
    %p83 = scmp.eq.s32.totalorder %s15, 0
    %p84 = por %p82, %p83
    %s85 = ssub.s32 %s9, %s16
    %p86 = scmp.eq.s32.totalorder %s85, 0
    %s88 = sadd.s32 %s87, 1
    %s89 = scalar_select %p86, %s87, %s88
    %p92 = pneg %p86
    %p93 = scmp.eq.s32.totalorder %s9, 3
    %p94 = por %p92, %p93
    %p95 = scmp.ne.s32.totalorder %s87, %s90
    %p96 = scmp.eq.s32.totalorder %s9, 0
    %p97 = por %p95, %p96
    %p98 = scmp.ne.s32.totalorder %s87, %s90
    %p99 = scmp.eq.s32.totalorder %s14, 3
    %p100 = por %p98, %p99
    %p101 = scmp.ne.s32.totalorder %s90, %s91
    %p102 = scmp.eq.s32.totalorder %s14, 0
    %p103 = por %p101, %p102
    %p104 = scmp.ne.s32.totalorder %s90, %s91
    %p105 = scmp.eq.s32.totalorder %s15, 3
    %p106 = por %p104, %p105
    %p108 = scmp.ne.s32.totalorder %s91, %s107
    %p109 = scmp.eq.s32.totalorder %s15, 0
    %p110 = por %p108, %p109
    %p111 = scmp.le.s32.totalorder 1, %s9
    %p112 = scmp.lt.s32.totalorder %s9, 5
    %p113 = pnand %p111, %p112
    %p114 = pneg %p113
    // Predicated region
    $region9: #{generator_forward.18} parent=5 // pred_check
      _
    $region10: #{generator_forward.18} parent=5 // pred_check_branch
      %116 = sbr.rel (%p113) target = $region12
    $region11: #{generator_forward.18} parent=5 // pred_region
      %s117 = ssub.s32 %s9, 1
      // Predicated region
      $region13: #{generator_forward.18} parent=11 // pred_check
        %p118 = pneg %p56
      $region14: #{generator_forward.18} parent=11 // pred_check_branch
        %120 = sbr.rel (%p118) target = $region16
      $region15: #{generator_forward.18} parent=11 // pred_region
        _
      $region16: #{generator_forward.18} parent=11 // pred_fallthru
        _
      // Predicated region
      $region17: #{generator_forward.18} parent=11 // pred_check
        %p121 = pneg %p77
      $region18: #{generator_forward.18} parent=11 // pred_check_branch
        %123 = sbr.rel (%p121) target = $region20
      $region19: #{generator_forward.18} parent=11 // pred_region
        _
      $region20: #{generator_forward.18} parent=11 // pred_fallthru
        _
    $region12: #{generator_forward.18} parent=5 // pred_fallthru
      _
    %p124 = scmp.lt.s32.totalorder %s9, 4
    // Predicated region
    $region21: #{generator_forward.18} parent=5 // pred_check
      %p125 = pneg %p124
    $region22: #{generator_forward.18} parent=5 // pred_check_branch
      %127 = sbr.rel (%p125) target = $region24
    $region23: #{generator_forward.18} parent=5 // pred_region
      // Predicated region
      $region25: #{generator_forward.18} parent=23 // pred_check
        %p128 = pneg %p29
      $region26: #{generator_forward.18} parent=23 // pred_check_branch
        %130 = sbr.rel (%p128) target = $region28
      $region27: #{generator_forward.18} parent=23 // pred_region
        %s131 = smul.u32 64, %s9
        %p132 = scmp.lt.s32.totalorder %s131, 255
        %s133 = scalar_select %p132, %s131, 255
        %s134 = smul.addr %s133, 4
        %s135 = scalar_lea.vmem %s0, %s134
        %s136 = smul.u32 64, %s9
      $region28: #{generator_forward.18} parent=23 // pred_fallthru
        _
    $region24: #{generator_forward.18} parent=5 // pred_fallthru
      _
    %p137 = scmp.le.s32.totalorder 1, %s9
    %p138 = scmp.lt.s32.totalorder %s9, 5
    %p139 = pnand %p137, %p138
    %p140 = pneg %p139
    // Predicated region
    $region29: #{generator_forward.18} parent=5 // pred_check
      _
    $region30: #{generator_forward.18} parent=5 // pred_check_branch
      %142 = sbr.rel (%p139) target = $region32
    $region31: #{generator_forward.18} parent=5 // pred_region
      %s143 = ssub.s32 %s9, 1
      %s144 = smul.u32 64, %s14
      %p145 = scmp.lt.s32.totalorder %s144, 255
      %s146 = scalar_select %p145, %s144, 255
      %s147 = smul.addr %s146, 4
      %s148 = scalar_lea.vmem %s0, %s147
      %p149 = pneg %p35
      %p150 = pneg %p32
      %p151 = pneg %p56
      %p152 = pneg %p53
      %p153 = pneg %p77
      %p154 = pneg %p74
      %p155 = pneg %p103
      %p156 = pneg %p100
      %s157 = smul.u32 64, %s14
      %p158 = scmp.lt.s32.totalorder %s157, 255
      %s159 = scalar_select %p158, %s157, 255
      %s160 = smul.addr %s159, 4
      %s161 = scalar_lea.vmem %s3, %s160
      %s162 = smul.u32 64, %s14
      %p163 = scmp.lt.s32.totalorder %s162, 255
      %s164 = scalar_select %p163, %s162, 255
      %s165 = smul.addr %s164, 4
      %s166 = scalar_lea.vmem %s0, %s165
      %s167 = smul.u32 64, %s14
      %s168 = smul.u32 64, %s14
      %p169 = scmp.lt.s32.totalorder %s168, 255
      %s170 = scalar_select %p169, %s168, 255
      %s171 = smul.addr %s170, 4
      %s172 = scalar_lea.vmem %s3, %s171
      %s173 = smul.u32 64, %s14
      %v175 = vld [vmem:[%s2] sm:$0x3]
      %v176 = vld [vmem:[%s166] sm:$0xf]
      %v177 = vld [vmem:[%s166 + $0x4] sm:$0xf]
      %v178 = vld [vmem:[%s166 + $0x8] sm:$0xf]
      %v179 = vld [vmem:[%s166 + $0xc] sm:$0xf]
      %v180 = vld [vmem:[%s166 + $0x10] sm:$0xf]
      %v181 = vld [vmem:[%s166 + $0x14] sm:$0xf]
      %v182 = vld [vmem:[%s166 + $0x18] sm:$0xf]
      %v183 = vld [vmem:[%s166 + $0x1c] sm:$0xf]
      %v184 = vld [vmem:[%s166 + $0x20] sm:$0xf]
      %v185 = vld [vmem:[%s166 + $0x24] sm:$0xf]
      %v186 = vld [vmem:[%s166 + $0x28] sm:$0xf]
      %v187 = vld [vmem:[%s166 + $0x2c] sm:$0xf]
      %v188 = vld [vmem:[%s166 + $0x30] sm:$0xf]
      %v189 = vld [vmem:[%s166 + $0x34] sm:$0xf]
      %v190 = vld [vmem:[%s166 + $0x38] sm:$0xf]
      %v191 = vld [vmem:[%s166 + $0x3c] sm:$0xf]
      %v192 = vld [vmem:[%s166 + $0x40] sm:$0xf]
      %v193 = vld [vmem:[%s166 + $0x44] sm:$0xf]
      %v194 = vld [vmem:[%s166 + $0x48] sm:$0xf]
      %v195 = vld [vmem:[%s166 + $0x4c] sm:$0xf]
      %v196 = vld [vmem:[%s166 + $0x50] sm:$0xf]
      %v197 = vld [vmem:[%s166 + $0x54] sm:$0xf]
      %v198 = vld [vmem:[%s166 + $0x58] sm:$0xf]
      %v199 = vld [vmem:[%s166 + $0x5c] sm:$0xf]
      %v200 = vld [vmem:[%s166 + $0x60] sm:$0xf]
      %v201 = vld [vmem:[%s166 + $0x64] sm:$0xf]
      %v202 = vld [vmem:[%s166 + $0x68] sm:$0xf]
      %v203 = vld [vmem:[%s166 + $0x6c] sm:$0xf]
      %v204 = vld [vmem:[%s166 + $0x70] sm:$0xf]
      %v205 = vld [vmem:[%s166 + $0x74] sm:$0xf]
      %v206 = vld [vmem:[%s166 + $0x78] sm:$0xf]
      %v207 = vld [vmem:[%s166 + $0x7c] sm:$0xf]
      %v208 = vld [vmem:[%s166 + $0x80] sm:$0xf]
      %v209 = vld [vmem:[%s166 + $0x84] sm:$0xf]
      %v210 = vld [vmem:[%s166 + $0x88] sm:$0xf]
      %v211 = vld [vmem:[%s166 + $0x8c] sm:$0xf]
      %v212 = vld [vmem:[%s166 + $0x90] sm:$0xf]
      %v213 = vld [vmem:[%s166 + $0x94] sm:$0xf]
      %v214 = vld [vmem:[%s166 + $0x98] sm:$0xf]
      %v215 = vld [vmem:[%s166 + $0x9c] sm:$0xf]
      %v216 = vld [vmem:[%s166 + $0xa0] sm:$0xf]
      %v217 = vld [vmem:[%s166 + $0xa4] sm:$0xf]
      %v218 = vld [vmem:[%s166 + $0xa8] sm:$0xf]
      %v219 = vld [vmem:[%s166 + $0xac] sm:$0xf]
      %v220 = vld [vmem:[%s166 + $0xb0] sm:$0xf]
      %v221 = vld [vmem:[%s166 + $0xb4] sm:$0xf]
      %v222 = vld [vmem:[%s166 + $0xb8] sm:$0xf]
      %v223 = vld [vmem:[%s166 + $0xbc] sm:$0xf]
      %v224 = vld [vmem:[%s166 + $0xc0] sm:$0xf]
      %v225 = vld [vmem:[%s166 + $0xc4] sm:$0xf]
      %v226 = vld [vmem:[%s166 + $0xc8] sm:$0xf]
      %v227 = vld [vmem:[%s166 + $0xcc] sm:$0xf]
      %v228 = vld [vmem:[%s166 + $0xd0] sm:$0xf]
      %v229 = vld [vmem:[%s166 + $0xd4] sm:$0xf]
      %v230 = vld [vmem:[%s166 + $0xd8] sm:$0xf]
      %v231 = vld [vmem:[%s166 + $0xdc] sm:$0xf]
      %v232 = vld [vmem:[%s166 + $0xe0] sm:$0xf]
      %v233 = vld [vmem:[%s166 + $0xe4] sm:$0xf]
      %v234 = vld [vmem:[%s166 + $0xe8] sm:$0xf]
      %v235 = vld [vmem:[%s166 + $0xec] sm:$0xf]
      %v236 = vld [vmem:[%s166 + $0xf0] sm:$0xf]
      %v237 = vld [vmem:[%s166 + $0xf4] sm:$0xf]
      %v238 = vld [vmem:[%s166 + $0xf8] sm:$0xf]
      %v239 = vld [vmem:[%s166 + $0xfc] sm:$0xf]
      %v240 = vunpack.c.l.bf16 %v176
      %v241 = vunpack.c.l.bf16 %v177
      %v242 = vunpack.c.l.bf16 %v178
      %v243 = vunpack.c.l.bf16 %v179
      %v244 = vunpack.c.l.bf16 %v180
      %v245 = vunpack.c.l.bf16 %v181
      %v246 = vunpack.c.l.bf16 %v182
      %v247 = vunpack.c.l.bf16 %v183
      %v248 = vunpack.c.l.bf16 %v184
      %v249 = vunpack.c.l.bf16 %v185
      %v250 = vunpack.c.l.bf16 %v186
      %v251 = vunpack.c.l.bf16 %v187
      %v252 = vunpack.c.l.bf16 %v188
      %v253 = vunpack.c.l.bf16 %v189
      %v254 = vunpack.c.l.bf16 %v190
      %v255 = vunpack.c.l.bf16 %v191
      %v256 = vunpack.c.l.bf16 %v192
      %v257 = vunpack.c.l.bf16 %v193
      %v258 = vunpack.c.l.bf16 %v194
      %v259 = vunpack.c.l.bf16 %v195
      %v260 = vunpack.c.l.bf16 %v196
      %v261 = vunpack.c.l.bf16 %v197
      %v262 = vunpack.c.l.bf16 %v198
      %v263 = vunpack.c.l.bf16 %v199
      %v264 = vunpack.c.l.bf16 %v200
      %v265 = vunpack.c.l.bf16 %v201
      %v266 = vunpack.c.l.bf16 %v202
      %v267 = vunpack.c.l.bf16 %v203
      %v268 = vunpack.c.l.bf16 %v204
      %v269 = vunpack.c.l.bf16 %v205
      %v270 = vunpack.c.l.bf16 %v206
      %v271 = vunpack.c.l.bf16 %v207
      %v272 = vunpack.c.l.bf16 %v208
      %v273 = vunpack.c.l.bf16 %v209
      %v274 = vunpack.c.l.bf16 %v210
      %v275 = vunpack.c.l.bf16 %v211
      %v276 = vunpack.c.l.bf16 %v212
      %v277 = vunpack.c.l.bf16 %v213
      %v278 = vunpack.c.l.bf16 %v214
      %v279 = vunpack.c.l.bf16 %v215
      %v280 = vunpack.c.l.bf16 %v216
      %v281 = vunpack.c.l.bf16 %v217
      %v282 = vunpack.c.l.bf16 %v218
      %v283 = vunpack.c.l.bf16 %v219
      %v284 = vunpack.c.l.bf16 %v220
      %v285 = vunpack.c.l.bf16 %v221
      %v286 = vunpack.c.l.bf16 %v222
      %v287 = vunpack.c.l.bf16 %v223
      %v288 = vunpack.c.l.bf16 %v224
      %v289 = vunpack.c.l.bf16 %v225
      %v290 = vunpack.c.l.bf16 %v226
      %v291 = vunpack.c.l.bf16 %v227
      %v292 = vunpack.c.l.bf16 %v228
      %v293 = vunpack.c.l.bf16 %v229
      %v294 = vunpack.c.l.bf16 %v230
      %v295 = vunpack.c.l.bf16 %v231
      %v296 = vunpack.c.l.bf16 %v232
      %v297 = vunpack.c.l.bf16 %v233
      %v298 = vunpack.c.l.bf16 %v234
      %v299 = vunpack.c.l.bf16 %v235
      %v300 = vunpack.c.l.bf16 %v236
      %v301 = vunpack.c.l.bf16 %v237
      %v302 = vunpack.c.l.bf16 %v238
      %v303 = vunpack.c.l.bf16 %v239
      %v304 = vlaneseq
      %v305 = vshrl.u32 %v304, 7
      %v306 = vsub.s32 0, %v305
      %v307 = vrot.slane %v175, %v306
      %v308 = vmul.f32 %v240, %v307
      %v309 = vmul.f32 %v241, %v307
      %v310 = vmul.f32 %v242, %v307
      %v311 = vmul.f32 %v243, %v307
      %v312 = vmul.f32 %v244, %v307
      %v313 = vmul.f32 %v245, %v307
      %v314 = vmul.f32 %v246, %v307
      %v315 = vmul.f32 %v247, %v307
      %v316 = vmul.f32 %v248, %v307
      %v317 = vmul.f32 %v249, %v307
      %v318 = vmul.f32 %v250, %v307
      %v319 = vmul.f32 %v251, %v307
      %v320 = vmul.f32 %v252, %v307
      %v321 = vmul.f32 %v253, %v307
      %v322 = vmul.f32 %v254, %v307
      %v323 = vmul.f32 %v255, %v307
      %v324 = vmul.f32 %v256, %v307
      %v325 = vmul.f32 %v257, %v307
      %v326 = vmul.f32 %v258, %v307
      %v327 = vmul.f32 %v259, %v307
      %v328 = vmul.f32 %v260, %v307
      %v329 = vmul.f32 %v261, %v307
      %v330 = vmul.f32 %v262, %v307
      %v331 = vmul.f32 %v263, %v307
      %v332 = vmul.f32 %v264, %v307
      %v333 = vmul.f32 %v265, %v307
      %v334 = vmul.f32 %v266, %v307
      %v335 = vmul.f32 %v267, %v307
      %v336 = vmul.f32 %v268, %v307
      %v337 = vmul.f32 %v269, %v307
      %v338 = vmul.f32 %v270, %v307
      %v339 = vmul.f32 %v271, %v307
      %v340 = vmul.f32 %v272, %v307
      %v341 = vmul.f32 %v273, %v307
      %v342 = vmul.f32 %v274, %v307
      %v343 = vmul.f32 %v275, %v307
      %v344 = vmul.f32 %v276, %v307
      %v345 = vmul.f32 %v277, %v307
      %v346 = vmul.f32 %v278, %v307
      %v347 = vmul.f32 %v279, %v307
      %v348 = vmul.f32 %v280, %v307
      %v349 = vmul.f32 %v281, %v307
      %v350 = vmul.f32 %v282, %v307
      %v351 = vmul.f32 %v283, %v307
      %v352 = vmul.f32 %v284, %v307
      %v353 = vmul.f32 %v285, %v307
      %v354 = vmul.f32 %v286, %v307
      %v355 = vmul.f32 %v287, %v307
      %v356 = vmul.f32 %v288, %v307
      %v357 = vmul.f32 %v289, %v307
      %v358 = vmul.f32 %v290, %v307
      %v359 = vmul.f32 %v291, %v307
      %v360 = vmul.f32 %v292, %v307
      %v361 = vmul.f32 %v293, %v307
      %v362 = vmul.f32 %v294, %v307
      %v363 = vmul.f32 %v295, %v307
      %v364 = vmul.f32 %v296, %v307
      %v365 = vmul.f32 %v297, %v307
      %v366 = vmul.f32 %v298, %v307
      %v367 = vmul.f32 %v299, %v307
      %v368 = vmul.f32 %v300, %v307
      %v369 = vmul.f32 %v301, %v307
      %v370 = vmul.f32 %v302, %v307
      %v371 = vmul.f32 %v303, %v307
      %v372 = vlaneseq
      %v373 = vshrl.u32 %v372, 7
      %v374 = vsub.s32 1, %v373
      %v375 = vrot.slane %v175, %v374
      %v376 = vadd.f32 %v308, %v375
      %v377 = vadd.f32 %v309, %v375
      %v378 = vadd.f32 %v310, %v375
      %v379 = vadd.f32 %v311, %v375
      %v380 = vadd.f32 %v312, %v375
      %v381 = vadd.f32 %v313, %v375
      %v382 = vadd.f32 %v314, %v375
      %v383 = vadd.f32 %v315, %v375
      %v384 = vadd.f32 %v316, %v375
      %v385 = vadd.f32 %v317, %v375
      %v386 = vadd.f32 %v318, %v375
      %v387 = vadd.f32 %v319, %v375
      %v388 = vadd.f32 %v320, %v375
      %v389 = vadd.f32 %v321, %v375
      %v390 = vadd.f32 %v322, %v375
      %v391 = vadd.f32 %v323, %v375
      %v392 = vadd.f32 %v324, %v375
      %v393 = vadd.f32 %v325, %v375
      %v394 = vadd.f32 %v326, %v375
      %v395 = vadd.f32 %v327, %v375
      %v396 = vadd.f32 %v328, %v375
      %v397 = vadd.f32 %v329, %v375
      %v398 = vadd.f32 %v330, %v375
      %v399 = vadd.f32 %v331, %v375
      %v400 = vadd.f32 %v332, %v375
      %v401 = vadd.f32 %v333, %v375
      %v402 = vadd.f32 %v334, %v375
      %v403 = vadd.f32 %v335, %v375
      %v404 = vadd.f32 %v336, %v375
      %v405 = vadd.f32 %v337, %v375
      %v406 = vadd.f32 %v338, %v375
      %v407 = vadd.f32 %v339, %v375
      %v408 = vadd.f32 %v340, %v375
      %v409 = vadd.f32 %v341, %v375
      %v410 = vadd.f32 %v342, %v375
      %v411 = vadd.f32 %v343, %v375
      %v412 = vadd.f32 %v344, %v375
      %v413 = vadd.f32 %v345, %v375
      %v414 = vadd.f32 %v346, %v375
      %v415 = vadd.f32 %v347, %v375
      %v416 = vadd.f32 %v348, %v375
      %v417 = vadd.f32 %v349, %v375
      %v418 = vadd.f32 %v350, %v375
      %v419 = vadd.f32 %v351, %v375
      %v420 = vadd.f32 %v352, %v375
      %v421 = vadd.f32 %v353, %v375
      %v422 = vadd.f32 %v354, %v375
      %v423 = vadd.f32 %v355, %v375
      %v424 = vadd.f32 %v356, %v375
      %v425 = vadd.f32 %v357, %v375
      %v426 = vadd.f32 %v358, %v375
      %v427 = vadd.f32 %v359, %v375
      %v428 = vadd.f32 %v360, %v375
      %v429 = vadd.f32 %v361, %v375
      %v430 = vadd.f32 %v362, %v375
      %v431 = vadd.f32 %v363, %v375
      %v432 = vadd.f32 %v364, %v375
      %v433 = vadd.f32 %v365, %v375
      %v434 = vadd.f32 %v366, %v375
      %v435 = vadd.f32 %v367, %v375
      %v436 = vadd.f32 %v368, %v375
      %v437 = vadd.f32 %v369, %v375
      %v438 = vadd.f32 %v370, %v375
      %v439 = vadd.f32 %v371, %v375
      %vm440 = vcmp.ge.f32.partialorder %v376, 0.0
      %vm441 = vcmp.ge.f32.partialorder %v377, 0.0
      %vm442 = vcmp.ge.f32.partialorder %v378, 0.0
      %vm443 = vcmp.ge.f32.partialorder %v379, 0.0
      %vm444 = vcmp.ge.f32.partialorder %v380, 0.0
      %vm445 = vcmp.ge.f32.partialorder %v381, 0.0
      %vm446 = vcmp.ge.f32.partialorder %v382, 0.0
      %vm447 = vcmp.ge.f32.partialorder %v383, 0.0
      %vm448 = vcmp.ge.f32.partialorder %v384, 0.0
      %vm449 = vcmp.ge.f32.partialorder %v385, 0.0
      %vm450 = vcmp.ge.f32.partialorder %v386, 0.0
      %vm451 = vcmp.ge.f32.partialorder %v387, 0.0
      %vm452 = vcmp.ge.f32.partialorder %v388, 0.0
      %vm453 = vcmp.ge.f32.partialorder %v389, 0.0
      %vm454 = vcmp.ge.f32.partialorder %v390, 0.0
      %vm455 = vcmp.ge.f32.partialorder %v391, 0.0
      %vm456 = vcmp.ge.f32.partialorder %v392, 0.0
      %vm457 = vcmp.ge.f32.partialorder %v393, 0.0
      %vm458 = vcmp.ge.f32.partialorder %v394, 0.0
      %vm459 = vcmp.ge.f32.partialorder %v395, 0.0
      %vm460 = vcmp.ge.f32.partialorder %v396, 0.0
      %vm461 = vcmp.ge.f32.partialorder %v397, 0.0
      %vm462 = vcmp.ge.f32.partialorder %v398, 0.0
      %vm463 = vcmp.ge.f32.partialorder %v399, 0.0
      %vm464 = vcmp.ge.f32.partialorder %v400, 0.0
      %vm465 = vcmp.ge.f32.partialorder %v401, 0.0
      %vm466 = vcmp.ge.f32.partialorder %v402, 0.0
      %vm467 = vcmp.ge.f32.partialorder %v403, 0.0
      %vm468 = vcmp.ge.f32.partialorder %v404, 0.0
      %vm469 = vcmp.ge.f32.partialorder %v405, 0.0
      %vm470 = vcmp.ge.f32.partialorder %v406, 0.0
      %vm471 = vcmp.ge.f32.partialorder %v407, 0.0
      %vm472 = vcmp.ge.f32.partialorder %v408, 0.0
      %vm473 = vcmp.ge.f32.partialorder %v409, 0.0
      %vm474 = vcmp.ge.f32.partialorder %v410, 0.0
      %vm475 = vcmp.ge.f32.partialorder %v411, 0.0
      %vm476 = vcmp.ge.f32.partialorder %v412, 0.0
      %vm477 = vcmp.ge.f32.partialorder %v413, 0.0
      %vm478 = vcmp.ge.f32.partialorder %v414, 0.0
      %vm479 = vcmp.ge.f32.partialorder %v415, 0.0
      %vm480 = vcmp.ge.f32.partialorder %v416, 0.0
      %vm481 = vcmp.ge.f32.partialorder %v417, 0.0
      %vm482 = vcmp.ge.f32.partialorder %v418, 0.0
      %vm483 = vcmp.ge.f32.partialorder %v419, 0.0
      %vm484 = vcmp.ge.f32.partialorder %v420, 0.0
      %vm485 = vcmp.ge.f32.partialorder %v421, 0.0
      %vm486 = vcmp.ge.f32.partialorder %v422, 0.0
      %vm487 = vcmp.ge.f32.partialorder %v423, 0.0
      %vm488 = vcmp.ge.f32.partialorder %v424, 0.0
      %vm489 = vcmp.ge.f32.partialorder %v425, 0.0
      %vm490 = vcmp.ge.f32.partialorder %v426, 0.0
      %vm491 = vcmp.ge.f32.partialorder %v427, 0.0
      %vm492 = vcmp.ge.f32.partialorder %v428, 0.0
      %vm493 = vcmp.ge.f32.partialorder %v429, 0.0
      %vm494 = vcmp.ge.f32.partialorder %v430, 0.0
      %vm495 = vcmp.ge.f32.partialorder %v431, 0.0
      %vm496 = vcmp.ge.f32.partialorder %v432, 0.0
      %vm497 = vcmp.ge.f32.partialorder %v433, 0.0
      %vm498 = vcmp.ge.f32.partialorder %v434, 0.0
      %vm499 = vcmp.ge.f32.partialorder %v435, 0.0
      %vm500 = vcmp.ge.f32.partialorder %v436, 0.0
      %vm501 = vcmp.ge.f32.partialorder %v437, 0.0
      %vm502 = vcmp.ge.f32.partialorder %v438, 0.0
      %vm503 = vcmp.ge.f32.partialorder %v439, 0.0
      %v504 = vmul.f32 %v376, 0.01
      %v505 = vmul.f32 %v377, 0.01
      %v506 = vmul.f32 %v378, 0.01
      %v507 = vmul.f32 %v379, 0.01
      %v508 = vmul.f32 %v380, 0.01
      %v509 = vmul.f32 %v381, 0.01
      %v510 = vmul.f32 %v382, 0.01
      %v511 = vmul.f32 %v383, 0.01
      %v512 = vmul.f32 %v384, 0.01
      %v513 = vmul.f32 %v385, 0.01
      %v514 = vmul.f32 %v386, 0.01
      %v515 = vmul.f32 %v387, 0.01
      %v516 = vmul.f32 %v388, 0.01
      %v517 = vmul.f32 %v389, 0.01
      %v518 = vmul.f32 %v390, 0.01
      %v519 = vmul.f32 %v391, 0.01
      %v520 = vmul.f32 %v392, 0.01
      %v521 = vmul.f32 %v393, 0.01
      %v522 = vmul.f32 %v394, 0.01
      %v523 = vmul.f32 %v395, 0.01
      %v524 = vmul.f32 %v396, 0.01
      %v525 = vmul.f32 %v397, 0.01
      %v526 = vmul.f32 %v398, 0.01
      %v527 = vmul.f32 %v399, 0.01
      %v528 = vmul.f32 %v400, 0.01
      %v529 = vmul.f32 %v401, 0.01
      %v530 = vmul.f32 %v402, 0.01
      %v531 = vmul.f32 %v403, 0.01
      %v532 = vmul.f32 %v404, 0.01
      %v533 = vmul.f32 %v405, 0.01
      %v534 = vmul.f32 %v406, 0.01
      %v535 = vmul.f32 %v407, 0.01
      %v536 = vmul.f32 %v408, 0.01
      %v537 = vmul.f32 %v409, 0.01
      %v538 = vmul.f32 %v410, 0.01
      %v539 = vmul.f32 %v411, 0.01
      %v540 = vmul.f32 %v412, 0.01
      %v541 = vmul.f32 %v413, 0.01
      %v542 = vmul.f32 %v414, 0.01
      %v543 = vmul.f32 %v415, 0.01
      %v544 = vmul.f32 %v416, 0.01
      %v545 = vmul.f32 %v417, 0.01
      %v546 = vmul.f32 %v418, 0.01
      %v547 = vmul.f32 %v419, 0.01
      %v548 = vmul.f32 %v420, 0.01
      %v549 = vmul.f32 %v421, 0.01
      %v550 = vmul.f32 %v422, 0.01
      %v551 = vmul.f32 %v423, 0.01
      %v552 = vmul.f32 %v424, 0.01
      %v553 = vmul.f32 %v425, 0.01
      %v554 = vmul.f32 %v426, 0.01
      %v555 = vmul.f32 %v427, 0.01
      %v556 = vmul.f32 %v428, 0.01
      %v557 = vmul.f32 %v429, 0.01
      %v558 = vmul.f32 %v430, 0.01
      %v559 = vmul.f32 %v431, 0.01
      %v560 = vmul.f32 %v432, 0.01
      %v561 = vmul.f32 %v433, 0.01
      %v562 = vmul.f32 %v434, 0.01
      %v563 = vmul.f32 %v435, 0.01
      %v564 = vmul.f32 %v436, 0.01
      %v565 = vmul.f32 %v437, 0.01
      %v566 = vmul.f32 %v438, 0.01
      %v567 = vmul.f32 %v439, 0.01
      %v568 = vsel %vm440, %v376, %v504
      %v569 = vsel %vm441, %v377, %v505
      %v570 = vsel %vm442, %v378, %v506
      %v571 = vsel %vm443, %v379, %v507
      %v572 = vsel %vm444, %v380, %v508
      %v573 = vsel %vm445, %v381, %v509
      %v574 = vsel %vm446, %v382, %v510
      %v575 = vsel %vm447, %v383, %v511
      %v576 = vsel %vm448, %v384, %v512
      %v577 = vsel %vm449, %v385, %v513
      %v578 = vsel %vm450, %v386, %v514
      %v579 = vsel %vm451, %v387, %v515
      %v580 = vsel %vm452, %v388, %v516
      %v581 = vsel %vm453, %v389, %v517
      %v582 = vsel %vm454, %v390, %v518
      %v583 = vsel %vm455, %v391, %v519
      %v584 = vsel %vm456, %v392, %v520
      %v585 = vsel %vm457, %v393, %v521
      %v586 = vsel %vm458, %v394, %v522
      %v587 = vsel %vm459, %v395, %v523
      %v588 = vsel %vm460, %v396, %v524
      %v589 = vsel %vm461, %v397, %v525
      %v590 = vsel %vm462, %v398, %v526
      %v591 = vsel %vm463, %v399, %v527
      %v592 = vsel %vm464, %v400, %v528
      %v593 = vsel %vm465, %v401, %v529
      %v594 = vsel %vm466, %v402, %v530
      %v595 = vsel %vm467, %v403, %v531
      %v596 = vsel %vm468, %v404, %v532
      %v597 = vsel %vm469, %v405, %v533
      %v598 = vsel %vm470, %v406, %v534
      %v599 = vsel %vm471, %v407, %v535
      %v600 = vsel %vm472, %v408, %v536
      %v601 = vsel %vm473, %v409, %v537
      %v602 = vsel %vm474, %v410, %v538
      %v603 = vsel %vm475, %v411, %v539
      %v604 = vsel %vm476, %v412, %v540
      %v605 = vsel %vm477, %v413, %v541
      %v606 = vsel %vm478, %v414, %v542
      %v607 = vsel %vm479, %v415, %v543
      %v608 = vsel %vm480, %v416, %v544
      %v609 = vsel %vm481, %v417, %v545
      %v610 = vsel %vm482, %v418, %v546
      %v611 = vsel %vm483, %v419, %v547
      %v612 = vsel %vm484, %v420, %v548
      %v613 = vsel %vm485, %v421, %v549
      %v614 = vsel %vm486, %v422, %v550
      %v615 = vsel %vm487, %v423, %v551
      %v616 = vsel %vm488, %v424, %v552
      %v617 = vsel %vm489, %v425, %v553
      %v618 = vsel %vm490, %v426, %v554
      %v619 = vsel %vm491, %v427, %v555
      %v620 = vsel %vm492, %v428, %v556
      %v621 = vsel %vm493, %v429, %v557
      %v622 = vsel %vm494, %v430, %v558
      %v623 = vsel %vm495, %v431, %v559
      %v624 = vsel %vm496, %v432, %v560
      %v625 = vsel %vm497, %v433, %v561
      %v626 = vsel %vm498, %v434, %v562
      %v627 = vsel %vm499, %v435, %v563
      %v628 = vsel %vm500, %v436, %v564
      %v629 = vsel %vm501, %v437, %v565
      %v630 = vsel %vm502, %v438, %v566
      %v631 = vsel %vm503, %v439, %v567
      %v632 = vpack.c.bf16 %v569, %v568
      %v633 = vpack.c.bf16 %v571, %v570
      %v634 = vpack.c.bf16 %v573, %v572
      %v635 = vpack.c.bf16 %v575, %v574
      %v636 = vpack.c.bf16 %v577, %v576
      %v637 = vpack.c.bf16 %v579, %v578
      %v638 = vpack.c.bf16 %v581, %v580
      %v639 = vpack.c.bf16 %v583, %v582
      %v640 = vpack.c.bf16 %v585, %v584
      %v641 = vpack.c.bf16 %v587, %v586
      %v642 = vpack.c.bf16 %v589, %v588
      %v643 = vpack.c.bf16 %v591, %v590
      %v644 = vpack.c.bf16 %v593, %v592
      %v645 = vpack.c.bf16 %v595, %v594
      %v646 = vpack.c.bf16 %v597, %v596
      %v647 = vpack.c.bf16 %v599, %v598
      %v648 = vpack.c.bf16 %v601, %v600
      %v649 = vpack.c.bf16 %v603, %v602
      %v650 = vpack.c.bf16 %v605, %v604
      %v651 = vpack.c.bf16 %v607, %v606
      %v652 = vpack.c.bf16 %v609, %v608
      %v653 = vpack.c.bf16 %v611, %v610
      %v654 = vpack.c.bf16 %v613, %v612
      %v655 = vpack.c.bf16 %v615, %v614
      %v656 = vpack.c.bf16 %v617, %v616
      %v657 = vpack.c.bf16 %v619, %v618
      %v658 = vpack.c.bf16 %v621, %v620
      %v659 = vpack.c.bf16 %v623, %v622
      %v660 = vpack.c.bf16 %v625, %v624
      %v661 = vpack.c.bf16 %v627, %v626
      %v662 = vpack.c.bf16 %v629, %v628
      %v663 = vpack.c.bf16 %v631, %v630
      %v664 = vld [vmem:[%s1] sm:$0xf]
      %vm665 = vcmask 64512
      %v667 = vsel %vm665, %v632, 0
      %v670 = vsel %vm665, %v633, 0
      %v673 = vsel %vm665, %v634, 0
      %v676 = vsel %vm665, %v635, 0
      %v679 = vsel %vm665, %v636, 0
      %v682 = vsel %vm665, %v637, 0
      %v685 = vsel %vm665, %v638, 0
      %v688 = vsel %vm665, %v639, 0
      %v691 = vsel %vm665, %v640, 0
      %v694 = vsel %vm665, %v641, 0
      %v697 = vsel %vm665, %v642, 0
      %v700 = vsel %vm665, %v643, 0
      %v703 = vsel %vm665, %v644, 0
      %v706 = vsel %vm665, %v645, 0
      %v709 = vsel %vm665, %v646, 0
      %v712 = vsel %vm665, %v647, 0
      %v715 = vsel %vm665, %v648, 0
      %v718 = vsel %vm665, %v649, 0
      %v721 = vsel %vm665, %v650, 0
      %v724 = vsel %vm665, %v651, 0
      %v727 = vsel %vm665, %v652, 0
      %v730 = vsel %vm665, %v653, 0
      %v733 = vsel %vm665, %v654, 0
      %v736 = vsel %vm665, %v655, 0
      %v739 = vsel %vm665, %v656, 0
      %v742 = vsel %vm665, %v657, 0
      %v745 = vsel %vm665, %v658, 0
      %v748 = vsel %vm665, %v659, 0
      %v751 = vsel %vm665, %v660, 0
      %v754 = vsel %vm665, %v661, 0
      %v757 = vsel %vm665, %v662, 0
      %v760 = vsel %vm665, %v663, 0
      %vm762 = vcmask 1043456
      %v764 = vsel %vm762, %v664, 0
      %766 = vmatprep.subr.bf16.mxu0 0
      %767 = vmatpush1.bf16.msra.mxu0 0
      %768 = vmatprep.subr.bf16.mxu0 0
      %769 = vmatpush1.bf16.msra.mxu0 0
      %770 = vmatprep.subr.bf16.mxu0 0
      %771 = vmatpush1.bf16.msra.mxu0 0
      %772 = vmatprep.subr.bf16.mxu0 0
      %773 = vmatpush1.bf16.msra.mxu0 0
      %774 = vmatprep.subr.bf16.mxu0 0
      %775 = vmatpush1.bf16.msra.mxu0 0
      %776 = vmatprep.subr.bf16.mxu0 0
      %777 = vmatpush1.bf16.msra.mxu0 0
      %778 = vmatprep.subr.bf16.mxu0 0
      %779 = vmatpush1.bf16.msra.mxu0 0
      %780 = vmatprep.subr.bf16.mxu0 0
      %781 = vmatpush1.bf16.msra.mxu0 %v764
      %782 = vmatprep.subr.bf16.mxu0 0
      %783 = vmatpush2.bf16.msra.mxu0 0
      %784 = vmatprep.subr.bf16.mxu0 0
      %785 = vmatpush2.bf16.msra.mxu0 0
      %786 = vmatprep.subr.bf16.mxu0 0
      %787 = vmatpush2.bf16.msra.mxu0 0
      %788 = vmatprep.subr.bf16.mxu0 0
      %789 = vmatpush2.bf16.msra.mxu0 0
      %790 = vmatprep.subr.bf16.mxu0 0
      %791 = vmatpush2.bf16.msra.mxu0 0
      %792 = vmatprep.subr.bf16.mxu0 0
      %793 = vmatpush2.bf16.msra.mxu0 0
      %794 = vmatprep.subr.bf16.mxu0 0
      %795 = vmatpush2.bf16.msra.mxu0 0
      %796 = vmatprep.subr.bf16.mxu0 0
      %797 = vmatpush2.bf16.msra.mxu0 0
      %798 = vmatprep.mubr.bf16.mxu0 0
      %799 = vmatmul.mubr.bf16.gmra.mxu0 %v667
      %v800 = vpop.f32.mrf.mxu0
      %v801 = vadd.f32 0.0, %v800
      %v802 = vpop.f32.mrf.mxu0
      %v803 = vpop.f32.mrf.mxu0
      %v804 = vadd.f32 0.0, %v803
      %v805 = vpop.f32.mrf.mxu0
      %806 = vmatprep.mubr.bf16.mxu0 0
      %807 = vmatmul.mubr.bf16.gmra.mxu0 %v670
      %v808 = vpop.f32.mrf.mxu0
      %v809 = vadd.f32 0.0, %v808
      %v810 = vpop.f32.mrf.mxu0
      %v811 = vpop.f32.mrf.mxu0
      %v812 = vadd.f32 0.0, %v811
      %v813 = vpop.f32.mrf.mxu0
      %814 = vmatprep.mubr.bf16.mxu0 0
      %815 = vmatmul.mubr.bf16.gmra.mxu0 %v673
      %v816 = vpop.f32.mrf.mxu0
      %v817 = vadd.f32 0.0, %v816
      %v818 = vpop.f32.mrf.mxu0
      %v819 = vpop.f32.mrf.mxu0
      %v820 = vadd.f32 0.0, %v819
      %v821 = vpop.f32.mrf.mxu0
      %822 = vmatprep.mubr.bf16.mxu0 0
      %823 = vmatmul.mubr.bf16.gmra.mxu0 %v676
      %v824 = vpop.f32.mrf.mxu0
      %v825 = vadd.f32 0.0, %v824
      %v826 = vpop.f32.mrf.mxu0
      %v827 = vpop.f32.mrf.mxu0
      %v828 = vadd.f32 0.0, %v827
      %v829 = vpop.f32.mrf.mxu0
      %830 = vmatprep.mubr.bf16.mxu0 0
      %831 = vmatmul.mubr.bf16.gmra.mxu0 %v679
      %v832 = vpop.f32.mrf.mxu0
      %v833 = vadd.f32 0.0, %v832
      %v834 = vpop.f32.mrf.mxu0
      %v835 = vpop.f32.mrf.mxu0
      %v836 = vadd.f32 0.0, %v835
      %v837 = vpop.f32.mrf.mxu0
      %838 = vmatprep.mubr.bf16.mxu0 0
      %839 = vmatmul.mubr.bf16.gmra.mxu0 %v682
      %v840 = vpop.f32.mrf.mxu0
      %v841 = vadd.f32 0.0, %v840
      %v842 = vpop.f32.mrf.mxu0
      %v843 = vpop.f32.mrf.mxu0
      %v844 = vadd.f32 0.0, %v843
      %v845 = vpop.f32.mrf.mxu0
      %846 = vmatprep.mubr.bf16.mxu0 0
      %847 = vmatmul.mubr.bf16.gmra.mxu0 %v685
      %v848 = vpop.f32.mrf.mxu0
      %v849 = vadd.f32 0.0, %v848
      %v850 = vpop.f32.mrf.mxu0
      %v851 = vpop.f32.mrf.mxu0
      %v852 = vadd.f32 0.0, %v851
      %v853 = vpop.f32.mrf.mxu0
      %854 = vmatprep.mubr.bf16.mxu0 0
      %855 = vmatmul.mubr.bf16.gmra.mxu0 %v688
      %v856 = vpop.f32.mrf.mxu0
      %v857 = vadd.f32 0.0, %v856
      %v858 = vpop.f32.mrf.mxu0
      %v859 = vpop.f32.mrf.mxu0
      %v860 = vadd.f32 0.0, %v859
      %v861 = vpop.f32.mrf.mxu0
      %862 = vmatprep.mubr.bf16.mxu0 0
      %863 = vmatmul.mubr.bf16.gmra.mxu0 %v691
      %v864 = vpop.f32.mrf.mxu0
      %v865 = vadd.f32 0.0, %v864
      %v866 = vpop.f32.mrf.mxu0
      %v867 = vpop.f32.mrf.mxu0
      %v868 = vadd.f32 0.0, %v867
      %v869 = vpop.f32.mrf.mxu0
      %870 = vmatprep.mubr.bf16.mxu0 0
      %871 = vmatmul.mubr.bf16.gmra.mxu0 %v694
      %v872 = vpop.f32.mrf.mxu0
      %v873 = vadd.f32 0.0, %v872
      %v874 = vpop.f32.mrf.mxu0
      %v875 = vpop.f32.mrf.mxu0
      %v876 = vadd.f32 0.0, %v875
      %v877 = vpop.f32.mrf.mxu0
      %878 = vmatprep.mubr.bf16.mxu0 0
      %879 = vmatmul.mubr.bf16.gmra.mxu0 %v697
      %v880 = vpop.f32.mrf.mxu0
      %v881 = vadd.f32 0.0, %v880
      %v882 = vpop.f32.mrf.mxu0
      %v883 = vpop.f32.mrf.mxu0
      %v884 = vadd.f32 0.0, %v883
      %v885 = vpop.f32.mrf.mxu0
      %886 = vmatprep.mubr.bf16.mxu0 0
      %887 = vmatmul.mubr.bf16.gmra.mxu0 %v700
      %v888 = vpop.f32.mrf.mxu0
      %v889 = vadd.f32 0.0, %v888
      %v890 = vpop.f32.mrf.mxu0
      %v891 = vpop.f32.mrf.mxu0
      %v892 = vadd.f32 0.0, %v891
      %v893 = vpop.f32.mrf.mxu0
      %894 = vmatprep.mubr.bf16.mxu0 0
      %895 = vmatmul.mubr.bf16.gmra.mxu0 %v703
      %v896 = vpop.f32.mrf.mxu0
      %v897 = vadd.f32 0.0, %v896
      %v898 = vpop.f32.mrf.mxu0
      %v899 = vpop.f32.mrf.mxu0
      %v900 = vadd.f32 0.0, %v899
      %v901 = vpop.f32.mrf.mxu0
      %902 = vmatprep.mubr.bf16.mxu0 0
      %903 = vmatmul.mubr.bf16.gmra.mxu0 %v706
      %v904 = vpop.f32.mrf.mxu0
      %v905 = vadd.f32 0.0, %v904
      %v906 = vpop.f32.mrf.mxu0
      %v907 = vpop.f32.mrf.mxu0
      %v908 = vadd.f32 0.0, %v907
      %v909 = vpop.f32.mrf.mxu0
      %910 = vmatprep.mubr.bf16.mxu0 0
      %911 = vmatmul.mubr.bf16.gmra.mxu0 %v709
      %v912 = vpop.f32.mrf.mxu0
      %v913 = vadd.f32 0.0, %v912
      %v914 = vpop.f32.mrf.mxu0
      %v915 = vpop.f32.mrf.mxu0
      %v916 = vadd.f32 0.0, %v915
      %v917 = vpop.f32.mrf.mxu0
      %918 = vmatprep.mubr.bf16.mxu0 0
      %919 = vmatmul.mubr.bf16.gmra.mxu0 %v712
      %v920 = vpop.f32.mrf.mxu0
      %v921 = vadd.f32 0.0, %v920
      %v922 = vpop.f32.mrf.mxu0
      %v923 = vpop.f32.mrf.mxu0
      %v924 = vadd.f32 0.0, %v923
      %v925 = vpop.f32.mrf.mxu0
      %926 = vmatprep.mubr.bf16.mxu0 0
      %927 = vmatmul.mubr.bf16.gmra.mxu0 %v715
      %v928 = vpop.f32.mrf.mxu0
      %v929 = vadd.f32 0.0, %v928
      %v930 = vpop.f32.mrf.mxu0
      %v931 = vpop.f32.mrf.mxu0
      %v932 = vadd.f32 0.0, %v931
      %v933 = vpop.f32.mrf.mxu0
      %934 = vmatprep.mubr.bf16.mxu0 0
      %935 = vmatmul.mubr.bf16.gmra.mxu0 %v718
      %v936 = vpop.f32.mrf.mxu0
      %v937 = vadd.f32 0.0, %v936
      %v938 = vpop.f32.mrf.mxu0
      %v939 = vpop.f32.mrf.mxu0
      %v940 = vadd.f32 0.0, %v939
      %v941 = vpop.f32.mrf.mxu0
      %942 = vmatprep.mubr.bf16.mxu0 0
      %943 = vmatmul.mubr.bf16.gmra.mxu0 %v721
      %v944 = vpop.f32.mrf.mxu0
      %v945 = vadd.f32 0.0, %v944
      %v946 = vpop.f32.mrf.mxu0
      %v947 = vpop.f32.mrf.mxu0
      %v948 = vadd.f32 0.0, %v947
      %v949 = vpop.f32.mrf.mxu0
      %950 = vmatprep.mubr.bf16.mxu0 0
      %951 = vmatmul.mubr.bf16.gmra.mxu0 %v724
      %v952 = vpop.f32.mrf.mxu0
      %v953 = vadd.f32 0.0, %v952
      %v954 = vpop.f32.mrf.mxu0
      %v955 = vpop.f32.mrf.mxu0
      %v956 = vadd.f32 0.0, %v955
      %v957 = vpop.f32.mrf.mxu0
      %958 = vmatprep.mubr.bf16.mxu0 0
      %959 = vmatmul.mubr.bf16.gmra.mxu0 %v727
      %v960 = vpop.f32.mrf.mxu0
      %v961 = vadd.f32 0.0, %v960
      %v962 = vpop.f32.mrf.mxu0
      %v963 = vpop.f32.mrf.mxu0
      %v964 = vadd.f32 0.0, %v963
      %v965 = vpop.f32.mrf.mxu0
      %966 = vmatprep.mubr.bf16.mxu0 0
      %967 = vmatmul.mubr.bf16.gmra.mxu0 %v730
      %v968 = vpop.f32.mrf.mxu0
      %v969 = vadd.f32 0.0, %v968
      %v970 = vpop.f32.mrf.mxu0
      %v971 = vpop.f32.mrf.mxu0
      %v972 = vadd.f32 0.0, %v971
      %v973 = vpop.f32.mrf.mxu0
      %974 = vmatprep.mubr.bf16.mxu0 0
      %975 = vmatmul.mubr.bf16.gmra.mxu0 %v733
      %v976 = vpop.f32.mrf.mxu0
      %v977 = vadd.f32 0.0, %v976
      %v978 = vpop.f32.mrf.mxu0
      %v979 = vpop.f32.mrf.mxu0
      %v980 = vadd.f32 0.0, %v979
      %v981 = vpop.f32.mrf.mxu0
      %982 = vmatprep.mubr.bf16.mxu0 0
      %983 = vmatmul.mubr.bf16.gmra.mxu0 %v736
      %v984 = vpop.f32.mrf.mxu0
      %v985 = vadd.f32 0.0, %v984
      %v986 = vpop.f32.mrf.mxu0
      %v987 = vpop.f32.mrf.mxu0
      %v988 = vadd.f32 0.0, %v987
      %v989 = vpop.f32.mrf.mxu0
      %990 = vmatprep.mubr.bf16.mxu0 0
      %991 = vmatmul.mubr.bf16.gmra.mxu0 %v739
      %v992 = vpop.f32.mrf.mxu0
      %v993 = vadd.f32 0.0, %v992
      %v994 = vpop.f32.mrf.mxu0
      %v995 = vpop.f32.mrf.mxu0
      %v996 = vadd.f32 0.0, %v995
      %v997 = vpop.f32.mrf.mxu0
      %998 = vmatprep.mubr.bf16.mxu0 0
      %999 = vmatmul.mubr.bf16.gmra.mxu0 %v742
      %v1000 = vpop.f32.mrf.mxu0
      %v1001 = vadd.f32 0.0, %v1000
      %v1002 = vpop.f32.mrf.mxu0
      %v1003 = vpop.f32.mrf.mxu0
      %v1004 = vadd.f32 0.0, %v1003
      %v1005 = vpop.f32.mrf.mxu0
      %1006 = vmatprep.mubr.bf16.mxu0 0
      %1007 = vmatmul.mubr.bf16.gmra.mxu0 %v745
      %v1008 = vpop.f32.mrf.mxu0
      %v1009 = vadd.f32 0.0, %v1008
      %v1010 = vpop.f32.mrf.mxu0
      %v1011 = vpop.f32.mrf.mxu0
      %v1012 = vadd.f32 0.0, %v1011
      %v1013 = vpop.f32.mrf.mxu0
      %1014 = vmatprep.mubr.bf16.mxu0 0
      %1015 = vmatmul.mubr.bf16.gmra.mxu0 %v748
      %v1016 = vpop.f32.mrf.mxu0
      %v1017 = vadd.f32 0.0, %v1016
      %v1018 = vpop.f32.mrf.mxu0
      %v1019 = vpop.f32.mrf.mxu0
      %v1020 = vadd.f32 0.0, %v1019
      %v1021 = vpop.f32.mrf.mxu0
      %1022 = vmatprep.mubr.bf16.mxu0 0
      %1023 = vmatmul.mubr.bf16.gmra.mxu0 %v751
      %v1024 = vpop.f32.mrf.mxu0
      %v1025 = vadd.f32 0.0, %v1024
      %v1026 = vpop.f32.mrf.mxu0
      %v1027 = vpop.f32.mrf.mxu0
      %v1028 = vadd.f32 0.0, %v1027
      %v1029 = vpop.f32.mrf.mxu0
      %1030 = vmatprep.mubr.bf16.mxu0 0
      %1031 = vmatmul.mubr.bf16.gmra.mxu0 %v754
      %v1032 = vpop.f32.mrf.mxu0
      %v1033 = vadd.f32 0.0, %v1032
      %v1034 = vpop.f32.mrf.mxu0
      %v1035 = vpop.f32.mrf.mxu0
      %v1036 = vadd.f32 0.0, %v1035
      %v1037 = vpop.f32.mrf.mxu0
      %1038 = vmatprep.mubr.bf16.mxu0 0
      %1039 = vmatmul.mubr.bf16.gmra.mxu0 %v757
      %v1040 = vpop.f32.mrf.mxu0
      %v1041 = vadd.f32 0.0, %v1040
      %v1042 = vpop.f32.mrf.mxu0
      %v1043 = vpop.f32.mrf.mxu0
      %v1044 = vadd.f32 0.0, %v1043
      %v1045 = vpop.f32.mrf.mxu0
      %1046 = vmatprep.mubr.bf16.mxu0 0
      %1047 = vmatmul.mubr.bf16.gmra.mxu0 %v760
      %v1048 = vpop.f32.mrf.mxu0
      %v1049 = vadd.f32 0.0, %v1048
      %v1050 = vpop.f32.mrf.mxu0
      %v1051 = vpop.f32.mrf.mxu0
      %v1052 = vadd.f32 0.0, %v1051
      %v1053 = vpop.f32.mrf.mxu0
      %1054 = vdwg.mxu0
      %v1055 = vpack.c.bf16 %v804, %v801
      %v1056 = vpack.c.bf16 %v812, %v809
      %v1057 = vpack.c.bf16 %v820, %v817
      %v1058 = vpack.c.bf16 %v828, %v825
      %v1059 = vpack.c.bf16 %v836, %v833
      %v1060 = vpack.c.bf16 %v844, %v841
      %v1061 = vpack.c.bf16 %v852, %v849
      %v1062 = vpack.c.bf16 %v860, %v857
      %v1063 = vpack.c.bf16 %v868, %v865
      %v1064 = vpack.c.bf16 %v876, %v873
      %v1065 = vpack.c.bf16 %v884, %v881
      %v1066 = vpack.c.bf16 %v892, %v889
      %v1067 = vpack.c.bf16 %v900, %v897
      %v1068 = vpack.c.bf16 %v908, %v905
      %v1069 = vpack.c.bf16 %v916, %v913
      %v1070 = vpack.c.bf16 %v924, %v921
      %v1071 = vpack.c.bf16 %v932, %v929
      %v1072 = vpack.c.bf16 %v940, %v937
      %v1073 = vpack.c.bf16 %v948, %v945
      %v1074 = vpack.c.bf16 %v956, %v953
      %v1075 = vpack.c.bf16 %v964, %v961
      %v1076 = vpack.c.bf16 %v972, %v969
      %v1077 = vpack.c.bf16 %v980, %v977
      %v1078 = vpack.c.bf16 %v988, %v985
      %v1079 = vpack.c.bf16 %v996, %v993
      %v1080 = vpack.c.bf16 %v1004, %v1001
      %v1081 = vpack.c.bf16 %v1012, %v1009
      %v1082 = vpack.c.bf16 %v1020, %v1017
      %v1083 = vpack.c.bf16 %v1028, %v1025
      %v1084 = vpack.c.bf16 %v1036, %v1033
      %v1085 = vpack.c.bf16 %v1044, %v1041
      %v1086 = vpack.c.bf16 %v1052, %v1049
      %v1119 = vunpack.c.l.b16 %v1055
      %v1120 = vunpack.c.h.b16 %v1055
      %v1121 = vunpack.c.l.b16 %v1056
      %v1122 = vunpack.c.h.b16 %v1056
      %v1123 = vunpack.c.l.b16 %v1057
      %v1124 = vunpack.c.h.b16 %v1057
      %v1125 = vunpack.c.l.b16 %v1058
      %v1126 = vunpack.c.h.b16 %v1058
      %v1127 = vunpack.c.l.b16 %v1059
      %v1128 = vunpack.c.h.b16 %v1059
      %v1129 = vunpack.c.l.b16 %v1060
      %v1130 = vunpack.c.h.b16 %v1060
      %v1131 = vunpack.c.l.b16 %v1061
      %v1132 = vunpack.c.h.b16 %v1061
      %v1133 = vunpack.c.l.b16 %v1062
      %v1134 = vunpack.c.h.b16 %v1062
      %v1135 = vunpack.c.l.b16 %v1063
      %v1136 = vunpack.c.h.b16 %v1063
      %v1137 = vunpack.c.l.b16 %v1064
      %v1138 = vunpack.c.h.b16 %v1064
      %v1139 = vunpack.c.l.b16 %v1065
      %v1140 = vunpack.c.h.b16 %v1065
      %v1141 = vunpack.c.l.b16 %v1066
      %v1142 = vunpack.c.h.b16 %v1066
      %v1143 = vunpack.c.l.b16 %v1067
      %v1144 = vunpack.c.h.b16 %v1067
      %v1145 = vunpack.c.l.b16 %v1068
      %v1146 = vunpack.c.h.b16 %v1068
      %v1147 = vunpack.c.l.b16 %v1069
      %v1148 = vunpack.c.h.b16 %v1069
      %v1149 = vunpack.c.l.b16 %v1070
      %v1150 = vunpack.c.h.b16 %v1070
      %v1151 = vunpack.c.l.b16 %v1071
      %v1152 = vunpack.c.h.b16 %v1071
      %v1153 = vunpack.c.l.b16 %v1072
      %v1154 = vunpack.c.h.b16 %v1072
      %v1155 = vunpack.c.l.b16 %v1073
      %v1156 = vunpack.c.h.b16 %v1073
      %v1157 = vunpack.c.l.b16 %v1074
      %v1158 = vunpack.c.h.b16 %v1074
      %v1159 = vunpack.c.l.b16 %v1075
      %v1160 = vunpack.c.h.b16 %v1075
      %v1161 = vunpack.c.l.b16 %v1076
      %v1162 = vunpack.c.h.b16 %v1076
      %v1163 = vunpack.c.l.b16 %v1077
      %v1164 = vunpack.c.h.b16 %v1077
      %v1165 = vunpack.c.l.b16 %v1078
      %v1166 = vunpack.c.h.b16 %v1078
      %v1167 = vunpack.c.l.b16 %v1079
      %v1168 = vunpack.c.h.b16 %v1079
      %v1169 = vunpack.c.l.b16 %v1080
      %v1170 = vunpack.c.h.b16 %v1080
      %v1171 = vunpack.c.l.b16 %v1081
      %v1172 = vunpack.c.h.b16 %v1081
      %v1173 = vunpack.c.l.b16 %v1082
      %v1174 = vunpack.c.h.b16 %v1082
      %v1175 = vunpack.c.l.b16 %v1083
      %v1176 = vunpack.c.h.b16 %v1083
      %v1177 = vunpack.c.l.b16 %v1084
      %v1178 = vunpack.c.h.b16 %v1084
      %v1179 = vunpack.c.l.b16 %v1085
      %v1180 = vunpack.c.h.b16 %v1085
      %v1181 = vunpack.c.l.b16 %v1086
      %v1182 = vunpack.c.h.b16 %v1086
      %v1183 = vpack.c.b16 %v1119, %v1119
      %v1184 = vpack.c.b16 %v1120, %v1120
      %v1185 = vpack.c.b16 %v1121, %v1121
      %v1186 = vpack.c.b16 %v1122, %v1122
      %v1187 = vpack.c.b16 %v1123, %v1123
      %v1188 = vpack.c.b16 %v1124, %v1124
      %v1189 = vpack.c.b16 %v1125, %v1125
      %v1190 = vpack.c.b16 %v1126, %v1126
      %v1191 = vpack.c.b16 %v1127, %v1127
      %v1192 = vpack.c.b16 %v1128, %v1128
      %v1193 = vpack.c.b16 %v1129, %v1129
      %v1194 = vpack.c.b16 %v1130, %v1130
      %v1195 = vpack.c.b16 %v1131, %v1131
      %v1196 = vpack.c.b16 %v1132, %v1132
      %v1197 = vpack.c.b16 %v1133, %v1133
      %v1198 = vpack.c.b16 %v1134, %v1134
      %v1199 = vpack.c.b16 %v1135, %v1135
      %v1200 = vpack.c.b16 %v1136, %v1136
      %v1201 = vpack.c.b16 %v1137, %v1137
      %v1202 = vpack.c.b16 %v1138, %v1138
      %v1203 = vpack.c.b16 %v1139, %v1139
      %v1204 = vpack.c.b16 %v1140, %v1140
      %v1205 = vpack.c.b16 %v1141, %v1141
      %v1206 = vpack.c.b16 %v1142, %v1142
      %v1207 = vpack.c.b16 %v1143, %v1143
      %v1208 = vpack.c.b16 %v1144, %v1144
      %v1209 = vpack.c.b16 %v1145, %v1145
      %v1210 = vpack.c.b16 %v1146, %v1146
      %v1211 = vpack.c.b16 %v1147, %v1147
      %v1212 = vpack.c.b16 %v1148, %v1148
      %v1213 = vpack.c.b16 %v1149, %v1149
      %v1214 = vpack.c.b16 %v1150, %v1150
      %v1215 = vpack.c.b16 %v1151, %v1151
      %v1216 = vpack.c.b16 %v1152, %v1152
      %v1217 = vpack.c.b16 %v1153, %v1153
      %v1218 = vpack.c.b16 %v1154, %v1154
      %v1219 = vpack.c.b16 %v1155, %v1155
      %v1220 = vpack.c.b16 %v1156, %v1156
      %v1221 = vpack.c.b16 %v1157, %v1157
      %v1222 = vpack.c.b16 %v1158, %v1158
      %v1223 = vpack.c.b16 %v1159, %v1159
      %v1224 = vpack.c.b16 %v1160, %v1160
      %v1225 = vpack.c.b16 %v1161, %v1161
      %v1226 = vpack.c.b16 %v1162, %v1162
      %v1227 = vpack.c.b16 %v1163, %v1163
      %v1228 = vpack.c.b16 %v1164, %v1164
      %v1229 = vpack.c.b16 %v1165, %v1165
      %v1230 = vpack.c.b16 %v1166, %v1166
      %v1231 = vpack.c.b16 %v1167, %v1167
      %v1232 = vpack.c.b16 %v1168, %v1168
      %v1233 = vpack.c.b16 %v1169, %v1169
      %v1234 = vpack.c.b16 %v1170, %v1170
      %v1235 = vpack.c.b16 %v1171, %v1171
      %v1236 = vpack.c.b16 %v1172, %v1172
      %v1237 = vpack.c.b16 %v1173, %v1173
      %v1238 = vpack.c.b16 %v1174, %v1174
      %v1239 = vpack.c.b16 %v1175, %v1175
      %v1240 = vpack.c.b16 %v1176, %v1176
      %v1241 = vpack.c.b16 %v1177, %v1177
      %v1242 = vpack.c.b16 %v1178, %v1178
      %v1243 = vpack.c.b16 %v1179, %v1179
      %v1244 = vpack.c.b16 %v1180, %v1180
      %v1245 = vpack.c.b16 %v1181, %v1181
      %v1246 = vpack.c.b16 %v1182, %v1182
      %1311 = vst [vmem:[%s172] sm:$0xf] %v1183
      %1312 = vst [vmem:[%s172 + $0x4] sm:$0xf] %v1184
      %1313 = vst [vmem:[%s172 + $0x8] sm:$0xf] %v1185
      %1314 = vst [vmem:[%s172 + $0xc] sm:$0xf] %v1186
      %1315 = vst [vmem:[%s172 + $0x10] sm:$0xf] %v1187
      %1316 = vst [vmem:[%s172 + $0x14] sm:$0xf] %v1188
      %1317 = vst [vmem:[%s172 + $0x18] sm:$0xf] %v1189
      %1318 = vst [vmem:[%s172 + $0x1c] sm:$0xf] %v1190
      %1319 = vst [vmem:[%s172 + $0x20] sm:$0xf] %v1191
      %1320 = vst [vmem:[%s172 + $0x24] sm:$0xf] %v1192
      %1321 = vst [vmem:[%s172 + $0x28] sm:$0xf] %v1193
      %1322 = vst [vmem:[%s172 + $0x2c] sm:$0xf] %v1194
      %1323 = vst [vmem:[%s172 + $0x30] sm:$0xf] %v1195
      %1324 = vst [vmem:[%s172 + $0x34] sm:$0xf] %v1196
      %1325 = vst [vmem:[%s172 + $0x38] sm:$0xf] %v1197
      %1326 = vst [vmem:[%s172 + $0x3c] sm:$0xf] %v1198
      %1327 = vst [vmem:[%s172 + $0x40] sm:$0xf] %v1199
      %1328 = vst [vmem:[%s172 + $0x44] sm:$0xf] %v1200
      %1329 = vst [vmem:[%s172 + $0x48] sm:$0xf] %v1201
      %1330 = vst [vmem:[%s172 + $0x4c] sm:$0xf] %v1202
      %1331 = vst [vmem:[%s172 + $0x50] sm:$0xf] %v1203
      %1332 = vst [vmem:[%s172 + $0x54] sm:$0xf] %v1204
      %1333 = vst [vmem:[%s172 + $0x58] sm:$0xf] %v1205
      %1334 = vst [vmem:[%s172 + $0x5c] sm:$0xf] %v1206
      %1335 = vst [vmem:[%s172 + $0x60] sm:$0xf] %v1207
      %1336 = vst [vmem:[%s172 + $0x64] sm:$0xf] %v1208
      %1337 = vst [vmem:[%s172 + $0x68] sm:$0xf] %v1209
      %1338 = vst [vmem:[%s172 + $0x6c] sm:$0xf] %v1210
      %1339 = vst [vmem:[%s172 + $0x70] sm:$0xf] %v1211
      %1340 = vst [vmem:[%s172 + $0x74] sm:$0xf] %v1212
      %1341 = vst [vmem:[%s172 + $0x78] sm:$0xf] %v1213
      %1342 = vst [vmem:[%s172 + $0x7c] sm:$0xf] %v1214
      %1343 = vst [vmem:[%s172 + $0x80] sm:$0xf] %v1215
      %1344 = vst [vmem:[%s172 + $0x84] sm:$0xf] %v1216
      %1345 = vst [vmem:[%s172 + $0x88] sm:$0xf] %v1217
      %1346 = vst [vmem:[%s172 + $0x8c] sm:$0xf] %v1218
      %1347 = vst [vmem:[%s172 + $0x90] sm:$0xf] %v1219
      %1348 = vst [vmem:[%s172 + $0x94] sm:$0xf] %v1220
      %1349 = vst [vmem:[%s172 + $0x98] sm:$0xf] %v1221
      %1350 = vst [vmem:[%s172 + $0x9c] sm:$0xf] %v1222
      %1351 = vst [vmem:[%s172 + $0xa0] sm:$0xf] %v1223
      %1352 = vst [vmem:[%s172 + $0xa4] sm:$0xf] %v1224
      %1353 = vst [vmem:[%s172 + $0xa8] sm:$0xf] %v1225
      %1354 = vst [vmem:[%s172 + $0xac] sm:$0xf] %v1226
      %1355 = vst [vmem:[%s172 + $0xb0] sm:$0xf] %v1227
      %1356 = vst [vmem:[%s172 + $0xb4] sm:$0xf] %v1228
      %1357 = vst [vmem:[%s172 + $0xb8] sm:$0xf] %v1229
      %1358 = vst [vmem:[%s172 + $0xbc] sm:$0xf] %v1230
      %1359 = vst [vmem:[%s172 + $0xc0] sm:$0xf] %v1231
      %1360 = vst [vmem:[%s172 + $0xc4] sm:$0xf] %v1232
      %1361 = vst [vmem:[%s172 + $0xc8] sm:$0xf] %v1233
      %1362 = vst [vmem:[%s172 + $0xcc] sm:$0xf] %v1234
      %1363 = vst [vmem:[%s172 + $0xd0] sm:$0xf] %v1235
      %1364 = vst [vmem:[%s172 + $0xd4] sm:$0xf] %v1236
      %1365 = vst [vmem:[%s172 + $0xd8] sm:$0xf] %v1237
      %1366 = vst [vmem:[%s172 + $0xdc] sm:$0xf] %v1238
      %1367 = vst [vmem:[%s172 + $0xe0] sm:$0xf] %v1239
      %1368 = vst [vmem:[%s172 + $0xe4] sm:$0xf] %v1240
      %1369 = vst [vmem:[%s172 + $0xe8] sm:$0xf] %v1241
      %1370 = vst [vmem:[%s172 + $0xec] sm:$0xf] %v1242
      %1371 = vst [vmem:[%s172 + $0xf0] sm:$0xf] %v1243
      %1372 = vst [vmem:[%s172 + $0xf4] sm:$0xf] %v1244
      %1373 = vst [vmem:[%s172 + $0xf8] sm:$0xf] %v1245
      %1374 = vst [vmem:[%s172 + $0xfc] sm:$0xf] %v1246
      %s1375 = smul.u32 64, %s14
      %p1376 = scmp.lt.s32.totalorder %s1375, 255
      %s1377 = scalar_select %p1376, %s1375, 255
      %s1378 = smul.addr %s1377, 4
      %s1379 = scalar_lea.vmem %s3, %s1378
      // Predicated region
      $region33: #{generator_forward.18} parent=31 // pred_check
        %p1380 = pneg %p100
      $region34: #{generator_forward.18} parent=31 // pred_check_branch
        %1382 = sbr.rel (%p1380) target = $region36
      $region35: #{generator_forward.18} parent=31 // pred_region
        %s1383 = smul.u32 64, %s14
      $region36: #{generator_forward.18} parent=31 // pred_fallthru
        _
    $region32: #{generator_forward.18} parent=5 // pred_fallthru
      _
    %p1384 = scmp.le.s32.totalorder 2, %s9
    // Predicated region
    $region37: #{generator_forward.18} parent=5 // pred_check
      %p1385 = pneg %p1384
    $region38: #{generator_forward.18} parent=5 // pred_check_branch
      %1387 = sbr.rel (%p1385) target = $region40
    $region39: #{generator_forward.18} parent=5 // pred_region
      %s1388 = ssub.s32 %s9, 2
      // Predicated region
      $region41: #{generator_forward.18} parent=39 // pred_check
        %p1389 = pneg %p106
      $region42: #{generator_forward.18} parent=39 // pred_check_branch
        %1391 = sbr.rel (%p1389) target = $region44
      $region43: #{generator_forward.18} parent=39 // pred_region
        %s1392 = smul.u32 64, %s15
        %p1393 = scmp.lt.s32.totalorder %s1392, 255
        %s1394 = scalar_select %p1393, %s1392, 255
        %s1395 = smul.addr %s1394, 4
        %s1396 = scalar_lea.vmem %s3, %s1395
      $region44: #{generator_forward.18} parent=39 // pred_fallthru
        _
    $region40: #{generator_forward.18} parent=5 // pred_fallthru
      _
  $region6: #{generator_forward.18} parent=0 // loop_footer
    %s13 = sadd.s32 1, %s9
  $region7: #{generator_forward.18} parent=0 // loop_footer_branch
    %8 = sbr.rel target = $region3
  $region8: #{generator_forward.18} parent=0 // loop_exit
    _

// kernel: generator_forward.19
$region0: #{generator_forward.19}
  #allocation0 [shape = 'u32[]', space=smem, size = 0x4, offset = 0x4, fixed_abs, tag = 'smem constant byte address 0x4 - core index']
  #allocation1 [shape = 'u32[144,128]{1,0:T(1,128)}', space=vmem, size = 0x12000, scoped, tag = 'internal scratch']
  %s0 = inlined_call_operand.vmem [shape: bf16[128,192], index: 0, kind: input, shape index: {}]
  %s1 = inlined_call_operand.vmem [shape: f32[128,192], index: 1, kind: output, shape index: {}]
  %s2 = sld [smem:[#allocation0]]
  $region14: #{generator_forward.19} parent=0
    _
  %s4 = ssub.s32 1, %s2
  %s5 = scalar_select 0, %s4, %s2
  // Predicated region
  $region2: #{generator_forward.19} parent=0 // pred_check
    _
  $region3: #{generator_forward.19} parent=0 // pred_check_branch
    %7 = sbr.rel (0) target = $region5
  $region4: #{generator_forward.19} parent=0 // pred_region
    _
  $region5: #{generator_forward.19} parent=0 // pred_fallthru
    _
  %v8 = vld [vmem:[%s0] sm:$0xff]
  %v9 = vld [vmem:[%s0 + $0x8] sm:$0xff]
  %v10 = vld [vmem:[%s0 + $0x10] sm:$0xff]
  %v11 = vld [vmem:[%s0 + $0x18] sm:$0xff]
  %v12 = vld [vmem:[%s0 + $0x20] sm:$0xff]
  %v13 = vld [vmem:[%s0 + $0x28] sm:$0xff]
  %v14 = vld [vmem:[%s0 + $0x30] sm:$0xff]
  %v15 = vld [vmem:[%s0 + $0x38] sm:$0xff]
  %v16 = vld [vmem:[%s0 + $0x40] sm:$0xff]
  %v17 = vld [vmem:[%s0 + $0x48] sm:$0xff]
  %v18 = vld [vmem:[%s0 + $0x50] sm:$0xff]
  %v19 = vld [vmem:[%s0 + $0x58] sm:$0xff]
  %v20 = vld [vmem:[%s0 + $0x60] sm:$0xff]
  %v21 = vld [vmem:[%s0 + $0x68] sm:$0xff]
  %v22 = vld [vmem:[%s0 + $0x70] sm:$0xff]
  %v23 = vld [vmem:[%s0 + $0x78] sm:$0xff]
  %v24 = vunpack.c.l.bf16 %v8
  %v25 = vunpack.c.h.bf16 %v8
  %v26 = vunpack.c.l.bf16 %v9
  %v27 = vunpack.c.h.bf16 %v9
  %v28 = vunpack.c.l.bf16 %v10
  %v29 = vunpack.c.h.bf16 %v10
  %v30 = vunpack.c.l.bf16 %v11
  %v31 = vunpack.c.h.bf16 %v11
  %v32 = vunpack.c.l.bf16 %v12
  %v33 = vunpack.c.h.bf16 %v12
  %v34 = vunpack.c.l.bf16 %v13
  %v35 = vunpack.c.h.bf16 %v13
  %v36 = vunpack.c.l.bf16 %v14
  %v37 = vunpack.c.h.bf16 %v14
  %v38 = vunpack.c.l.bf16 %v15
  %v39 = vunpack.c.h.bf16 %v15
  %v40 = vunpack.c.l.bf16 %v16
  %v41 = vunpack.c.h.bf16 %v16
  %v42 = vunpack.c.l.bf16 %v17
  %v43 = vunpack.c.h.bf16 %v17
  %v44 = vunpack.c.l.bf16 %v18
  %v45 = vunpack.c.h.bf16 %v18
  %v46 = vunpack.c.l.bf16 %v19
  %v47 = vunpack.c.h.bf16 %v19
  %v48 = vunpack.c.l.bf16 %v20
  %v49 = vunpack.c.h.bf16 %v20
  %v50 = vunpack.c.l.bf16 %v21
  %v51 = vunpack.c.h.bf16 %v21
  %v52 = vunpack.c.l.bf16 %v22
  %v53 = vunpack.c.h.bf16 %v22
  %v54 = vunpack.c.l.bf16 %v23
  %v55 = vunpack.c.h.bf16 %v23
  %v56 = vsub.f32 0.0, %v24
  %v57 = vsub.f32 0.0, %v25
  %v58 = vsub.f32 0.0, %v26
  %v59 = vsub.f32 0.0, %v27
  %v60 = vsub.f32 0.0, %v28
  %v61 = vsub.f32 0.0, %v29
  %v62 = vsub.f32 0.0, %v30
  %v63 = vsub.f32 0.0, %v31
  %v64 = vsub.f32 0.0, %v32
  %v65 = vsub.f32 0.0, %v33
  %v66 = vsub.f32 0.0, %v34
  %v67 = vsub.f32 0.0, %v35
  %v68 = vsub.f32 0.0, %v36
  %v69 = vsub.f32 0.0, %v37
  %v70 = vsub.f32 0.0, %v38
  %v71 = vsub.f32 0.0, %v39
  %v72 = vsub.f32 0.0, %v40
  %v73 = vsub.f32 0.0, %v41
  %v74 = vsub.f32 0.0, %v42
  %v75 = vsub.f32 0.0, %v43
  %v76 = vsub.f32 0.0, %v44
  %v77 = vsub.f32 0.0, %v45
  %v78 = vsub.f32 0.0, %v46
  %v79 = vsub.f32 0.0, %v47
  %v80 = vsub.f32 0.0, %v48
  %v81 = vsub.f32 0.0, %v49
  %v82 = vsub.f32 0.0, %v50
  %v83 = vsub.f32 0.0, %v51
  %v84 = vsub.f32 0.0, %v52
  %v85 = vsub.f32 0.0, %v53
  %v86 = vsub.f32 0.0, %v54
  %v87 = vsub.f32 0.0, %v55
  %v88 = vmul.f32 %v56, 1.442695
  %v89 = vpow.pop %v88
  %v90 = vmul.f32 %v57, 1.442695
  %v91 = vpow.pop %v90
  %v92 = vmul.f32 %v58, 1.442695
  %v93 = vpow.pop %v92
  %v94 = vmul.f32 %v59, 1.442695
  %v95 = vpow.pop %v94
  %v96 = vmul.f32 %v60, 1.442695
  %v97 = vpow.pop %v96
  %v98 = vmul.f32 %v61, 1.442695
  %v99 = vpow.pop %v98
  %v100 = vmul.f32 %v62, 1.442695
  %v101 = vpow.pop %v100
  %v102 = vmul.f32 %v63, 1.442695
  %v103 = vpow.pop %v102
  %v104 = vmul.f32 %v64, 1.442695
  %v105 = vpow.pop %v104
  %v106 = vmul.f32 %v65, 1.442695
  %v107 = vpow.pop %v106
  %v108 = vmul.f32 %v66, 1.442695
  %v109 = vpow.pop %v108
  %v110 = vmul.f32 %v67, 1.442695
  %v111 = vpow.pop %v110
  %v112 = vmul.f32 %v68, 1.442695
  %v113 = vpow.pop %v112
  %v114 = vmul.f32 %v69, 1.442695
  %v115 = vpow.pop %v114
  %v116 = vmul.f32 %v70, 1.442695
  %v117 = vpow.pop %v116
  %v118 = vmul.f32 %v71, 1.442695
  %v119 = vpow.pop %v118
  %v120 = vmul.f32 %v72, 1.442695
  %v121 = vpow.pop %v120
  %v122 = vmul.f32 %v73, 1.442695
  %v123 = vpow.pop %v122
  %v124 = vmul.f32 %v74, 1.442695
  %v125 = vpow.pop %v124
  %v126 = vmul.f32 %v75, 1.442695
  %v127 = vpow.pop %v126
  %v128 = vmul.f32 %v76, 1.442695
  %v129 = vpow.pop %v128
  %v130 = vmul.f32 %v77, 1.442695
  %v131 = vpow.pop %v130
  %v132 = vmul.f32 %v78, 1.442695
  %v133 = vpow.pop %v132
  %v134 = vmul.f32 %v79, 1.442695
  %v135 = vpow.pop %v134
  %v136 = vmul.f32 %v80, 1.442695
  %v137 = vpow.pop %v136
  %v138 = vmul.f32 %v81, 1.442695
  %v139 = vpow.pop %v138
  %v140 = vmul.f32 %v82, 1.442695
  %v141 = vpow.pop %v140
  %v142 = vmul.f32 %v83, 1.442695
  %v143 = vpow.pop %v142
  %v144 = vmul.f32 %v84, 1.442695
  %v145 = vpow.pop %v144
  %v146 = vmul.f32 %v85, 1.442695
  %v147 = vpow.pop %v146
  %v148 = vmul.f32 %v86, 1.442695
  %v149 = vpow.pop %v148
  %v150 = vmul.f32 %v87, 1.442695
  %v151 = vpow.pop %v150
  %v152 = vadd.f32 %v89, 1.0
  %v153 = vadd.f32 %v91, 1.0
  %v154 = vadd.f32 %v93, 1.0
  %v155 = vadd.f32 %v95, 1.0
  %v156 = vadd.f32 %v97, 1.0
  %v157 = vadd.f32 %v99, 1.0
  %v158 = vadd.f32 %v101, 1.0
  %v159 = vadd.f32 %v103, 1.0
  %v160 = vadd.f32 %v105, 1.0
  %v161 = vadd.f32 %v107, 1.0
  %v162 = vadd.f32 %v109, 1.0
  %v163 = vadd.f32 %v111, 1.0
  %v164 = vadd.f32 %v113, 1.0
  %v165 = vadd.f32 %v115, 1.0
  %v166 = vadd.f32 %v117, 1.0
  %v167 = vadd.f32 %v119, 1.0
  %v168 = vadd.f32 %v121, 1.0
  %v169 = vadd.f32 %v123, 1.0
  %v170 = vadd.f32 %v125, 1.0
  %v171 = vadd.f32 %v127, 1.0
  %v172 = vadd.f32 %v129, 1.0
  %v173 = vadd.f32 %v131, 1.0
  %v174 = vadd.f32 %v133, 1.0
  %v175 = vadd.f32 %v135, 1.0
  %v176 = vadd.f32 %v137, 1.0
  %v177 = vadd.f32 %v139, 1.0
  %v178 = vadd.f32 %v141, 1.0
  %v179 = vadd.f32 %v143, 1.0
  %v180 = vadd.f32 %v145, 1.0
  %v181 = vadd.f32 %v147, 1.0
  %v182 = vadd.f32 %v149, 1.0
  %v183 = vadd.f32 %v151, 1.0
  %v184 = vrcp.pop %v152
  %v185 = vrcp.pop %v153
  %v186 = vrcp.pop %v154
  %v187 = vrcp.pop %v155
  %v188 = vrcp.pop %v156
  %v189 = vrcp.pop %v157
  %v190 = vrcp.pop %v158
  %v191 = vrcp.pop %v159
  %v192 = vrcp.pop %v160
  %v193 = vrcp.pop %v161
  %v194 = vrcp.pop %v162
  %v195 = vrcp.pop %v163
  %v196 = vrcp.pop %v164
  %v197 = vrcp.pop %v165
  %v198 = vrcp.pop %v166
  %v199 = vrcp.pop %v167
  %v200 = vrcp.pop %v168
  %v201 = vrcp.pop %v169
  %v202 = vrcp.pop %v170
  %v203 = vrcp.pop %v171
  %v204 = vrcp.pop %v172
  %v205 = vrcp.pop %v173
  %v206 = vrcp.pop %v174
  %v207 = vrcp.pop %v175
  %v208 = vrcp.pop %v176
  %v209 = vrcp.pop %v177
  %v210 = vrcp.pop %v178
  %v211 = vrcp.pop %v179
  %v212 = vrcp.pop %v180
  %v213 = vrcp.pop %v181
  %v214 = vrcp.pop %v182
  %v215 = vrcp.pop %v183
  %v216 = vmax.f32 %v184, 0.0
  %v217 = vmax.f32 %v185, 0.0
  %v218 = vmax.f32 %v186, 0.0
  %v219 = vmax.f32 %v187, 0.0
  %v220 = vmax.f32 %v188, 0.0
  %v221 = vmax.f32 %v189, 0.0
  %v222 = vmax.f32 %v190, 0.0
  %v223 = vmax.f32 %v191, 0.0
  %v224 = vmax.f32 %v192, 0.0
  %v225 = vmax.f32 %v193, 0.0
  %v226 = vmax.f32 %v194, 0.0
  %v227 = vmax.f32 %v195, 0.0
  %v228 = vmax.f32 %v196, 0.0
  %v229 = vmax.f32 %v197, 0.0
  %v230 = vmax.f32 %v198, 0.0
  %v231 = vmax.f32 %v199, 0.0
  %v232 = vmax.f32 %v200, 0.0
  %v233 = vmax.f32 %v201, 0.0
  %v234 = vmax.f32 %v202, 0.0
  %v235 = vmax.f32 %v203, 0.0
  %v236 = vmax.f32 %v204, 0.0
  %v237 = vmax.f32 %v205, 0.0
  %v238 = vmax.f32 %v206, 0.0
  %v239 = vmax.f32 %v207, 0.0
  %v240 = vmax.f32 %v208, 0.0
  %v241 = vmax.f32 %v209, 0.0
  %v242 = vmax.f32 %v210, 0.0
  %v243 = vmax.f32 %v211, 0.0
  %v244 = vmax.f32 %v212, 0.0
  %v245 = vmax.f32 %v213, 0.0
  %v246 = vmax.f32 %v214, 0.0
  %v247 = vmax.f32 %v215, 0.0
  %v248 = vmin.f32 %v216, 1.0
  %v249 = vmin.f32 %v217, 1.0
  %v250 = vmin.f32 %v218, 1.0
  %v251 = vmin.f32 %v219, 1.0
  %v252 = vmin.f32 %v220, 1.0
  %v253 = vmin.f32 %v221, 1.0
  %v254 = vmin.f32 %v222, 1.0
  %v255 = vmin.f32 %v223, 1.0
  %v256 = vmin.f32 %v224, 1.0
  %v257 = vmin.f32 %v225, 1.0
  %v258 = vmin.f32 %v226, 1.0
  %v259 = vmin.f32 %v227, 1.0
  %v260 = vmin.f32 %v228, 1.0
  %v261 = vmin.f32 %v229, 1.0
  %v262 = vmin.f32 %v230, 1.0
  %v263 = vmin.f32 %v231, 1.0
  %v264 = vmin.f32 %v232, 1.0
  %v265 = vmin.f32 %v233, 1.0
  %v266 = vmin.f32 %v234, 1.0
  %v267 = vmin.f32 %v235, 1.0
  %v268 = vmin.f32 %v236, 1.0
  %v269 = vmin.f32 %v237, 1.0
  %v270 = vmin.f32 %v238, 1.0
  %v271 = vmin.f32 %v239, 1.0
  %v272 = vmin.f32 %v240, 1.0
  %v273 = vmin.f32 %v241, 1.0
  %v274 = vmin.f32 %v242, 1.0
  %v275 = vmin.f32 %v243, 1.0
  %v276 = vmin.f32 %v244, 1.0
  %v277 = vmin.f32 %v245, 1.0
  %v278 = vmin.f32 %v246, 1.0
  %v279 = vmin.f32 %v247, 1.0
  %280 = vst [vmem:[%s1] sm:$0xff] %v248
  %vm281 = vcmask 523264
  %282 = vst.msk [vmem:[%s1 + $0x8] sm:$0xff] %vm281, %v249
  %283 = vst [vmem:[%s1 + $0x10] sm:$0xff] %v250
  %284 = vst.msk [vmem:[%s1 + $0x18] sm:$0xff] %vm281, %v251
  %285 = vst [vmem:[%s1 + $0x20] sm:$0xff] %v252
  %286 = vst.msk [vmem:[%s1 + $0x28] sm:$0xff] %vm281, %v253
  %287 = vst [vmem:[%s1 + $0x30] sm:$0xff] %v254
  %288 = vst.msk [vmem:[%s1 + $0x38] sm:$0xff] %vm281, %v255
  %289 = vst [vmem:[%s1 + $0x40] sm:$0xff] %v256
  %290 = vst.msk [vmem:[%s1 + $0x48] sm:$0xff] %vm281, %v257
  %291 = vst [vmem:[%s1 + $0x50] sm:$0xff] %v258
  %292 = vst.msk [vmem:[%s1 + $0x58] sm:$0xff] %vm281, %v259
  %293 = vst [vmem:[%s1 + $0x60] sm:$0xff] %v260
  %294 = vst.msk [vmem:[%s1 + $0x68] sm:$0xff] %vm281, %v261
  %295 = vst [vmem:[%s1 + $0x70] sm:$0xff] %v262
  %296 = vst.msk [vmem:[%s1 + $0x78] sm:$0xff] %vm281, %v263
  %297 = vst [vmem:[%s1 + $0x80] sm:$0xff] %v264
  %298 = vst.msk [vmem:[%s1 + $0x88] sm:$0xff] %vm281, %v265
  %299 = vst [vmem:[%s1 + $0x90] sm:$0xff] %v266
  %300 = vst.msk [vmem:[%s1 + $0x98] sm:$0xff] %vm281, %v267
  %301 = vst [vmem:[%s1 + $0xa0] sm:$0xff] %v268
  %302 = vst.msk [vmem:[%s1 + $0xa8] sm:$0xff] %vm281, %v269
  %303 = vst [vmem:[%s1 + $0xb0] sm:$0xff] %v270
  %304 = vst.msk [vmem:[%s1 + $0xb8] sm:$0xff] %vm281, %v271
  %305 = vst [vmem:[%s1 + $0xc0] sm:$0xff] %v272
  %306 = vst.msk [vmem:[%s1 + $0xc8] sm:$0xff] %vm281, %v273
  %307 = vst [vmem:[%s1 + $0xd0] sm:$0xff] %v274
  %308 = vst.msk [vmem:[%s1 + $0xd8] sm:$0xff] %vm281, %v275
  %309 = vst [vmem:[%s1 + $0xe0] sm:$0xff] %v276
  %310 = vst.msk [vmem:[%s1 + $0xe8] sm:$0xff] %vm281, %v277
  %311 = vst [vmem:[%s1 + $0xf0] sm:$0xff] %v278
  %312 = vst.msk [vmem:[%s1 + $0xf8] sm:$0xff] %vm281, %v279
  // Predicated region
  $region6: #{generator_forward.19} parent=0 // pred_check
    _
  $region7: #{generator_forward.19} parent=0 // pred_check_branch
    %314 = sbr.rel (0) target = $region9
  $region8: #{generator_forward.19} parent=0 // pred_region
    _
  $region9: #{generator_forward.19} parent=0 // pred_fallthru
    _
  // Predicated region
  $region10: #{generator_forward.19} parent=0 // pred_check
    _
  $region11: #{generator_forward.19} parent=0 // pred_check_branch
    %316 = sbr.rel (0) target = $region13
  $region12: #{generator_forward.19} parent=0 // pred_region
    _
  $region13: #{generator_forward.19} parent=0 // pred_fallthru
    _

</llo_original>
